<compile_context>
chip_gen: v7x
topology: tpu7x:2x2x1
jax: 0.10.0
libtpu: 0.0.40
codegen_flags: <defaults>
</compile_context>

<pallas_src>
import functools
import math

import jax
import jax.numpy as jnp
from jax.experimental import pallas as pl
from jax.experimental.pallas import tpu as pltpu


def _round_up(x, m):
    return (x + m - 1) // m * m


# ----------------------------------------------------------------------------
# Static slab layout (pure Python, built once from the layer dimensions)
# ----------------------------------------------------------------------------
def build_layout(d_model_A, d_model_T, d_model, d_ff_A, d_ff_T):
    """Row/column offsets of every parameter inside two packed slabs.

    vec slab (f32, (R_v, LW_v)) : LN gammas/betas + all biases, one per row.
    w   slab (bf16, (R_w, LW_w)): all weight matrices stacked along rows, each
                                  matrix start row aligned to 16 (bf16 tile).
    """
    lay = {}
    vrow, wrow = [0], [0]
    vwidths, wcols = [], []

    def take_vec(n, widths):
        r = vrow[0]
        vrow[0] += n
        vwidths.extend(widths)
        return r

    def take_w(nrows, ncols):
        r = wrow[0]
        wrow[0] += _round_up(nrows, 16)
        wcols.append(ncols)
        return (r, nrows, ncols)

    def mha(name, d_q, d_kv, self_attn):
        e = {"d_q": d_q, "d_kv": d_kv, "d_model": d_model, "self_attn": self_attn}
        e["vec_row"] = take_vec(6, [d_q, d_q, d_model, d_model, d_model, d_q])
        if self_attn:
            e["w_qkv"] = take_w(d_q, 3 * d_model)
        else:
            e["w_q"] = take_w(d_q, d_model)
            e["w_kv"] = take_w(d_kv, 2 * d_model)
        e["w_o"] = take_w(d_model, d_q)
        lay[name] = e

    def ffn(name, d, d_ff):
        e = {"d": d, "d_ff": d_ff}
        e["vec_row"] = take_vec(4, [d, d, d_ff, d])
        e["w1"] = take_w(d, d_ff)
        e["w2"] = take_w(d_ff, d)
        lay[name] = e

    mha("self_M1", d_model_A, d_model_A, True)
    mha("self_M2", d_model_T, d_model_T, True)
    mha("cross_M1", d_model_A, d_model_T, False)
    mha("cross_M2", d_model_T, d_model_A, False)
    ffn("ff_M1", d_model_A, d_ff_A)
    ffn("ff_M2", d_model_T, d_ff_T)

    lay["_vec_shape"] = (_round_up(vrow[0], 8), _round_up(max(vwidths), 128))
    lay["_w_shape"] = (_round_up(wrow[0], 16), _round_up(max(wcols), 128))
    return lay


# ----------------------------------------------------------------------------
# One-time parameter packing (hoisted out of the per-call path)
# ----------------------------------------------------------------------------
def pack_params(params, H, layout):
    """Builds the two slabs: 1/sqrt(d_k) folded into Wq/bq, Wq|Wk|Wv fused for
    self-attention (Wk|Wv for cross), bf16 cast applied once."""
    Rv, LWv = layout["_vec_shape"]
    Rw, LWw = layout["_w_shape"]
    vec = jnp.zeros((Rv, LWv), jnp.float32)
    wsl = jnp.zeros((Rw, LWw), jnp.float32)

    def put_vec(v, row, x):
        x = jnp.asarray(x, jnp.float32).reshape(-1)
        return v.at[row, : x.shape[0]].set(x)

    def put_w(w, spec, x):
        row, nr, nc = spec
        x = jnp.asarray(x, jnp.float32)
        assert x.shape == (nr, nc), (x.shape, (nr, nc))
        return w.at[row:row + nr, :nc].set(x)

    for name in ("self_M1", "self_M2", "cross_M1", "cross_M2"):
        lay, p = layout[name], params[name]
        scale = 1.0 / math.sqrt(lay["d_model"] // H)
        vr = lay["vec_row"]
        vec = put_vec(vec, vr + 0, p["ln_g"])
        vec = put_vec(vec, vr + 1, p["ln_b"])
        vec = put_vec(vec, vr + 2, p["bq"] * scale)   # scale folded into bq
        vec = put_vec(vec, vr + 3, p["bk"])
        vec = put_vec(vec, vr + 4, p["bv"])
        vec = put_vec(vec, vr + 5, p["bo"])
        if lay["self_attn"]:
            wsl = put_w(wsl, lay["w_qkv"],
                        jnp.concatenate([p["wq"] * scale, p["wk"], p["wv"]], axis=1))
        else:
            wsl = put_w(wsl, lay["w_q"], p["wq"] * scale)
            wsl = put_w(wsl, lay["w_kv"], jnp.concatenate([p["wk"], p["wv"]], axis=1))
        wsl = put_w(wsl, lay["w_o"], p["wo"])

    for name in ("ff_M1", "ff_M2"):
        lay, p = layout[name], params[name]
        vr = lay["vec_row"]
        vec = put_vec(vec, vr + 0, p["ln_g"])
        vec = put_vec(vec, vr + 1, p["ln_b"])
        vec = put_vec(vec, vr + 2, p["b1"])
        vec = put_vec(vec, vr + 3, p["b2"])
        wsl = put_w(wsl, lay["w1"], p["w1"])
        wsl = put_w(wsl, lay["w2"], p["w2"])

    return vec, wsl.astype(jnp.bfloat16)


# ----------------------------------------------------------------------------
# In-kernel helpers
# ----------------------------------------------------------------------------
def _layer_norm(x, gamma, beta, eps=1e-5):
    mu = jnp.mean(x, axis=-1, keepdims=True)
    var = jnp.mean((x - mu) ** 2, axis=-1, keepdims=True)
    return (x - mu) * jax.lax.rsqrt(var + eps) * gamma + beta


def _row(vec_ref, r, w):
    return vec_ref[r:r + 1, 0:w]          # (1, w) f32, static slice of the slab


def _mat(w_ref, spec):
    r, nr, nc = spec
    return w_ref[r:r + nr, 0:nc]           # (nr, nc) bf16, static slice


def _mha_block(x, kv_raw, madd, lay, vec_ref, w_ref, H):
    """Pre-norm multi-head attention + residual for one batch element.

    x      : (Sq, Dq) f32 residual stream (query side)
    kv_raw : (Sk, Dkv) f32 raw K/V source (None for self-attention: K=V=LN(x))
    madd   : (1, Sk) f32 additive mask (0 valid / -1e30 masked)
    """
    dm = lay["d_model"]
    dk = dm // H
    vr = lay["vec_row"]
    d_q = lay["d_q"]

    ln_g = _row(vec_ref, vr + 0, d_q)
    ln_b = _row(vec_ref, vr + 1, d_q)
    b_q = _row(vec_ref, vr + 2, dm)        # pre-scaled by 1/sqrt(d_k)
    b_k = _row(vec_ref, vr + 3, dm)
    b_v = _row(vec_ref, vr + 4, dm)
    b_o = _row(vec_ref, vr + 5, d_q)

    xn = _layer_norm(x, ln_g, ln_b)
    xn_b = xn.astype(jnp.bfloat16)

    if lay["self_attn"]:
        # ONE fused (Sq, Dq) @ (Dq, 3*dm) matmul; heads/Q/K/V split by lane
        # slicing afterwards (idle XLU) — replaces 3*H narrow matmuls.
        qkv = jnp.dot(xn_b, _mat(w_ref, lay["w_qkv"]),
                      preferred_element_type=jnp.float32)
        q = qkv[:, 0:dm] + b_q
        k = qkv[:, dm:2 * dm] + b_k
        v = qkv[:, 2 * dm:3 * dm] + b_v
    else:
        q = jnp.dot(xn_b, _mat(w_ref, lay["w_q"]),
                    preferred_element_type=jnp.float32) + b_q
        kv = jnp.dot(kv_raw.astype(jnp.bfloat16), _mat(w_ref, lay["w_kv"]),
                     preferred_element_type=jnp.float32)
        k = kv[:, 0:dm] + b_k
        v = kv[:, dm:2 * dm] + b_v

    # Per-head attention (score / AV matmuls are intrinsically per-head; H is
    # small and static).  Scale already folded into q.
    head_outs = []
    for h in range(H):
        sl = slice(h * dk, (h + 1) * dk)
        qh = q[:, sl].astype(jnp.bfloat16)
        kh = k[:, sl].astype(jnp.bfloat16)
        vh = v[:, sl].astype(jnp.bfloat16)
        s = jnp.einsum("qd,kd->qk", qh, kh,
                       preferred_element_type=jnp.float32)          # (Sq, Sk)
        s = s + madd                                                 # additive mask
        s = s - jnp.max(s, axis=-1, keepdims=True)
        e = jnp.exp(s)
        # approx reciprocal: EUP slot, ~1e-3 rel error (fine at 2e-2 tolerance)
        attn = e * pl.reciprocal(jnp.sum(e, axis=-1, keepdims=True), approx=True)
        head_outs.append(jnp.dot(attn.astype(jnp.bfloat16), vh,
                                 preferred_element_type=jnp.float32))  # (Sq, dk)

    # Concat heads along lanes, then ONE output projection (== concat @ Wo).
    o = jnp.concatenate(head_outs, axis=-1).astype(jnp.bfloat16)      # (Sq, dm)
    proj = jnp.dot(o, _mat(w_ref, lay["w_o"]),
                   preferred_element_type=jnp.float32)
    return x + proj + b_o


def _ffn_block(x, lay, vec_ref, w_ref):
    vr = lay["vec_row"]
    d, dff = lay["d"], lay["d_ff"]
    ln_g = _row(vec_ref, vr + 0, d)
    ln_b = _row(vec_ref, vr + 1, d)
    b1 = _row(vec_ref, vr + 2, dff)
    b2 = _row(vec_ref, vr + 3, d)

    xn = _layer_norm(x, ln_g, ln_b)
    h = jnp.dot(xn.astype(jnp.bfloat16), _mat(w_ref, lay["w1"]),
                preferred_element_type=jnp.float32) + b1
    h = jnp.maximum(h, 0.0)                                           # ReLU
    y = jnp.dot(h.astype(jnp.bfloat16), _mat(w_ref, lay["w2"]),
                preferred_element_type=jnp.float32) + b2
    return x + y


# ----------------------------------------------------------------------------
# Fused whole-layer kernel: one grid step == one batch element, both modalities
# ----------------------------------------------------------------------------
def _bimodal_kernel(layout, H, m1_ref, m2_ref, msk1_ref, msk2_ref,
                    vec_ref, w_ref, out1_ref, out2_ref):
    x1 = m1_ref[0].astype(jnp.float32)                 # (S_A, D_A)
    x2 = m2_ref[0].astype(jnp.float32)                 # (S_T, D_T)

    # Additive masks hoisted: computed once, reused by two attention blocks
    # each; finite -1e30 avoids -inf NaNs for fully-masked rows.
    madd1 = jnp.where(msk1_ref[0] == 0.0, -1e30, 0.0).astype(jnp.float32)  # (1, S_A)
    madd2 = jnp.where(msk2_ref[0] == 0.0, -1e30, 0.0).astype(jnp.float32)  # (1, S_T)

    M1a = _mha_block(x1, None, madd1, layout["self_M1"], vec_ref, w_ref, H)
    M2a = _mha_block(x2, None, madd2, layout["self_M2"], vec_ref, w_ref, H)
    M1m2 = _mha_block(M1a, M2a, madd2, layout["cross_M1"], vec_ref, w_ref, H)
    M2m1 = _mha_block(M2a, M1a, madd1, layout["cross_M2"], vec_ref, w_ref, H)
    M1m2 = _ffn_block(M1m2, layout["ff_M1"], vec_ref, w_ref)
    M2m1 = _ffn_block(M2m1, layout["ff_M2"], vec_ref, w_ref)

    out1_ref[0] = M1m2.astype(out1_ref.dtype)
    out2_ref[0] = M2m1.astype(out2_ref.dtype)


# ----------------------------------------------------------------------------
# Wrapper (no per-call weight prep: slabs are packed once, outside this path)
# ----------------------------------------------------------------------------
def bimodal_encoder_two(M1, M2, M1_mask, M2_mask, vec_slab, w_slab, *, layout, H):
    B, S_A, D_A = M1.shape
    _, S_T, D_T = M2.shape
    Rv, LWv = vec_slab.shape
    Rw, LWw = w_slab.shape

    kernel = functools.partial(_bimodal_kernel, layout, H)

    out1, out2 = pl.pallas_call(
        kernel,
        out_shape=(jax.ShapeDtypeStruct((B, S_A, D_A), M1.dtype),
                   jax.ShapeDtypeStruct((B, S_T, D_T), M2.dtype)),
        grid=(B,),
        in_specs=[
            pl.BlockSpec((1, S_A, D_A), lambda b: (b, 0, 0)),
            pl.BlockSpec((1, S_T, D_T), lambda b: (b, 0, 0)),
            pl.BlockSpec((1, 1, S_A), lambda b: (b, 0, 0)),
            pl.BlockSpec((1, 1, S_T), lambda b: (b, 0, 0)),
            # Packed parameter slabs: constant index_map -> fetched once.
            pl.BlockSpec((Rv, LWv), lambda b: (0, 0)),
            pl.BlockSpec((Rw, LWw), lambda b: (0, 0)),
        ],
        out_specs=(pl.BlockSpec((1, S_A, D_A), lambda b: (b, 0, 0)),
                   pl.BlockSpec((1, S_T, D_T), lambda b: (b, 0, 0))),
        compiler_params=pltpu.CompilerParams(
            dimension_semantics=("parallel",)),   # v7x: 2 TCs split the batch
    )(M1, M2, M1_mask, M2_mask, vec_slab, w_slab)
    return out1, out2


# ----------------------------------------------------------------------------
# Deterministic parameter construction (synthetic, no checkpoint load)
# ----------------------------------------------------------------------------
def _linear(key, d_in, d_out, scale=0.05):
    kw, kb = jax.random.split(key)
    W = scale * jax.random.normal(kw, (d_in, d_out), jnp.float32)
    b = scale * jax.random.normal(kb, (1, d_out), jnp.float32)
    return W, b


def _init_mha(key, d_q, d_kv, d_model):
    ks = jax.random.split(key, 6)
    wq, bq = _linear(ks[0], d_q, d_model)
    wk, bk = _linear(ks[1], d_kv, d_model)
    wv, bv = _linear(ks[2], d_kv, d_model)
    wo, bo = _linear(ks[3], d_model, d_q)
    ln_g = jnp.ones((1, d_q), jnp.float32) + 0.01 * jax.random.normal(ks[4], (1, d_q))
    ln_b = 0.01 * jax.random.normal(ks[5], (1, d_q))
    return dict(wq=wq, bq=bq, wk=wk, bk=bk, wv=wv, bv=bv, wo=wo, bo=bo,
                ln_g=ln_g, ln_b=ln_b)


def _init_ffn(key, d_model, d_ff):
    ks = jax.random.split(key, 4)
    w1, b1 = _linear(ks[0], d_model, d_ff)
    w2, b2 = _linear(ks[1], d_ff, d_model)
    ln_g = jnp.ones((1, d_model), jnp.float32) + 0.01 * jax.random.normal(ks[2], (1, d_model))
    ln_b = 0.01 * jax.random.normal(ks[3], (1, d_model))
    return dict(w1=w1, b1=b1, w2=w2, b2=b2, ln_g=ln_g, ln_b=ln_b)


def init_params(key, d_model_A, d_model_T, d_model, d_ff_A, d_ff_T):
    ks = jax.random.split(key, 6)
    return dict(
        self_M1=_init_mha(ks[0], d_model_A, d_model_A, d_model),
        self_M2=_init_mha(ks[1], d_model_T, d_model_T, d_model),
        cross_M1=_init_mha(ks[2], d_model_A, d_model_T, d_model),
        cross_M2=_init_mha(ks[3], d_model_T, d_model_A, d_model),
        ff_M1=_init_ffn(ks[4], d_model_A, d_ff_A),
        ff_M2=_init_ffn(ks[5], d_model_T, d_ff_T),
    )


# ----------------------------------------------------------------------------
# Pure-JAX f32 reference (for correctness check)
# ----------------------------------------------------------------------------
def _ref_ln(x, g, b, eps=1e-5):
    mu = jnp.mean(x, -1, keepdims=True)
    var = jnp.mean((x - mu) ** 2, -1, keepdims=True)
    return (x - mu) * jax.lax.rsqrt(var + eps) * g + b


def _ref_mha(xq, xkv, mask, p, H, self_attn):
    xn = _ref_ln(xq, p["ln_g"][0], p["ln_b"][0])
    kv = xn if self_attn else xkv
    q = xn @ p["wq"] + p["bq"][0]
    k = kv @ p["wk"] + p["bk"][0]
    v = kv @ p["wv"] + p["bv"][0]
    B, Sq, dm = q.shape
    Sk = k.shape[1]
    dk = dm // H
    qh = q.reshape(B, Sq, H, dk).transpose(0, 2, 1, 3)
    kh = k.reshape(B, Sk, H, dk).transpose(0, 2, 1, 3)
    vh = v.reshape(B, Sk, H, dk).transpose(0, 2, 1, 3)
    s = jnp.einsum("bhqd,bhkd->bhqk", qh, kh) / math.sqrt(dk)
    s = jnp.where(mask[:, None, :, :] == 0.0, -1e30, s)
    a = jax.nn.softmax(s, axis=-1)
    o = jnp.einsum("bhqk,bhkd->bhqd", a, vh).transpose(0, 2, 1, 3).reshape(B, Sq, dm)
    return xq + (o @ p["wo"] + p["bo"][0])


def _ref_ffn(x, p):
    xn = _ref_ln(x, p["ln_g"][0], p["ln_b"][0])
    h = jnp.maximum(xn @ p["w1"] + p["b1"][0], 0.0)
    return x + (h @ p["w2"] + p["b2"][0])


def ref_forward(M1, M2, m1, m2, params, H):
    M1a = _ref_mha(M1, M1, m1, params["self_M1"], H, True)
    M2a = _ref_mha(M2, M2, m2, params["self_M2"], H, True)
    M1m2 = _ref_mha(M1a, M2a, m2, params["cross_M1"], H, False)
    M2m1 = _ref_mha(M2a, M1a, m1, params["cross_M2"], H, False)
    return _ref_ffn(M1m2, params["ff_M1"]), _ref_ffn(M2m1, params["ff_M2"])


# ----------------------------------------------------------------------------
if __name__ == "__main__":
    # Small shapes consistent with the module.  B kept a multiple of 2 so
    # v7x's two TensorCores both get a batch element.
    B = 2
    S_A, S_T = 8, 16            # sequence lengths of modality A (audio) / T (text)
    d_model_A, d_model_T = 32, 48
    d_model, H = 32, 4
    d_ff_A, d_ff_T = 64, 96

    key = jax.random.PRNGKey(0)
    k_m1, k_m2, k_p = jax.random.split(key, 3)

    M1 = jax.random.normal(k_m1, (B, S_A, d_model_A), jnp.float32)
    M2 = jax.random.normal(k_m2, (B, S_T, d_model_T), jnp.float32)

    # padding masks (B, 1, S_key); zero out the tail of the second batch element
    M1_mask = jnp.ones((B, 1, S_A), jnp.float32).at[1, 0, S_A - 2:].set(0.0)
    M2_mask = jnp.ones((B, 1, S_T), jnp.float32).at[1, 0, S_T - 3:].set(0.0)

    params = init_params(k_p, d_model_A, d_model_T, d_model, d_ff_A, d_ff_T)

    # One-time parameter packing (bf16 cast, QKV fusion, 1/sqrt(dk) fold, slab
    # concat) — hoisted out of the per-call path entirely.
    layout = build_layout(d_model_A, d_model_T, d_model, d_ff_A, d_ff_T)
    vec_slab, w_slab = pack_params(params, H, layout)
    vec_slab = jax.device_put(vec_slab)
    w_slab = jax.device_put(w_slab)

    fwd = jax.jit(functools.partial(bimodal_encoder_two, layout=layout, H=H))
    out1, out2 = fwd(M1, M2, M1_mask, M2_mask, vec_slab, w_slab)
    jax.block_until_ready((out1, out2))

    ref1, ref2 = ref_forward(M1, M2, M1_mask, M2_mask, params, H)
    assert out1.shape == (B, S_A, d_model_A) and out2.shape == (B, S_T, d_model_T)
    # tolerance accounts for bf16 MXU operands (f32 accumulation/LN/softmax)
    assert jnp.allclose(out1, ref1, atol=2e-2, rtol=2e-2), "M1 branch mismatch"
    assert jnp.allclose(out2, ref2, atol=2e-2, rtol=2e-2), "M2 branch mismatch"

    print("KERNEL_OK")
</pallas_src>

<mosaic_0001>
module attributes {stable_mosaic.version = 11 : i64} {
  func.func @_bimodal_kernel(%arg0: i32, %arg1: memref<1x8x32xf32, #tpu.memory_space<vmem>>, %arg2: memref<1x16x48xf32, #tpu.memory_space<vmem>>, %arg3: memref<1x1x8xf32, #tpu.memory_space<vmem>>, %arg4: memref<1x1x16xf32, #tpu.memory_space<vmem>>, %arg5: memref<32x128xf32, #tpu.memory_space<vmem>>, %arg6: memref<608x128xbf16, #tpu.memory_space<vmem>>, %arg7: memref<1x8x32xf32, #tpu.memory_space<vmem>>, %arg8: memref<1x16x48xf32, #tpu.memory_space<vmem>>) attributes {dimension_semantics = [#tpu.dimension_semantics<parallel>], iteration_bounds = array<i64: 2>, scalar_prefetch = 0 : i64, scratch_operands = 0 : i64, tpu.core_type = #tpu.core_type<tc>, window_params = [{transform_indices = @transform_0, window_bounds = array<i64: 1, 8, 32>}, {transform_indices = @transform_1, window_bounds = array<i64: 1, 16, 48>}, {transform_indices = @transform_2, window_bounds = array<i64: 1, 1, 8>}, {transform_indices = @transform_3, window_bounds = array<i64: 1, 1, 16>}, {pipeline_mode = #tpu.pipeline_mode<synchronous>, transform_indices = @transform_4, window_bounds = array<i64: 32, 128>}, {pipeline_mode = #tpu.pipeline_mode<synchronous>, transform_indices = @transform_5, window_bounds = array<i64: 608, 128>}, {transform_indices = @transform_6, window_bounds = array<i64: 1, 8, 32>}, {transform_indices = @transform_7, window_bounds = array<i64: 1, 16, 48>}]} {
    %c0 = arith.constant 0 : index
    %c0_0 = arith.constant 0 : index
    %c0_1 = arith.constant 0 : index
    %0 = vector.load %arg1[%c0, %c0_0, %c0_1] : memref<1x8x32xf32, #tpu.memory_space<vmem>>, vector<1x8x32xf32>
    %1 = vector.shape_cast %0 : vector<1x8x32xf32> to vector<8x32xf32>
    %c0_2 = arith.constant 0 : index
    %c0_3 = arith.constant 0 : index
    %c0_4 = arith.constant 0 : index
    %2 = vector.load %arg2[%c0_2, %c0_3, %c0_4] : memref<1x16x48xf32, #tpu.memory_space<vmem>>, vector<1x16x48xf32>
    %3 = vector.shape_cast %2 : vector<1x16x48xf32> to vector<16x48xf32>
    %c0_5 = arith.constant 0 : index
    %c0_6 = arith.constant 0 : index
    %c0_7 = arith.constant 0 : index
    %4 = vector.load %arg3[%c0_5, %c0_6, %c0_7] : memref<1x1x8xf32, #tpu.memory_space<vmem>>, vector<1x1x8xf32>
    %5 = vector.shape_cast %4 : vector<1x1x8xf32> to vector<1x8xf32>
    %cst = arith.constant 0.000000e+00 : f32
    %6 = vector.broadcast %cst : f32 to vector<1x8xf32>
    %7 = arith.cmpf oeq, %5, %6 : vector<1x8xf32>
    %cst_8 = arith.constant -1.000000e+30 : f32
    %cst_9 = arith.constant 0.000000e+00 : f32
    %8 = vector.broadcast %cst_8 : f32 to vector<1x8xf32>
    %9 = vector.broadcast %cst_9 : f32 to vector<1x8xf32>
    %10 = arith.select %7, %8, %9 : vector<1x8xi1>, vector<1x8xf32>
    %c0_10 = arith.constant 0 : index
    %c0_11 = arith.constant 0 : index
    %c0_12 = arith.constant 0 : index
    %11 = vector.load %arg4[%c0_10, %c0_11, %c0_12] : memref<1x1x16xf32, #tpu.memory_space<vmem>>, vector<1x1x16xf32>
    %12 = vector.shape_cast %11 : vector<1x1x16xf32> to vector<1x16xf32>
    %cst_13 = arith.constant 0.000000e+00 : f32
    %13 = vector.broadcast %cst_13 : f32 to vector<1x16xf32>
    %14 = arith.cmpf oeq, %12, %13 : vector<1x16xf32>
    %cst_14 = arith.constant -1.000000e+30 : f32
    %cst_15 = arith.constant 0.000000e+00 : f32
    %15 = vector.broadcast %cst_14 : f32 to vector<1x16xf32>
    %16 = vector.broadcast %cst_15 : f32 to vector<1x16xf32>
    %17 = arith.select %14, %15, %16 : vector<1x16xi1>, vector<1x16xf32>
    %c0_16 = arith.constant 0 : index
    %c0_17 = arith.constant 0 : index
    %18 = vector.load %arg5[%c0_16, %c0_17] : memref<32x128xf32, #tpu.memory_space<vmem>>, vector<1x32xf32>
    %c1 = arith.constant 1 : index
    %c0_18 = arith.constant 0 : index
    %19 = vector.load %arg5[%c1, %c0_18] : memref<32x128xf32, #tpu.memory_space<vmem>>, vector<1x32xf32>
    %c2 = arith.constant 2 : index
    %c0_19 = arith.constant 0 : index
    %20 = vector.load %arg5[%c2, %c0_19] : memref<32x128xf32, #tpu.memory_space<vmem>>, vector<1x32xf32>
    %c3 = arith.constant 3 : index
    %c0_20 = arith.constant 0 : index
    %21 = vector.load %arg5[%c3, %c0_20] : memref<32x128xf32, #tpu.memory_space<vmem>>, vector<1x32xf32>
    %c4 = arith.constant 4 : index
    %c0_21 = arith.constant 0 : index
    %22 = vector.load %arg5[%c4, %c0_21] : memref<32x128xf32, #tpu.memory_space<vmem>>, vector<1x32xf32>
    %c5 = arith.constant 5 : index
    %c0_22 = arith.constant 0 : index
    %23 = vector.load %arg5[%c5, %c0_22] : memref<32x128xf32, #tpu.memory_space<vmem>>, vector<1x32xf32>
    %cst_23 = arith.constant dense<0.000000e+00> : vector<8xf32>
    %24 = vector.multi_reduction <add>, %1, %cst_23 [1] : vector<8x32xf32> to vector<8xf32>
    %25 = vector.shape_cast %24 : vector<8xf32> to vector<8x1xf32>
    %cst_24 = arith.constant 3.200000e+01 : f32
    %26 = vector.broadcast %cst_24 : f32 to vector<8x1xf32>
    %27 = arith.divf %25, %26 : vector<8x1xf32>
    %28 = vector.broadcast %27 : vector<8x1xf32> to vector<8x32xf32>
    %29 = arith.subf %1, %28 : vector<8x32xf32>
    %30 = arith.mulf %29, %29 : vector<8x32xf32>
    %cst_25 = arith.constant dense<0.000000e+00> : vector<8xf32>
    %31 = vector.multi_reduction <add>, %30, %cst_25 [1] : vector<8x32xf32> to vector<8xf32>
    %32 = vector.shape_cast %31 : vector<8xf32> to vector<8x1xf32>
    %cst_26 = arith.constant 3.200000e+01 : f32
    %33 = vector.broadcast %cst_26 : f32 to vector<8x1xf32>
    %34 = arith.divf %32, %33 : vector<8x1xf32>
    %35 = vector.broadcast %27 : vector<8x1xf32> to vector<8x32xf32>
    %36 = arith.subf %1, %35 : vector<8x32xf32>
    %cst_27 = arith.constant 9.99999974E-6 : f32
    %37 = vector.broadcast %cst_27 : f32 to vector<8x1xf32>
    %38 = arith.addf %34, %37 : vector<8x1xf32>
    %39 = math.rsqrt %38 : vector<8x1xf32>
    %40 = vector.broadcast %39 : vector<8x1xf32> to vector<8x32xf32>
    %41 = arith.mulf %36, %40 : vector<8x32xf32>
    %42 = vector.broadcast %18 : vector<1x32xf32> to vector<8x32xf32>
    %43 = arith.mulf %41, %42 : vector<8x32xf32>
    %44 = vector.broadcast %19 : vector<1x32xf32> to vector<8x32xf32>
    %45 = arith.addf %43, %44 : vector<8x32xf32>
    %46 = arith.truncf %45 : vector<8x32xf32> to vector<8x32xbf16>
    %c0_28 = arith.constant 0 : index
    %c0_29 = arith.constant 0 : index
    %47 = vector.load %arg6[%c0_28, %c0_29] : memref<608x128xbf16, #tpu.memory_space<vmem>>, vector<32x96xbf16>
    %cst_30 = arith.constant dense<0.000000e+00> : vector<8x96xf32>
    %48 = tpu.matmul %46, %47, %cst_30 {dimension_numbers = #tpu.dot_dimension_numbers<[1], [0], [0], [1], [0, 0, 1, 1], [], []>} : vector<8x32xbf16>, vector<32x96xbf16>, vector<8x96xf32> -> vector<8x96xf32>
    %49 = vector.extract_strided_slice %48 {offsets = [0, 0], sizes = [8, 32], strides = [1, 1]} : vector<8x96xf32> to vector<8x32xf32>
    %50 = vector.broadcast %20 : vector<1x32xf32> to vector<8x32xf32>
    %51 = arith.addf %49, %50 : vector<8x32xf32>
    %52 = vector.extract_strided_slice %48 {offsets = [0, 32], sizes = [8, 32], strides = [1, 1]} : vector<8x96xf32> to vector<8x32xf32>
    %53 = vector.broadcast %21 : vector<1x32xf32> to vector<8x32xf32>
    %54 = arith.addf %52, %53 : vector<8x32xf32>
    %55 = vector.extract_strided_slice %48 {offsets = [0, 64], sizes = [8, 32], strides = [1, 1]} : vector<8x96xf32> to vector<8x32xf32>
    %56 = vector.broadcast %22 : vector<1x32xf32> to vector<8x32xf32>
    %57 = arith.addf %55, %56 : vector<8x32xf32>
    %58 = vector.extract_strided_slice %51 {offsets = [0, 0], sizes = [8, 8], strides = [1, 1]} : vector<8x32xf32> to vector<8x8xf32>
    %59 = arith.truncf %58 : vector<8x8xf32> to vector<8x8xbf16>
    %60 = vector.extract_strided_slice %54 {offsets = [0, 0], sizes = [8, 8], strides = [1, 1]} : vector<8x32xf32> to vector<8x8xf32>
    %61 = arith.truncf %60 : vector<8x8xf32> to vector<8x8xbf16>
    %62 = vector.extract_strided_slice %57 {offsets = [0, 0], sizes = [8, 8], strides = [1, 1]} : vector<8x32xf32> to vector<8x8xf32>
    %63 = arith.truncf %62 : vector<8x8xf32> to vector<8x8xbf16>
    "tpu.trace_start"() <{level = 10 : i32, message = "qd,kd->qk"}> : () -> ()
    %cst_31 = arith.constant dense<0.000000e+00> : vector<8x8xf32>
    %64 = tpu.matmul %59, %61, %cst_31 {dimension_numbers = #tpu.dot_dimension_numbers<[1], [1], [0], [0], [0, 0, 1, 0], [], []>} : vector<8x8xbf16>, vector<8x8xbf16>, vector<8x8xf32> -> vector<8x8xf32>
    "tpu.trace_stop"() : () -> ()
    %65 = vector.broadcast %10 : vector<1x8xf32> to vector<8x8xf32>
    %66 = arith.addf %64, %65 : vector<8x8xf32>
    %cst_32 = arith.constant dense<0xFF800000> : vector<8xf32>
    %67 = vector.multi_reduction <maximumf>, %66, %cst_32 [1] : vector<8x8xf32> to vector<8xf32>
    %68 = vector.shape_cast %67 : vector<8xf32> to vector<8x1xf32>
    %69 = vector.broadcast %68 : vector<8x1xf32> to vector<8x8xf32>
    %70 = arith.subf %66, %69 : vector<8x8xf32>
    %71 = math.exp %70 : vector<8x8xf32>
    %cst_33 = arith.constant dense<0.000000e+00> : vector<8xf32>
    %72 = vector.multi_reduction <add>, %71, %cst_33 [1] : vector<8x8xf32> to vector<8xf32>
    %73 = vector.shape_cast %72 : vector<8xf32> to vector<8x1xf32>
    %74 = tpu.reciprocal %73 {approx = true} : vector<8x1xf32> -> vector<8x1xf32>
    %75 = vector.broadcast %74 : vector<8x1xf32> to vector<8x8xf32>
    %76 = arith.mulf %71, %75 : vector<8x8xf32>
    %77 = arith.truncf %76 : vector<8x8xf32> to vector<8x8xbf16>
    %cst_34 = arith.constant dense<0.000000e+00> : vector<8x8xf32>
    %78 = tpu.matmul %77, %63, %cst_34 {dimension_numbers = #tpu.dot_dimension_numbers<[1], [0], [0], [1], [0, 0, 1, 1], [], []>} : vector<8x8xbf16>, vector<8x8xbf16>, vector<8x8xf32> -> vector<8x8xf32>
    %79 = vector.extract_strided_slice %51 {offsets = [0, 8], sizes = [8, 8], strides = [1, 1]} : vector<8x32xf32> to vector<8x8xf32>
    %80 = arith.truncf %79 : vector<8x8xf32> to vector<8x8xbf16>
    %81 = vector.extract_strided_slice %54 {offsets = [0, 8], sizes = [8, 8], strides = [1, 1]} : vector<8x32xf32> to vector<8x8xf32>
    %82 = arith.truncf %81 : vector<8x8xf32> to vector<8x8xbf16>
    %83 = vector.extract_strided_slice %57 {offsets = [0, 8], sizes = [8, 8], strides = [1, 1]} : vector<8x32xf32> to vector<8x8xf32>
    %84 = arith.truncf %83 : vector<8x8xf32> to vector<8x8xbf16>
    "tpu.trace_start"() <{level = 10 : i32, message = "qd,kd->qk"}> : () -> ()
    %cst_35 = arith.constant dense<0.000000e+00> : vector<8x8xf32>
    %85 = tpu.matmul %80, %82, %cst_35 {dimension_numbers = #tpu.dot_dimension_numbers<[1], [1], [0], [0], [0, 0, 1, 0], [], []>} : vector<8x8xbf16>, vector<8x8xbf16>, vector<8x8xf32> -> vector<8x8xf32>
    "tpu.trace_stop"() : () -> ()
    %86 = vector.broadcast %10 : vector<1x8xf32> to vector<8x8xf32>
    %87 = arith.addf %85, %86 : vector<8x8xf32>
    %cst_36 = arith.constant dense<0xFF800000> : vector<8xf32>
    %88 = vector.multi_reduction <maximumf>, %87, %cst_36 [1] : vector<8x8xf32> to vector<8xf32>
    %89 = vector.shape_cast %88 : vector<8xf32> to vector<8x1xf32>
    %90 = vector.broadcast %89 : vector<8x1xf32> to vector<8x8xf32>
    %91 = arith.subf %87, %90 : vector<8x8xf32>
    %92 = math.exp %91 : vector<8x8xf32>
    %cst_37 = arith.constant dense<0.000000e+00> : vector<8xf32>
    %93 = vector.multi_reduction <add>, %92, %cst_37 [1] : vector<8x8xf32> to vector<8xf32>
    %94 = vector.shape_cast %93 : vector<8xf32> to vector<8x1xf32>
    %95 = tpu.reciprocal %94 {approx = true} : vector<8x1xf32> -> vector<8x1xf32>
    %96 = vector.broadcast %95 : vector<8x1xf32> to vector<8x8xf32>
    %97 = arith.mulf %92, %96 : vector<8x8xf32>
    %98 = arith.truncf %97 : vector<8x8xf32> to vector<8x8xbf16>
    %cst_38 = arith.constant dense<0.000000e+00> : vector<8x8xf32>
    %99 = tpu.matmul %98, %84, %cst_38 {dimension_numbers = #tpu.dot_dimension_numbers<[1], [0], [0], [1], [0, 0, 1, 1], [], []>} : vector<8x8xbf16>, vector<8x8xbf16>, vector<8x8xf32> -> vector<8x8xf32>
    %100 = vector.extract_strided_slice %51 {offsets = [0, 16], sizes = [8, 8], strides = [1, 1]} : vector<8x32xf32> to vector<8x8xf32>
    %101 = arith.truncf %100 : vector<8x8xf32> to vector<8x8xbf16>
    %102 = vector.extract_strided_slice %54 {offsets = [0, 16], sizes = [8, 8], strides = [1, 1]} : vector<8x32xf32> to vector<8x8xf32>
    %103 = arith.truncf %102 : vector<8x8xf32> to vector<8x8xbf16>
    %104 = vector.extract_strided_slice %57 {offsets = [0, 16], sizes = [8, 8], strides = [1, 1]} : vector<8x32xf32> to vector<8x8xf32>
    %105 = arith.truncf %104 : vector<8x8xf32> to vector<8x8xbf16>
    "tpu.trace_start"() <{level = 10 : i32, message = "qd,kd->qk"}> : () -> ()
    %cst_39 = arith.constant dense<0.000000e+00> : vector<8x8xf32>
    %106 = tpu.matmul %101, %103, %cst_39 {dimension_numbers = #tpu.dot_dimension_numbers<[1], [1], [0], [0], [0, 0, 1, 0], [], []>} : vector<8x8xbf16>, vector<8x8xbf16>, vector<8x8xf32> -> vector<8x8xf32>
    "tpu.trace_stop"() : () -> ()
    %107 = vector.broadcast %10 : vector<1x8xf32> to vector<8x8xf32>
    %108 = arith.addf %106, %107 : vector<8x8xf32>
    %cst_40 = arith.constant dense<0xFF800000> : vector<8xf32>
    %109 = vector.multi_reduction <maximumf>, %108, %cst_40 [1] : vector<8x8xf32> to vector<8xf32>
    %110 = vector.shape_cast %109 : vector<8xf32> to vector<8x1xf32>
    %111 = vector.broadcast %110 : vector<8x1xf32> to vector<8x8xf32>
    %112 = arith.subf %108, %111 : vector<8x8xf32>
    %113 = math.exp %112 : vector<8x8xf32>
    %cst_41 = arith.constant dense<0.000000e+00> : vector<8xf32>
    %114 = vector.multi_reduction <add>, %113, %cst_41 [1] : vector<8x8xf32> to vector<8xf32>
    %115 = vector.shape_cast %114 : vector<8xf32> to vector<8x1xf32>
    %116 = tpu.reciprocal %115 {approx = true} : vector<8x1xf32> -> vector<8x1xf32>
    %117 = vector.broadcast %116 : vector<8x1xf32> to vector<8x8xf32>
    %118 = arith.mulf %113, %117 : vector<8x8xf32>
    %119 = arith.truncf %118 : vector<8x8xf32> to vector<8x8xbf16>
    %cst_42 = arith.constant dense<0.000000e+00> : vector<8x8xf32>
    %120 = tpu.matmul %119, %105, %cst_42 {dimension_numbers = #tpu.dot_dimension_numbers<[1], [0], [0], [1], [0, 0, 1, 1], [], []>} : vector<8x8xbf16>, vector<8x8xbf16>, vector<8x8xf32> -> vector<8x8xf32>
    %121 = vector.extract_strided_slice %51 {offsets = [0, 24], sizes = [8, 8], strides = [1, 1]} : vector<8x32xf32> to vector<8x8xf32>
    %122 = arith.truncf %121 : vector<8x8xf32> to vector<8x8xbf16>
    %123 = vector.extract_strided_slice %54 {offsets = [0, 24], sizes = [8, 8], strides = [1, 1]} : vector<8x32xf32> to vector<8x8xf32>
    %124 = arith.truncf %123 : vector<8x8xf32> to vector<8x8xbf16>
    %125 = vector.extract_strided_slice %57 {offsets = [0, 24], sizes = [8, 8], strides = [1, 1]} : vector<8x32xf32> to vector<8x8xf32>
    %126 = arith.truncf %125 : vector<8x8xf32> to vector<8x8xbf16>
    "tpu.trace_start"() <{level = 10 : i32, message = "qd,kd->qk"}> : () -> ()
    %cst_43 = arith.constant dense<0.000000e+00> : vector<8x8xf32>
    %127 = tpu.matmul %122, %124, %cst_43 {dimension_numbers = #tpu.dot_dimension_numbers<[1], [1], [0], [0], [0, 0, 1, 0], [], []>} : vector<8x8xbf16>, vector<8x8xbf16>, vector<8x8xf32> -> vector<8x8xf32>
    "tpu.trace_stop"() : () -> ()
    %128 = vector.broadcast %10 : vector<1x8xf32> to vector<8x8xf32>
    %129 = arith.addf %127, %128 : vector<8x8xf32>
    %cst_44 = arith.constant dense<0xFF800000> : vector<8xf32>
    %130 = vector.multi_reduction <maximumf>, %129, %cst_44 [1] : vector<8x8xf32> to vector<8xf32>
    %131 = vector.shape_cast %130 : vector<8xf32> to vector<8x1xf32>
    %132 = vector.broadcast %131 : vector<8x1xf32> to vector<8x8xf32>
    %133 = arith.subf %129, %132 : vector<8x8xf32>
    %134 = math.exp %133 : vector<8x8xf32>
    %cst_45 = arith.constant dense<0.000000e+00> : vector<8xf32>
    %135 = vector.multi_reduction <add>, %134, %cst_45 [1] : vector<8x8xf32> to vector<8xf32>
    %136 = vector.shape_cast %135 : vector<8xf32> to vector<8x1xf32>
    %137 = tpu.reciprocal %136 {approx = true} : vector<8x1xf32> -> vector<8x1xf32>
    %138 = vector.broadcast %137 : vector<8x1xf32> to vector<8x8xf32>
    %139 = arith.mulf %134, %138 : vector<8x8xf32>
    %140 = arith.truncf %139 : vector<8x8xf32> to vector<8x8xbf16>
    %cst_46 = arith.constant dense<0.000000e+00> : vector<8x8xf32>
    %141 = tpu.matmul %140, %126, %cst_46 {dimension_numbers = #tpu.dot_dimension_numbers<[1], [0], [0], [1], [0, 0, 1, 1], [], []>} : vector<8x8xbf16>, vector<8x8xbf16>, vector<8x8xf32> -> vector<8x8xf32>
    %142 = tpu.concatenate %78, %99, %120, %141 in 1 : vector<8x8xf32>, vector<8x8xf32>, vector<8x8xf32>, vector<8x8xf32> -> vector<8x32xf32>
    %143 = arith.truncf %142 : vector<8x32xf32> to vector<8x32xbf16>
    %c32 = arith.constant 32 : index
    %c0_47 = arith.constant 0 : index
    %144 = vector.load %arg6[%c32, %c0_47] : memref<608x128xbf16, #tpu.memory_space<vmem>>, vector<32x32xbf16>
    %cst_48 = arith.constant dense<0.000000e+00> : vector<8x32xf32>
    %145 = tpu.matmul %143, %144, %cst_48 {dimension_numbers = #tpu.dot_dimension_numbers<[1], [0], [0], [1], [0, 0, 1, 1], [], []>} : vector<8x32xbf16>, vector<32x32xbf16>, vector<8x32xf32> -> vector<8x32xf32>
    %146 = arith.addf %1, %145 : vector<8x32xf32>
    %147 = vector.broadcast %23 : vector<1x32xf32> to vector<8x32xf32>
    %148 = arith.addf %146, %147 : vector<8x32xf32>
    %c6 = arith.constant 6 : index
    %c0_49 = arith.constant 0 : index
    %149 = vector.load %arg5[%c6, %c0_49] : memref<32x128xf32, #tpu.memory_space<vmem>>, vector<1x48xf32>
    %c7 = arith.constant 7 : index
    %c0_50 = arith.constant 0 : index
    %150 = vector.load %arg5[%c7, %c0_50] : memref<32x128xf32, #tpu.memory_space<vmem>>, vector<1x48xf32>
    %c8 = arith.constant 8 : index
    %c0_51 = arith.constant 0 : index
    %151 = vector.load %arg5[%c8, %c0_51] : memref<32x128xf32, #tpu.memory_space<vmem>>, vector<1x32xf32>
    %c9 = arith.constant 9 : index
    %c0_52 = arith.constant 0 : index
    %152 = vector.load %arg5[%c9, %c0_52] : memref<32x128xf32, #tpu.memory_space<vmem>>, vector<1x32xf32>
    %c10 = arith.constant 10 : index
    %c0_53 = arith.constant 0 : index
    %153 = vector.load %arg5[%c10, %c0_53] : memref<32x128xf32, #tpu.memory_space<vmem>>, vector<1x32xf32>
    %c11 = arith.constant 11 : index
    %c0_54 = arith.constant 0 : index
    %154 = vector.load %arg5[%c11, %c0_54] : memref<32x128xf32, #tpu.memory_space<vmem>>, vector<1x48xf32>
    %cst_55 = arith.constant dense<0.000000e+00> : vector<16xf32>
    %155 = vector.multi_reduction <add>, %3, %cst_55 [1] : vector<16x48xf32> to vector<16xf32>
    %156 = vector.shape_cast %155 : vector<16xf32> to vector<16x1xf32>
    %cst_56 = arith.constant 4.800000e+01 : f32
    %157 = vector.broadcast %cst_56 : f32 to vector<16x1xf32>
    %158 = arith.divf %156, %157 : vector<16x1xf32>
    %159 = vector.broadcast %158 : vector<16x1xf32> to vector<16x48xf32>
    %160 = arith.subf %3, %159 : vector<16x48xf32>
    %161 = arith.mulf %160, %160 : vector<16x48xf32>
    %cst_57 = arith.constant dense<0.000000e+00> : vector<16xf32>
    %162 = vector.multi_reduction <add>, %161, %cst_57 [1] : vector<16x48xf32> to vector<16xf32>
    %163 = vector.shape_cast %162 : vector<16xf32> to vector<16x1xf32>
    %cst_58 = arith.constant 4.800000e+01 : f32
    %164 = vector.broadcast %cst_58 : f32 to vector<16x1xf32>
    %165 = arith.divf %163, %164 : vector<16x1xf32>
    %166 = vector.broadcast %158 : vector<16x1xf32> to vector<16x48xf32>
    %167 = arith.subf %3, %166 : vector<16x48xf32>
    %cst_59 = arith.constant 9.99999974E-6 : f32
    %168 = vector.broadcast %cst_59 : f32 to vector<16x1xf32>
    %169 = arith.addf %165, %168 : vector<16x1xf32>
    %170 = math.rsqrt %169 : vector<16x1xf32>
    %171 = vector.broadcast %170 : vector<16x1xf32> to vector<16x48xf32>
    %172 = arith.mulf %167, %171 : vector<16x48xf32>
    %173 = vector.broadcast %149 : vector<1x48xf32> to vector<16x48xf32>
    %174 = arith.mulf %172, %173 : vector<16x48xf32>
    %175 = vector.broadcast %150 : vector<1x48xf32> to vector<16x48xf32>
    %176 = arith.addf %174, %175 : vector<16x48xf32>
    %177 = arith.truncf %176 : vector<16x48xf32> to vector<16x48xbf16>
    %c64 = arith.constant 64 : index
    %c0_60 = arith.constant 0 : index
    %178 = vector.load %arg6[%c64, %c0_60] : memref<608x128xbf16, #tpu.memory_space<vmem>>, vector<48x96xbf16>
    %cst_61 = arith.constant dense<0.000000e+00> : vector<16x96xf32>
    %179 = tpu.matmul %177, %178, %cst_61 {dimension_numbers = #tpu.dot_dimension_numbers<[1], [0], [0], [1], [0, 0, 1, 1], [], []>} : vector<16x48xbf16>, vector<48x96xbf16>, vector<16x96xf32> -> vector<16x96xf32>
    %180 = vector.extract_strided_slice %179 {offsets = [0, 0], sizes = [16, 32], strides = [1, 1]} : vector<16x96xf32> to vector<16x32xf32>
    %181 = vector.broadcast %151 : vector<1x32xf32> to vector<16x32xf32>
    %182 = arith.addf %180, %181 : vector<16x32xf32>
    %183 = vector.extract_strided_slice %179 {offsets = [0, 32], sizes = [16, 32], strides = [1, 1]} : vector<16x96xf32> to vector<16x32xf32>
    %184 = vector.broadcast %152 : vector<1x32xf32> to vector<16x32xf32>
    %185 = arith.addf %183, %184 : vector<16x32xf32>
    %186 = vector.extract_strided_slice %179 {offsets = [0, 64], sizes = [16, 32], strides = [1, 1]} : vector<16x96xf32> to vector<16x32xf32>
    %187 = vector.broadcast %153 : vector<1x32xf32> to vector<16x32xf32>
    %188 = arith.addf %186, %187 : vector<16x32xf32>
    %189 = vector.extract_strided_slice %182 {offsets = [0, 0], sizes = [16, 8], strides = [1, 1]} : vector<16x32xf32> to vector<16x8xf32>
    %190 = arith.truncf %189 : vector<16x8xf32> to vector<16x8xbf16>
    %191 = vector.extract_strided_slice %185 {offsets = [0, 0], sizes = [16, 8], strides = [1, 1]} : vector<16x32xf32> to vector<16x8xf32>
    %192 = arith.truncf %191 : vector<16x8xf32> to vector<16x8xbf16>
    %193 = vector.extract_strided_slice %188 {offsets = [0, 0], sizes = [16, 8], strides = [1, 1]} : vector<16x32xf32> to vector<16x8xf32>
    %194 = arith.truncf %193 : vector<16x8xf32> to vector<16x8xbf16>
    "tpu.trace_start"() <{level = 10 : i32, message = "qd,kd->qk"}> : () -> ()
    %cst_62 = arith.constant dense<0.000000e+00> : vector<16x16xf32>
    %195 = tpu.matmul %190, %192, %cst_62 {dimension_numbers = #tpu.dot_dimension_numbers<[1], [1], [0], [0], [0, 0, 1, 0], [], []>} : vector<16x8xbf16>, vector<16x8xbf16>, vector<16x16xf32> -> vector<16x16xf32>
    "tpu.trace_stop"() : () -> ()
    %196 = vector.broadcast %17 : vector<1x16xf32> to vector<16x16xf32>
    %197 = arith.addf %195, %196 : vector<16x16xf32>
    %cst_63 = arith.constant dense<0xFF800000> : vector<16xf32>
    %198 = vector.multi_reduction <maximumf>, %197, %cst_63 [1] : vector<16x16xf32> to vector<16xf32>
    %199 = vector.shape_cast %198 : vector<16xf32> to vector<16x1xf32>
    %200 = vector.broadcast %199 : vector<16x1xf32> to vector<16x16xf32>
    %201 = arith.subf %197, %200 : vector<16x16xf32>
    %202 = math.exp %201 : vector<16x16xf32>
    %cst_64 = arith.constant dense<0.000000e+00> : vector<16xf32>
    %203 = vector.multi_reduction <add>, %202, %cst_64 [1] : vector<16x16xf32> to vector<16xf32>
    %204 = vector.shape_cast %203 : vector<16xf32> to vector<16x1xf32>
    %205 = tpu.reciprocal %204 {approx = true} : vector<16x1xf32> -> vector<16x1xf32>
    %206 = vector.broadcast %205 : vector<16x1xf32> to vector<16x16xf32>
    %207 = arith.mulf %202, %206 : vector<16x16xf32>
    %208 = arith.truncf %207 : vector<16x16xf32> to vector<16x16xbf16>
    %cst_65 = arith.constant dense<0.000000e+00> : vector<16x8xf32>
    %209 = tpu.matmul %208, %194, %cst_65 {dimension_numbers = #tpu.dot_dimension_numbers<[1], [0], [0], [1], [0, 0, 1, 1], [], []>} : vector<16x16xbf16>, vector<16x8xbf16>, vector<16x8xf32> -> vector<16x8xf32>
    %210 = vector.extract_strided_slice %182 {offsets = [0, 8], sizes = [16, 8], strides = [1, 1]} : vector<16x32xf32> to vector<16x8xf32>
    %211 = arith.truncf %210 : vector<16x8xf32> to vector<16x8xbf16>
    %212 = vector.extract_strided_slice %185 {offsets = [0, 8], sizes = [16, 8], strides = [1, 1]} : vector<16x32xf32> to vector<16x8xf32>
    %213 = arith.truncf %212 : vector<16x8xf32> to vector<16x8xbf16>
    %214 = vector.extract_strided_slice %188 {offsets = [0, 8], sizes = [16, 8], strides = [1, 1]} : vector<16x32xf32> to vector<16x8xf32>
    %215 = arith.truncf %214 : vector<16x8xf32> to vector<16x8xbf16>
    "tpu.trace_start"() <{level = 10 : i32, message = "qd,kd->qk"}> : () -> ()
    %cst_66 = arith.constant dense<0.000000e+00> : vector<16x16xf32>
    %216 = tpu.matmul %211, %213, %cst_66 {dimension_numbers = #tpu.dot_dimension_numbers<[1], [1], [0], [0], [0, 0, 1, 0], [], []>} : vector<16x8xbf16>, vector<16x8xbf16>, vector<16x16xf32> -> vector<16x16xf32>
    "tpu.trace_stop"() : () -> ()
    %217 = vector.broadcast %17 : vector<1x16xf32> to vector<16x16xf32>
    %218 = arith.addf %216, %217 : vector<16x16xf32>
    %cst_67 = arith.constant dense<0xFF800000> : vector<16xf32>
    %219 = vector.multi_reduction <maximumf>, %218, %cst_67 [1] : vector<16x16xf32> to vector<16xf32>
    %220 = vector.shape_cast %219 : vector<16xf32> to vector<16x1xf32>
    %221 = vector.broadcast %220 : vector<16x1xf32> to vector<16x16xf32>
    %222 = arith.subf %218, %221 : vector<16x16xf32>
    %223 = math.exp %222 : vector<16x16xf32>
    %cst_68 = arith.constant dense<0.000000e+00> : vector<16xf32>
    %224 = vector.multi_reduction <add>, %223, %cst_68 [1] : vector<16x16xf32> to vector<16xf32>
    %225 = vector.shape_cast %224 : vector<16xf32> to vector<16x1xf32>
    %226 = tpu.reciprocal %225 {approx = true} : vector<16x1xf32> -> vector<16x1xf32>
    %227 = vector.broadcast %226 : vector<16x1xf32> to vector<16x16xf32>
    %228 = arith.mulf %223, %227 : vector<16x16xf32>
    %229 = arith.truncf %228 : vector<16x16xf32> to vector<16x16xbf16>
    %cst_69 = arith.constant dense<0.000000e+00> : vector<16x8xf32>
    %230 = tpu.matmul %229, %215, %cst_69 {dimension_numbers = #tpu.dot_dimension_numbers<[1], [0], [0], [1], [0, 0, 1, 1], [], []>} : vector<16x16xbf16>, vector<16x8xbf16>, vector<16x8xf32> -> vector<16x8xf32>
    %231 = vector.extract_strided_slice %182 {offsets = [0, 16], sizes = [16, 8], strides = [1, 1]} : vector<16x32xf32> to vector<16x8xf32>
    %232 = arith.truncf %231 : vector<16x8xf32> to vector<16x8xbf16>
    %233 = vector.extract_strided_slice %185 {offsets = [0, 16], sizes = [16, 8], strides = [1, 1]} : vector<16x32xf32> to vector<16x8xf32>
    %234 = arith.truncf %233 : vector<16x8xf32> to vector<16x8xbf16>
    %235 = vector.extract_strided_slice %188 {offsets = [0, 16], sizes = [16, 8], strides = [1, 1]} : vector<16x32xf32> to vector<16x8xf32>
    %236 = arith.truncf %235 : vector<16x8xf32> to vector<16x8xbf16>
    "tpu.trace_start"() <{level = 10 : i32, message = "qd,kd->qk"}> : () -> ()
    %cst_70 = arith.constant dense<0.000000e+00> : vector<16x16xf32>
    %237 = tpu.matmul %232, %234, %cst_70 {dimension_numbers = #tpu.dot_dimension_numbers<[1], [1], [0], [0], [0, 0, 1, 0], [], []>} : vector<16x8xbf16>, vector<16x8xbf16>, vector<16x16xf32> -> vector<16x16xf32>
    "tpu.trace_stop"() : () -> ()
    %238 = vector.broadcast %17 : vector<1x16xf32> to vector<16x16xf32>
    %239 = arith.addf %237, %238 : vector<16x16xf32>
    %cst_71 = arith.constant dense<0xFF800000> : vector<16xf32>
    %240 = vector.multi_reduction <maximumf>, %239, %cst_71 [1] : vector<16x16xf32> to vector<16xf32>
    %241 = vector.shape_cast %240 : vector<16xf32> to vector<16x1xf32>
    %242 = vector.broadcast %241 : vector<16x1xf32> to vector<16x16xf32>
    %243 = arith.subf %239, %242 : vector<16x16xf32>
    %244 = math.exp %243 : vector<16x16xf32>
    %cst_72 = arith.constant dense<0.000000e+00> : vector<16xf32>
    %245 = vector.multi_reduction <add>, %244, %cst_72 [1] : vector<16x16xf32> to vector<16xf32>
    %246 = vector.shape_cast %245 : vector<16xf32> to vector<16x1xf32>
    %247 = tpu.reciprocal %246 {approx = true} : vector<16x1xf32> -> vector<16x1xf32>
    %248 = vector.broadcast %247 : vector<16x1xf32> to vector<16x16xf32>
    %249 = arith.mulf %244, %248 : vector<16x16xf32>
    %250 = arith.truncf %249 : vector<16x16xf32> to vector<16x16xbf16>
    %cst_73 = arith.constant dense<0.000000e+00> : vector<16x8xf32>
    %251 = tpu.matmul %250, %236, %cst_73 {dimension_numbers = #tpu.dot_dimension_numbers<[1], [0], [0], [1], [0, 0, 1, 1], [], []>} : vector<16x16xbf16>, vector<16x8xbf16>, vector<16x8xf32> -> vector<16x8xf32>
    %252 = vector.extract_strided_slice %182 {offsets = [0, 24], sizes = [16, 8], strides = [1, 1]} : vector<16x32xf32> to vector<16x8xf32>
    %253 = arith.truncf %252 : vector<16x8xf32> to vector<16x8xbf16>
    %254 = vector.extract_strided_slice %185 {offsets = [0, 24], sizes = [16, 8], strides = [1, 1]} : vector<16x32xf32> to vector<16x8xf32>
    %255 = arith.truncf %254 : vector<16x8xf32> to vector<16x8xbf16>
    %256 = vector.extract_strided_slice %188 {offsets = [0, 24], sizes = [16, 8], strides = [1, 1]} : vector<16x32xf32> to vector<16x8xf32>
    %257 = arith.truncf %256 : vector<16x8xf32> to vector<16x8xbf16>
    "tpu.trace_start"() <{level = 10 : i32, message = "qd,kd->qk"}> : () -> ()
    %cst_74 = arith.constant dense<0.000000e+00> : vector<16x16xf32>
    %258 = tpu.matmul %253, %255, %cst_74 {dimension_numbers = #tpu.dot_dimension_numbers<[1], [1], [0], [0], [0, 0, 1, 0], [], []>} : vector<16x8xbf16>, vector<16x8xbf16>, vector<16x16xf32> -> vector<16x16xf32>
    "tpu.trace_stop"() : () -> ()
    %259 = vector.broadcast %17 : vector<1x16xf32> to vector<16x16xf32>
    %260 = arith.addf %258, %259 : vector<16x16xf32>
    %cst_75 = arith.constant dense<0xFF800000> : vector<16xf32>
    %261 = vector.multi_reduction <maximumf>, %260, %cst_75 [1] : vector<16x16xf32> to vector<16xf32>
    %262 = vector.shape_cast %261 : vector<16xf32> to vector<16x1xf32>
    %263 = vector.broadcast %262 : vector<16x1xf32> to vector<16x16xf32>
    %264 = arith.subf %260, %263 : vector<16x16xf32>
    %265 = math.exp %264 : vector<16x16xf32>
    %cst_76 = arith.constant dense<0.000000e+00> : vector<16xf32>
    %266 = vector.multi_reduction <add>, %265, %cst_76 [1] : vector<16x16xf32> to vector<16xf32>
    %267 = vector.shape_cast %266 : vector<16xf32> to vector<16x1xf32>
    %268 = tpu.reciprocal %267 {approx = true} : vector<16x1xf32> -> vector<16x1xf32>
    %269 = vector.broadcast %268 : vector<16x1xf32> to vector<16x16xf32>
    %270 = arith.mulf %265, %269 : vector<16x16xf32>
    %271 = arith.truncf %270 : vector<16x16xf32> to vector<16x16xbf16>
    %cst_77 = arith.constant dense<0.000000e+00> : vector<16x8xf32>
    %272 = tpu.matmul %271, %257, %cst_77 {dimension_numbers = #tpu.dot_dimension_numbers<[1], [0], [0], [1], [0, 0, 1, 1], [], []>} : vector<16x16xbf16>, vector<16x8xbf16>, vector<16x8xf32> -> vector<16x8xf32>
    %273 = tpu.concatenate %209, %230, %251, %272 in 1 : vector<16x8xf32>, vector<16x8xf32>, vector<16x8xf32>, vector<16x8xf32> -> vector<16x32xf32>
    %274 = arith.truncf %273 : vector<16x32xf32> to vector<16x32xbf16>
    %c112 = arith.constant 112 : index
    %c0_78 = arith.constant 0 : index
    %275 = vector.load %arg6[%c112, %c0_78] : memref<608x128xbf16, #tpu.memory_space<vmem>>, vector<32x48xbf16>
    %cst_79 = arith.constant dense<0.000000e+00> : vector<16x48xf32>
    %276 = tpu.matmul %274, %275, %cst_79 {dimension_numbers = #tpu.dot_dimension_numbers<[1], [0], [0], [1], [0, 0, 1, 1], [], []>} : vector<16x32xbf16>, vector<32x48xbf16>, vector<16x48xf32> -> vector<16x48xf32>
    %277 = arith.addf %3, %276 : vector<16x48xf32>
    %278 = vector.broadcast %154 : vector<1x48xf32> to vector<16x48xf32>
    %279 = arith.addf %277, %278 : vector<16x48xf32>
    %c12 = arith.constant 12 : index
    %c0_80 = arith.constant 0 : index
    %280 = vector.load %arg5[%c12, %c0_80] : memref<32x128xf32, #tpu.memory_space<vmem>>, vector<1x32xf32>
    %c13 = arith.constant 13 : index
    %c0_81 = arith.constant 0 : index
    %281 = vector.load %arg5[%c13, %c0_81] : memref<32x128xf32, #tpu.memory_space<vmem>>, vector<1x32xf32>
    %c14 = arith.constant 14 : index
    %c0_82 = arith.constant 0 : index
    %282 = vector.load %arg5[%c14, %c0_82] : memref<32x128xf32, #tpu.memory_space<vmem>>, vector<1x32xf32>
    %c15 = arith.constant 15 : index
    %c0_83 = arith.constant 0 : index
    %283 = vector.load %arg5[%c15, %c0_83] : memref<32x128xf32, #tpu.memory_space<vmem>>, vector<1x32xf32>
    %c16 = arith.constant 16 : index
    %c0_84 = arith.constant 0 : index
    %284 = vector.load %arg5[%c16, %c0_84] : memref<32x128xf32, #tpu.memory_space<vmem>>, vector<1x32xf32>
    %c17 = arith.constant 17 : index
    %c0_85 = arith.constant 0 : index
    %285 = vector.load %arg5[%c17, %c0_85] : memref<32x128xf32, #tpu.memory_space<vmem>>, vector<1x32xf32>
    %cst_86 = arith.constant dense<0.000000e+00> : vector<8xf32>
    %286 = vector.multi_reduction <add>, %148, %cst_86 [1] : vector<8x32xf32> to vector<8xf32>
    %287 = vector.shape_cast %286 : vector<8xf32> to vector<8x1xf32>
    %cst_87 = arith.constant 3.200000e+01 : f32
    %288 = vector.broadcast %cst_87 : f32 to vector<8x1xf32>
    %289 = arith.divf %287, %288 : vector<8x1xf32>
    %290 = vector.broadcast %289 : vector<8x1xf32> to vector<8x32xf32>
    %291 = arith.subf %148, %290 : vector<8x32xf32>
    %292 = arith.mulf %291, %291 : vector<8x32xf32>
    %cst_88 = arith.constant dense<0.000000e+00> : vector<8xf32>
    %293 = vector.multi_reduction <add>, %292, %cst_88 [1] : vector<8x32xf32> to vector<8xf32>
    %294 = vector.shape_cast %293 : vector<8xf32> to vector<8x1xf32>
    %cst_89 = arith.constant 3.200000e+01 : f32
    %295 = vector.broadcast %cst_89 : f32 to vector<8x1xf32>
    %296 = arith.divf %294, %295 : vector<8x1xf32>
    %297 = vector.broadcast %289 : vector<8x1xf32> to vector<8x32xf32>
    %298 = arith.subf %148, %297 : vector<8x32xf32>
    %cst_90 = arith.constant 9.99999974E-6 : f32
    %299 = vector.broadcast %cst_90 : f32 to vector<8x1xf32>
    %300 = arith.addf %296, %299 : vector<8x1xf32>
    %301 = math.rsqrt %300 : vector<8x1xf32>
    %302 = vector.broadcast %301 : vector<8x1xf32> to vector<8x32xf32>
    %303 = arith.mulf %298, %302 : vector<8x32xf32>
    %304 = vector.broadcast %280 : vector<1x32xf32> to vector<8x32xf32>
    %305 = arith.mulf %303, %304 : vector<8x32xf32>
    %306 = vector.broadcast %281 : vector<1x32xf32> to vector<8x32xf32>
    %307 = arith.addf %305, %306 : vector<8x32xf32>
    %308 = arith.truncf %307 : vector<8x32xf32> to vector<8x32xbf16>
    %c144 = arith.constant 144 : index
    %c0_91 = arith.constant 0 : index
    %309 = vector.load %arg6[%c144, %c0_91] : memref<608x128xbf16, #tpu.memory_space<vmem>>, vector<32x32xbf16>
    %cst_92 = arith.constant dense<0.000000e+00> : vector<8x32xf32>
    %310 = tpu.matmul %308, %309, %cst_92 {dimension_numbers = #tpu.dot_dimension_numbers<[1], [0], [0], [1], [0, 0, 1, 1], [], []>} : vector<8x32xbf16>, vector<32x32xbf16>, vector<8x32xf32> -> vector<8x32xf32>
    %311 = vector.broadcast %282 : vector<1x32xf32> to vector<8x32xf32>
    %312 = arith.addf %310, %311 : vector<8x32xf32>
    %313 = arith.truncf %279 : vector<16x48xf32> to vector<16x48xbf16>
    %c176 = arith.constant 176 : index
    %c0_93 = arith.constant 0 : index
    %314 = vector.load %arg6[%c176, %c0_93] : memref<608x128xbf16, #tpu.memory_space<vmem>>, vector<48x64xbf16>
    %cst_94 = arith.constant dense<0.000000e+00> : vector<16x64xf32>
    %315 = tpu.matmul %313, %314, %cst_94 {dimension_numbers = #tpu.dot_dimension_numbers<[1], [0], [0], [1], [0, 0, 1, 1], [], []>} : vector<16x48xbf16>, vector<48x64xbf16>, vector<16x64xf32> -> vector<16x64xf32>
    %316 = vector.extract_strided_slice %315 {offsets = [0, 0], sizes = [16, 32], strides = [1, 1]} : vector<16x64xf32> to vector<16x32xf32>
    %317 = vector.broadcast %283 : vector<1x32xf32> to vector<16x32xf32>
    %318 = arith.addf %316, %317 : vector<16x32xf32>
    %319 = vector.extract_strided_slice %315 {offsets = [0, 32], sizes = [16, 32], strides = [1, 1]} : vector<16x64xf32> to vector<16x32xf32>
    %320 = vector.broadcast %284 : vector<1x32xf32> to vector<16x32xf32>
    %321 = arith.addf %319, %320 : vector<16x32xf32>
    %322 = vector.extract_strided_slice %312 {offsets = [0, 0], sizes = [8, 8], strides = [1, 1]} : vector<8x32xf32> to vector<8x8xf32>
    %323 = arith.truncf %322 : vector<8x8xf32> to vector<8x8xbf16>
    %324 = vector.extract_strided_slice %318 {offsets = [0, 0], sizes = [16, 8], strides = [1, 1]} : vector<16x32xf32> to vector<16x8xf32>
    %325 = arith.truncf %324 : vector<16x8xf32> to vector<16x8xbf16>
    %326 = vector.extract_strided_slice %321 {offsets = [0, 0], sizes = [16, 8], strides = [1, 1]} : vector<16x32xf32> to vector<16x8xf32>
    %327 = arith.truncf %326 : vector<16x8xf32> to vector<16x8xbf16>
    "tpu.trace_start"() <{level = 10 : i32, message = "qd,kd->qk"}> : () -> ()
    %cst_95 = arith.constant dense<0.000000e+00> : vector<8x16xf32>
    %328 = tpu.matmul %323, %325, %cst_95 {dimension_numbers = #tpu.dot_dimension_numbers<[1], [1], [0], [0], [0, 0, 1, 0], [], []>} : vector<8x8xbf16>, vector<16x8xbf16>, vector<8x16xf32> -> vector<8x16xf32>
    "tpu.trace_stop"() : () -> ()
    %329 = vector.broadcast %17 : vector<1x16xf32> to vector<8x16xf32>
    %330 = arith.addf %328, %329 : vector<8x16xf32>
    %cst_96 = arith.constant dense<0xFF800000> : vector<8xf32>
    %331 = vector.multi_reduction <maximumf>, %330, %cst_96 [1] : vector<8x16xf32> to vector<8xf32>
    %332 = vector.shape_cast %331 : vector<8xf32> to vector<8x1xf32>
    %333 = vector.broadcast %332 : vector<8x1xf32> to vector<8x16xf32>
    %334 = arith.subf %330, %333 : vector<8x16xf32>
    %335 = math.exp %334 : vector<8x16xf32>
    %cst_97 = arith.constant dense<0.000000e+00> : vector<8xf32>
    %336 = vector.multi_reduction <add>, %335, %cst_97 [1] : vector<8x16xf32> to vector<8xf32>
    %337 = vector.shape_cast %336 : vector<8xf32> to vector<8x1xf32>
    %338 = tpu.reciprocal %337 {approx = true} : vector<8x1xf32> -> vector<8x1xf32>
    %339 = vector.broadcast %338 : vector<8x1xf32> to vector<8x16xf32>
    %340 = arith.mulf %335, %339 : vector<8x16xf32>
    %341 = arith.truncf %340 : vector<8x16xf32> to vector<8x16xbf16>
    %cst_98 = arith.constant dense<0.000000e+00> : vector<8x8xf32>
    %342 = tpu.matmul %341, %327, %cst_98 {dimension_numbers = #tpu.dot_dimension_numbers<[1], [0], [0], [1], [0, 0, 1, 1], [], []>} : vector<8x16xbf16>, vector<16x8xbf16>, vector<8x8xf32> -> vector<8x8xf32>
    %343 = vector.extract_strided_slice %312 {offsets = [0, 8], sizes = [8, 8], strides = [1, 1]} : vector<8x32xf32> to vector<8x8xf32>
    %344 = arith.truncf %343 : vector<8x8xf32> to vector<8x8xbf16>
    %345 = vector.extract_strided_slice %318 {offsets = [0, 8], sizes = [16, 8], strides = [1, 1]} : vector<16x32xf32> to vector<16x8xf32>
    %346 = arith.truncf %345 : vector<16x8xf32> to vector<16x8xbf16>
    %347 = vector.extract_strided_slice %321 {offsets = [0, 8], sizes = [16, 8], strides = [1, 1]} : vector<16x32xf32> to vector<16x8xf32>
    %348 = arith.truncf %347 : vector<16x8xf32> to vector<16x8xbf16>
    "tpu.trace_start"() <{level = 10 : i32, message = "qd,kd->qk"}> : () -> ()
    %cst_99 = arith.constant dense<0.000000e+00> : vector<8x16xf32>
    %349 = tpu.matmul %344, %346, %cst_99 {dimension_numbers = #tpu.dot_dimension_numbers<[1], [1], [0], [0], [0, 0, 1, 0], [], []>} : vector<8x8xbf16>, vector<16x8xbf16>, vector<8x16xf32> -> vector<8x16xf32>
    "tpu.trace_stop"() : () -> ()
    %350 = vector.broadcast %17 : vector<1x16xf32> to vector<8x16xf32>
    %351 = arith.addf %349, %350 : vector<8x16xf32>
    %cst_100 = arith.constant dense<0xFF800000> : vector<8xf32>
    %352 = vector.multi_reduction <maximumf>, %351, %cst_100 [1] : vector<8x16xf32> to vector<8xf32>
    %353 = vector.shape_cast %352 : vector<8xf32> to vector<8x1xf32>
    %354 = vector.broadcast %353 : vector<8x1xf32> to vector<8x16xf32>
    %355 = arith.subf %351, %354 : vector<8x16xf32>
    %356 = math.exp %355 : vector<8x16xf32>
    %cst_101 = arith.constant dense<0.000000e+00> : vector<8xf32>
    %357 = vector.multi_reduction <add>, %356, %cst_101 [1] : vector<8x16xf32> to vector<8xf32>
    %358 = vector.shape_cast %357 : vector<8xf32> to vector<8x1xf32>
    %359 = tpu.reciprocal %358 {approx = true} : vector<8x1xf32> -> vector<8x1xf32>
    %360 = vector.broadcast %359 : vector<8x1xf32> to vector<8x16xf32>
    %361 = arith.mulf %356, %360 : vector<8x16xf32>
    %362 = arith.truncf %361 : vector<8x16xf32> to vector<8x16xbf16>
    %cst_102 = arith.constant dense<0.000000e+00> : vector<8x8xf32>
    %363 = tpu.matmul %362, %348, %cst_102 {dimension_numbers = #tpu.dot_dimension_numbers<[1], [0], [0], [1], [0, 0, 1, 1], [], []>} : vector<8x16xbf16>, vector<16x8xbf16>, vector<8x8xf32> -> vector<8x8xf32>
    %364 = vector.extract_strided_slice %312 {offsets = [0, 16], sizes = [8, 8], strides = [1, 1]} : vector<8x32xf32> to vector<8x8xf32>
    %365 = arith.truncf %364 : vector<8x8xf32> to vector<8x8xbf16>
    %366 = vector.extract_strided_slice %318 {offsets = [0, 16], sizes = [16, 8], strides = [1, 1]} : vector<16x32xf32> to vector<16x8xf32>
    %367 = arith.truncf %366 : vector<16x8xf32> to vector<16x8xbf16>
    %368 = vector.extract_strided_slice %321 {offsets = [0, 16], sizes = [16, 8], strides = [1, 1]} : vector<16x32xf32> to vector<16x8xf32>
    %369 = arith.truncf %368 : vector<16x8xf32> to vector<16x8xbf16>
    "tpu.trace_start"() <{level = 10 : i32, message = "qd,kd->qk"}> : () -> ()
    %cst_103 = arith.constant dense<0.000000e+00> : vector<8x16xf32>
    %370 = tpu.matmul %365, %367, %cst_103 {dimension_numbers = #tpu.dot_dimension_numbers<[1], [1], [0], [0], [0, 0, 1, 0], [], []>} : vector<8x8xbf16>, vector<16x8xbf16>, vector<8x16xf32> -> vector<8x16xf32>
    "tpu.trace_stop"() : () -> ()
    %371 = vector.broadcast %17 : vector<1x16xf32> to vector<8x16xf32>
    %372 = arith.addf %370, %371 : vector<8x16xf32>
    %cst_104 = arith.constant dense<0xFF800000> : vector<8xf32>
    %373 = vector.multi_reduction <maximumf>, %372, %cst_104 [1] : vector<8x16xf32> to vector<8xf32>
    %374 = vector.shape_cast %373 : vector<8xf32> to vector<8x1xf32>
    %375 = vector.broadcast %374 : vector<8x1xf32> to vector<8x16xf32>
    %376 = arith.subf %372, %375 : vector<8x16xf32>
    %377 = math.exp %376 : vector<8x16xf32>
    %cst_105 = arith.constant dense<0.000000e+00> : vector<8xf32>
    %378 = vector.multi_reduction <add>, %377, %cst_105 [1] : vector<8x16xf32> to vector<8xf32>
    %379 = vector.shape_cast %378 : vector<8xf32> to vector<8x1xf32>
    %380 = tpu.reciprocal %379 {approx = true} : vector<8x1xf32> -> vector<8x1xf32>
    %381 = vector.broadcast %380 : vector<8x1xf32> to vector<8x16xf32>
    %382 = arith.mulf %377, %381 : vector<8x16xf32>
    %383 = arith.truncf %382 : vector<8x16xf32> to vector<8x16xbf16>
    %cst_106 = arith.constant dense<0.000000e+00> : vector<8x8xf32>
    %384 = tpu.matmul %383, %369, %cst_106 {dimension_numbers = #tpu.dot_dimension_numbers<[1], [0], [0], [1], [0, 0, 1, 1], [], []>} : vector<8x16xbf16>, vector<16x8xbf16>, vector<8x8xf32> -> vector<8x8xf32>
    %385 = vector.extract_strided_slice %312 {offsets = [0, 24], sizes = [8, 8], strides = [1, 1]} : vector<8x32xf32> to vector<8x8xf32>
    %386 = arith.truncf %385 : vector<8x8xf32> to vector<8x8xbf16>
    %387 = vector.extract_strided_slice %318 {offsets = [0, 24], sizes = [16, 8], strides = [1, 1]} : vector<16x32xf32> to vector<16x8xf32>
    %388 = arith.truncf %387 : vector<16x8xf32> to vector<16x8xbf16>
    %389 = vector.extract_strided_slice %321 {offsets = [0, 24], sizes = [16, 8], strides = [1, 1]} : vector<16x32xf32> to vector<16x8xf32>
    %390 = arith.truncf %389 : vector<16x8xf32> to vector<16x8xbf16>
    "tpu.trace_start"() <{level = 10 : i32, message = "qd,kd->qk"}> : () -> ()
    %cst_107 = arith.constant dense<0.000000e+00> : vector<8x16xf32>
    %391 = tpu.matmul %386, %388, %cst_107 {dimension_numbers = #tpu.dot_dimension_numbers<[1], [1], [0], [0], [0, 0, 1, 0], [], []>} : vector<8x8xbf16>, vector<16x8xbf16>, vector<8x16xf32> -> vector<8x16xf32>
    "tpu.trace_stop"() : () -> ()
    %392 = vector.broadcast %17 : vector<1x16xf32> to vector<8x16xf32>
    %393 = arith.addf %391, %392 : vector<8x16xf32>
    %cst_108 = arith.constant dense<0xFF800000> : vector<8xf32>
    %394 = vector.multi_reduction <maximumf>, %393, %cst_108 [1] : vector<8x16xf32> to vector<8xf32>
    %395 = vector.shape_cast %394 : vector<8xf32> to vector<8x1xf32>
    %396 = vector.broadcast %395 : vector<8x1xf32> to vector<8x16xf32>
    %397 = arith.subf %393, %396 : vector<8x16xf32>
    %398 = math.exp %397 : vector<8x16xf32>
    %cst_109 = arith.constant dense<0.000000e+00> : vector<8xf32>
    %399 = vector.multi_reduction <add>, %398, %cst_109 [1] : vector<8x16xf32> to vector<8xf32>
    %400 = vector.shape_cast %399 : vector<8xf32> to vector<8x1xf32>
    %401 = tpu.reciprocal %400 {approx = true} : vector<8x1xf32> -> vector<8x1xf32>
    %402 = vector.broadcast %401 : vector<8x1xf32> to vector<8x16xf32>
    %403 = arith.mulf %398, %402 : vector<8x16xf32>
    %404 = arith.truncf %403 : vector<8x16xf32> to vector<8x16xbf16>
    %cst_110 = arith.constant dense<0.000000e+00> : vector<8x8xf32>
    %405 = tpu.matmul %404, %390, %cst_110 {dimension_numbers = #tpu.dot_dimension_numbers<[1], [0], [0], [1], [0, 0, 1, 1], [], []>} : vector<8x16xbf16>, vector<16x8xbf16>, vector<8x8xf32> -> vector<8x8xf32>
    %406 = tpu.concatenate %342, %363, %384, %405 in 1 : vector<8x8xf32>, vector<8x8xf32>, vector<8x8xf32>, vector<8x8xf32> -> vector<8x32xf32>
    %407 = arith.truncf %406 : vector<8x32xf32> to vector<8x32xbf16>
    %c224 = arith.constant 224 : index
    %c0_111 = arith.constant 0 : index
    %408 = vector.load %arg6[%c224, %c0_111] : memref<608x128xbf16, #tpu.memory_space<vmem>>, vector<32x32xbf16>
    %cst_112 = arith.constant dense<0.000000e+00> : vector<8x32xf32>
    %409 = tpu.matmul %407, %408, %cst_112 {dimension_numbers = #tpu.dot_dimension_numbers<[1], [0], [0], [1], [0, 0, 1, 1], [], []>} : vector<8x32xbf16>, vector<32x32xbf16>, vector<8x32xf32> -> vector<8x32xf32>
    %410 = arith.addf %148, %409 : vector<8x32xf32>
    %411 = vector.broadcast %285 : vector<1x32xf32> to vector<8x32xf32>
    %412 = arith.addf %410, %411 : vector<8x32xf32>
    %c18 = arith.constant 18 : index
    %c0_113 = arith.constant 0 : index
    %413 = vector.load %arg5[%c18, %c0_113] : memref<32x128xf32, #tpu.memory_space<vmem>>, vector<1x48xf32>
    %c19 = arith.constant 19 : index
    %c0_114 = arith.constant 0 : index
    %414 = vector.load %arg5[%c19, %c0_114] : memref<32x128xf32, #tpu.memory_space<vmem>>, vector<1x48xf32>
    %c20 = arith.constant 20 : index
    %c0_115 = arith.constant 0 : index
    %415 = vector.load %arg5[%c20, %c0_115] : memref<32x128xf32, #tpu.memory_space<vmem>>, vector<1x32xf32>
    %c21 = arith.constant 21 : index
    %c0_116 = arith.constant 0 : index
    %416 = vector.load %arg5[%c21, %c0_116] : memref<32x128xf32, #tpu.memory_space<vmem>>, vector<1x32xf32>
    %c22 = arith.constant 22 : index
    %c0_117 = arith.constant 0 : index
    %417 = vector.load %arg5[%c22, %c0_117] : memref<32x128xf32, #tpu.memory_space<vmem>>, vector<1x32xf32>
    %c23 = arith.constant 23 : index
    %c0_118 = arith.constant 0 : index
    %418 = vector.load %arg5[%c23, %c0_118] : memref<32x128xf32, #tpu.memory_space<vmem>>, vector<1x48xf32>
    %cst_119 = arith.constant dense<0.000000e+00> : vector<16xf32>
    %419 = vector.multi_reduction <add>, %279, %cst_119 [1] : vector<16x48xf32> to vector<16xf32>
    %420 = vector.shape_cast %419 : vector<16xf32> to vector<16x1xf32>
    %cst_120 = arith.constant 4.800000e+01 : f32
    %421 = vector.broadcast %cst_120 : f32 to vector<16x1xf32>
    %422 = arith.divf %420, %421 : vector<16x1xf32>
    %423 = vector.broadcast %422 : vector<16x1xf32> to vector<16x48xf32>
    %424 = arith.subf %279, %423 : vector<16x48xf32>
    %425 = arith.mulf %424, %424 : vector<16x48xf32>
    %cst_121 = arith.constant dense<0.000000e+00> : vector<16xf32>
    %426 = vector.multi_reduction <add>, %425, %cst_121 [1] : vector<16x48xf32> to vector<16xf32>
    %427 = vector.shape_cast %426 : vector<16xf32> to vector<16x1xf32>
    %cst_122 = arith.constant 4.800000e+01 : f32
    %428 = vector.broadcast %cst_122 : f32 to vector<16x1xf32>
    %429 = arith.divf %427, %428 : vector<16x1xf32>
    %430 = vector.broadcast %422 : vector<16x1xf32> to vector<16x48xf32>
    %431 = arith.subf %279, %430 : vector<16x48xf32>
    %cst_123 = arith.constant 9.99999974E-6 : f32
    %432 = vector.broadcast %cst_123 : f32 to vector<16x1xf32>
    %433 = arith.addf %429, %432 : vector<16x1xf32>
    %434 = math.rsqrt %433 : vector<16x1xf32>
    %435 = vector.broadcast %434 : vector<16x1xf32> to vector<16x48xf32>
    %436 = arith.mulf %431, %435 : vector<16x48xf32>
    %437 = vector.broadcast %413 : vector<1x48xf32> to vector<16x48xf32>
    %438 = arith.mulf %436, %437 : vector<16x48xf32>
    %439 = vector.broadcast %414 : vector<1x48xf32> to vector<16x48xf32>
    %440 = arith.addf %438, %439 : vector<16x48xf32>
    %441 = arith.truncf %440 : vector<16x48xf32> to vector<16x48xbf16>
    %c256 = arith.constant 256 : index
    %c0_124 = arith.constant 0 : index
    %442 = vector.load %arg6[%c256, %c0_124] : memref<608x128xbf16, #tpu.memory_space<vmem>>, vector<48x32xbf16>
    %cst_125 = arith.constant dense<0.000000e+00> : vector<16x32xf32>
    %443 = tpu.matmul %441, %442, %cst_125 {dimension_numbers = #tpu.dot_dimension_numbers<[1], [0], [0], [1], [0, 0, 1, 1], [], []>} : vector<16x48xbf16>, vector<48x32xbf16>, vector<16x32xf32> -> vector<16x32xf32>
    %444 = vector.broadcast %415 : vector<1x32xf32> to vector<16x32xf32>
    %445 = arith.addf %443, %444 : vector<16x32xf32>
    %446 = arith.truncf %148 : vector<8x32xf32> to vector<8x32xbf16>
    %c304 = arith.constant 304 : index
    %c0_126 = arith.constant 0 : index
    %447 = vector.load %arg6[%c304, %c0_126] : memref<608x128xbf16, #tpu.memory_space<vmem>>, vector<32x64xbf16>
    %cst_127 = arith.constant dense<0.000000e+00> : vector<8x64xf32>
    %448 = tpu.matmul %446, %447, %cst_127 {dimension_numbers = #tpu.dot_dimension_numbers<[1], [0], [0], [1], [0, 0, 1, 1], [], []>} : vector<8x32xbf16>, vector<32x64xbf16>, vector<8x64xf32> -> vector<8x64xf32>
    %449 = vector.extract_strided_slice %448 {offsets = [0, 0], sizes = [8, 32], strides = [1, 1]} : vector<8x64xf32> to vector<8x32xf32>
    %450 = vector.broadcast %416 : vector<1x32xf32> to vector<8x32xf32>
    %451 = arith.addf %449, %450 : vector<8x32xf32>
    %452 = vector.extract_strided_slice %448 {offsets = [0, 32], sizes = [8, 32], strides = [1, 1]} : vector<8x64xf32> to vector<8x32xf32>
    %453 = vector.broadcast %417 : vector<1x32xf32> to vector<8x32xf32>
    %454 = arith.addf %452, %453 : vector<8x32xf32>
    %455 = vector.extract_strided_slice %445 {offsets = [0, 0], sizes = [16, 8], strides = [1, 1]} : vector<16x32xf32> to vector<16x8xf32>
    %456 = arith.truncf %455 : vector<16x8xf32> to vector<16x8xbf16>
    %457 = vector.extract_strided_slice %451 {offsets = [0, 0], sizes = [8, 8], strides = [1, 1]} : vector<8x32xf32> to vector<8x8xf32>
    %458 = arith.truncf %457 : vector<8x8xf32> to vector<8x8xbf16>
    %459 = vector.extract_strided_slice %454 {offsets = [0, 0], sizes = [8, 8], strides = [1, 1]} : vector<8x32xf32> to vector<8x8xf32>
    %460 = arith.truncf %459 : vector<8x8xf32> to vector<8x8xbf16>
    "tpu.trace_start"() <{level = 10 : i32, message = "qd,kd->qk"}> : () -> ()
    %cst_128 = arith.constant dense<0.000000e+00> : vector<16x8xf32>
    %461 = tpu.matmul %456, %458, %cst_128 {dimension_numbers = #tpu.dot_dimension_numbers<[1], [1], [0], [0], [0, 0, 1, 0], [], []>} : vector<16x8xbf16>, vector<8x8xbf16>, vector<16x8xf32> -> vector<16x8xf32>
    "tpu.trace_stop"() : () -> ()
    %462 = vector.broadcast %10 : vector<1x8xf32> to vector<16x8xf32>
    %463 = arith.addf %461, %462 : vector<16x8xf32>
    %cst_129 = arith.constant dense<0xFF800000> : vector<16xf32>
    %464 = vector.multi_reduction <maximumf>, %463, %cst_129 [1] : vector<16x8xf32> to vector<16xf32>
    %465 = vector.shape_cast %464 : vector<16xf32> to vector<16x1xf32>
    %466 = vector.broadcast %465 : vector<16x1xf32> to vector<16x8xf32>
    %467 = arith.subf %463, %466 : vector<16x8xf32>
    %468 = math.exp %467 : vector<16x8xf32>
    %cst_130 = arith.constant dense<0.000000e+00> : vector<16xf32>
    %469 = vector.multi_reduction <add>, %468, %cst_130 [1] : vector<16x8xf32> to vector<16xf32>
    %470 = vector.shape_cast %469 : vector<16xf32> to vector<16x1xf32>
    %471 = tpu.reciprocal %470 {approx = true} : vector<16x1xf32> -> vector<16x1xf32>
    %472 = vector.broadcast %471 : vector<16x1xf32> to vector<16x8xf32>
    %473 = arith.mulf %468, %472 : vector<16x8xf32>
    %474 = arith.truncf %473 : vector<16x8xf32> to vector<16x8xbf16>
    %cst_131 = arith.constant dense<0.000000e+00> : vector<16x8xf32>
    %475 = tpu.matmul %474, %460, %cst_131 {dimension_numbers = #tpu.dot_dimension_numbers<[1], [0], [0], [1], [0, 0, 1, 1], [], []>} : vector<16x8xbf16>, vector<8x8xbf16>, vector<16x8xf32> -> vector<16x8xf32>
    %476 = vector.extract_strided_slice %445 {offsets = [0, 8], sizes = [16, 8], strides = [1, 1]} : vector<16x32xf32> to vector<16x8xf32>
    %477 = arith.truncf %476 : vector<16x8xf32> to vector<16x8xbf16>
    %478 = vector.extract_strided_slice %451 {offsets = [0, 8], sizes = [8, 8], strides = [1, 1]} : vector<8x32xf32> to vector<8x8xf32>
    %479 = arith.truncf %478 : vector<8x8xf32> to vector<8x8xbf16>
    %480 = vector.extract_strided_slice %454 {offsets = [0, 8], sizes = [8, 8], strides = [1, 1]} : vector<8x32xf32> to vector<8x8xf32>
    %481 = arith.truncf %480 : vector<8x8xf32> to vector<8x8xbf16>
    "tpu.trace_start"() <{level = 10 : i32, message = "qd,kd->qk"}> : () -> ()
    %cst_132 = arith.constant dense<0.000000e+00> : vector<16x8xf32>
    %482 = tpu.matmul %477, %479, %cst_132 {dimension_numbers = #tpu.dot_dimension_numbers<[1], [1], [0], [0], [0, 0, 1, 0], [], []>} : vector<16x8xbf16>, vector<8x8xbf16>, vector<16x8xf32> -> vector<16x8xf32>
    "tpu.trace_stop"() : () -> ()
    %483 = vector.broadcast %10 : vector<1x8xf32> to vector<16x8xf32>
    %484 = arith.addf %482, %483 : vector<16x8xf32>
    %cst_133 = arith.constant dense<0xFF800000> : vector<16xf32>
    %485 = vector.multi_reduction <maximumf>, %484, %cst_133 [1] : vector<16x8xf32> to vector<16xf32>
    %486 = vector.shape_cast %485 : vector<16xf32> to vector<16x1xf32>
    %487 = vector.broadcast %486 : vector<16x1xf32> to vector<16x8xf32>
    %488 = arith.subf %484, %487 : vector<16x8xf32>
    %489 = math.exp %488 : vector<16x8xf32>
    %cst_134 = arith.constant dense<0.000000e+00> : vector<16xf32>
    %490 = vector.multi_reduction <add>, %489, %cst_134 [1] : vector<16x8xf32> to vector<16xf32>
    %491 = vector.shape_cast %490 : vector<16xf32> to vector<16x1xf32>
    %492 = tpu.reciprocal %491 {approx = true} : vector<16x1xf32> -> vector<16x1xf32>
    %493 = vector.broadcast %492 : vector<16x1xf32> to vector<16x8xf32>
    %494 = arith.mulf %489, %493 : vector<16x8xf32>
    %495 = arith.truncf %494 : vector<16x8xf32> to vector<16x8xbf16>
    %cst_135 = arith.constant dense<0.000000e+00> : vector<16x8xf32>
    %496 = tpu.matmul %495, %481, %cst_135 {dimension_numbers = #tpu.dot_dimension_numbers<[1], [0], [0], [1], [0, 0, 1, 1], [], []>} : vector<16x8xbf16>, vector<8x8xbf16>, vector<16x8xf32> -> vector<16x8xf32>
    %497 = vector.extract_strided_slice %445 {offsets = [0, 16], sizes = [16, 8], strides = [1, 1]} : vector<16x32xf32> to vector<16x8xf32>
    %498 = arith.truncf %497 : vector<16x8xf32> to vector<16x8xbf16>
    %499 = vector.extract_strided_slice %451 {offsets = [0, 16], sizes = [8, 8], strides = [1, 1]} : vector<8x32xf32> to vector<8x8xf32>
    %500 = arith.truncf %499 : vector<8x8xf32> to vector<8x8xbf16>
    %501 = vector.extract_strided_slice %454 {offsets = [0, 16], sizes = [8, 8], strides = [1, 1]} : vector<8x32xf32> to vector<8x8xf32>
    %502 = arith.truncf %501 : vector<8x8xf32> to vector<8x8xbf16>
    "tpu.trace_start"() <{level = 10 : i32, message = "qd,kd->qk"}> : () -> ()
    %cst_136 = arith.constant dense<0.000000e+00> : vector<16x8xf32>
    %503 = tpu.matmul %498, %500, %cst_136 {dimension_numbers = #tpu.dot_dimension_numbers<[1], [1], [0], [0], [0, 0, 1, 0], [], []>} : vector<16x8xbf16>, vector<8x8xbf16>, vector<16x8xf32> -> vector<16x8xf32>
    "tpu.trace_stop"() : () -> ()
    %504 = vector.broadcast %10 : vector<1x8xf32> to vector<16x8xf32>
    %505 = arith.addf %503, %504 : vector<16x8xf32>
    %cst_137 = arith.constant dense<0xFF800000> : vector<16xf32>
    %506 = vector.multi_reduction <maximumf>, %505, %cst_137 [1] : vector<16x8xf32> to vector<16xf32>
    %507 = vector.shape_cast %506 : vector<16xf32> to vector<16x1xf32>
    %508 = vector.broadcast %507 : vector<16x1xf32> to vector<16x8xf32>
    %509 = arith.subf %505, %508 : vector<16x8xf32>
    %510 = math.exp %509 : vector<16x8xf32>
    %cst_138 = arith.constant dense<0.000000e+00> : vector<16xf32>
    %511 = vector.multi_reduction <add>, %510, %cst_138 [1] : vector<16x8xf32> to vector<16xf32>
    %512 = vector.shape_cast %511 : vector<16xf32> to vector<16x1xf32>
    %513 = tpu.reciprocal %512 {approx = true} : vector<16x1xf32> -> vector<16x1xf32>
    %514 = vector.broadcast %513 : vector<16x1xf32> to vector<16x8xf32>
    %515 = arith.mulf %510, %514 : vector<16x8xf32>
    %516 = arith.truncf %515 : vector<16x8xf32> to vector<16x8xbf16>
    %cst_139 = arith.constant dense<0.000000e+00> : vector<16x8xf32>
    %517 = tpu.matmul %516, %502, %cst_139 {dimension_numbers = #tpu.dot_dimension_numbers<[1], [0], [0], [1], [0, 0, 1, 1], [], []>} : vector<16x8xbf16>, vector<8x8xbf16>, vector<16x8xf32> -> vector<16x8xf32>
    %518 = vector.extract_strided_slice %445 {offsets = [0, 24], sizes = [16, 8], strides = [1, 1]} : vector<16x32xf32> to vector<16x8xf32>
    %519 = arith.truncf %518 : vector<16x8xf32> to vector<16x8xbf16>
    %520 = vector.extract_strided_slice %451 {offsets = [0, 24], sizes = [8, 8], strides = [1, 1]} : vector<8x32xf32> to vector<8x8xf32>
    %521 = arith.truncf %520 : vector<8x8xf32> to vector<8x8xbf16>
    %522 = vector.extract_strided_slice %454 {offsets = [0, 24], sizes = [8, 8], strides = [1, 1]} : vector<8x32xf32> to vector<8x8xf32>
    %523 = arith.truncf %522 : vector<8x8xf32> to vector<8x8xbf16>
    "tpu.trace_start"() <{level = 10 : i32, message = "qd,kd->qk"}> : () -> ()
    %cst_140 = arith.constant dense<0.000000e+00> : vector<16x8xf32>
    %524 = tpu.matmul %519, %521, %cst_140 {dimension_numbers = #tpu.dot_dimension_numbers<[1], [1], [0], [0], [0, 0, 1, 0], [], []>} : vector<16x8xbf16>, vector<8x8xbf16>, vector<16x8xf32> -> vector<16x8xf32>
    "tpu.trace_stop"() : () -> ()
    %525 = vector.broadcast %10 : vector<1x8xf32> to vector<16x8xf32>
    %526 = arith.addf %524, %525 : vector<16x8xf32>
    %cst_141 = arith.constant dense<0xFF800000> : vector<16xf32>
    %527 = vector.multi_reduction <maximumf>, %526, %cst_141 [1] : vector<16x8xf32> to vector<16xf32>
    %528 = vector.shape_cast %527 : vector<16xf32> to vector<16x1xf32>
    %529 = vector.broadcast %528 : vector<16x1xf32> to vector<16x8xf32>
    %530 = arith.subf %526, %529 : vector<16x8xf32>
    %531 = math.exp %530 : vector<16x8xf32>
    %cst_142 = arith.constant dense<0.000000e+00> : vector<16xf32>
    %532 = vector.multi_reduction <add>, %531, %cst_142 [1] : vector<16x8xf32> to vector<16xf32>
    %533 = vector.shape_cast %532 : vector<16xf32> to vector<16x1xf32>
    %534 = tpu.reciprocal %533 {approx = true} : vector<16x1xf32> -> vector<16x1xf32>
    %535 = vector.broadcast %534 : vector<16x1xf32> to vector<16x8xf32>
    %536 = arith.mulf %531, %535 : vector<16x8xf32>
    %537 = arith.truncf %536 : vector<16x8xf32> to vector<16x8xbf16>
    %cst_143 = arith.constant dense<0.000000e+00> : vector<16x8xf32>
    %538 = tpu.matmul %537, %523, %cst_143 {dimension_numbers = #tpu.dot_dimension_numbers<[1], [0], [0], [1], [0, 0, 1, 1], [], []>} : vector<16x8xbf16>, vector<8x8xbf16>, vector<16x8xf32> -> vector<16x8xf32>
    %539 = tpu.concatenate %475, %496, %517, %538 in 1 : vector<16x8xf32>, vector<16x8xf32>, vector<16x8xf32>, vector<16x8xf32> -> vector<16x32xf32>
    %540 = arith.truncf %539 : vector<16x32xf32> to vector<16x32xbf16>
    %c336 = arith.constant 336 : index
    %c0_144 = arith.constant 0 : index
    %541 = vector.load %arg6[%c336, %c0_144] : memref<608x128xbf16, #tpu.memory_space<vmem>>, vector<32x48xbf16>
    %cst_145 = arith.constant dense<0.000000e+00> : vector<16x48xf32>
    %542 = tpu.matmul %540, %541, %cst_145 {dimension_numbers = #tpu.dot_dimension_numbers<[1], [0], [0], [1], [0, 0, 1, 1], [], []>} : vector<16x32xbf16>, vector<32x48xbf16>, vector<16x48xf32> -> vector<16x48xf32>
    %543 = arith.addf %279, %542 : vector<16x48xf32>
    %544 = vector.broadcast %418 : vector<1x48xf32> to vector<16x48xf32>
    %545 = arith.addf %543, %544 : vector<16x48xf32>
    %c24 = arith.constant 24 : index
    %c0_146 = arith.constant 0 : index
    %546 = vector.load %arg5[%c24, %c0_146] : memref<32x128xf32, #tpu.memory_space<vmem>>, vector<1x32xf32>
    %c25 = arith.constant 25 : index
    %c0_147 = arith.constant 0 : index
    %547 = vector.load %arg5[%c25, %c0_147] : memref<32x128xf32, #tpu.memory_space<vmem>>, vector<1x32xf32>
    %c26 = arith.constant 26 : index
    %c0_148 = arith.constant 0 : index
    %548 = vector.load %arg5[%c26, %c0_148] : memref<32x128xf32, #tpu.memory_space<vmem>>, vector<1x64xf32>
    %c27 = arith.constant 27 : index
    %c0_149 = arith.constant 0 : index
    %549 = vector.load %arg5[%c27, %c0_149] : memref<32x128xf32, #tpu.memory_space<vmem>>, vector<1x32xf32>
    %cst_150 = arith.constant dense<0.000000e+00> : vector<8xf32>
    %550 = vector.multi_reduction <add>, %412, %cst_150 [1] : vector<8x32xf32> to vector<8xf32>
    %551 = vector.shape_cast %550 : vector<8xf32> to vector<8x1xf32>
    %cst_151 = arith.constant 3.200000e+01 : f32
    %552 = vector.broadcast %cst_151 : f32 to vector<8x1xf32>
    %553 = arith.divf %551, %552 : vector<8x1xf32>
    %554 = vector.broadcast %553 : vector<8x1xf32> to vector<8x32xf32>
    %555 = arith.subf %412, %554 : vector<8x32xf32>
    %556 = arith.mulf %555, %555 : vector<8x32xf32>
    %cst_152 = arith.constant dense<0.000000e+00> : vector<8xf32>
    %557 = vector.multi_reduction <add>, %556, %cst_152 [1] : vector<8x32xf32> to vector<8xf32>
    %558 = vector.shape_cast %557 : vector<8xf32> to vector<8x1xf32>
    %cst_153 = arith.constant 3.200000e+01 : f32
    %559 = vector.broadcast %cst_153 : f32 to vector<8x1xf32>
    %560 = arith.divf %558, %559 : vector<8x1xf32>
    %561 = vector.broadcast %553 : vector<8x1xf32> to vector<8x32xf32>
    %562 = arith.subf %412, %561 : vector<8x32xf32>
    %cst_154 = arith.constant 9.99999974E-6 : f32
    %563 = vector.broadcast %cst_154 : f32 to vector<8x1xf32>
    %564 = arith.addf %560, %563 : vector<8x1xf32>
    %565 = math.rsqrt %564 : vector<8x1xf32>
    %566 = vector.broadcast %565 : vector<8x1xf32> to vector<8x32xf32>
    %567 = arith.mulf %562, %566 : vector<8x32xf32>
    %568 = vector.broadcast %546 : vector<1x32xf32> to vector<8x32xf32>
    %569 = arith.mulf %567, %568 : vector<8x32xf32>
    %570 = vector.broadcast %547 : vector<1x32xf32> to vector<8x32xf32>
    %571 = arith.addf %569, %570 : vector<8x32xf32>
    %572 = arith.truncf %571 : vector<8x32xf32> to vector<8x32xbf16>
    %c368 = arith.constant 368 : index
    %c0_155 = arith.constant 0 : index
    %573 = vector.load %arg6[%c368, %c0_155] : memref<608x128xbf16, #tpu.memory_space<vmem>>, vector<32x64xbf16>
    %cst_156 = arith.constant dense<0.000000e+00> : vector<8x64xf32>
    %574 = tpu.matmul %572, %573, %cst_156 {dimension_numbers = #tpu.dot_dimension_numbers<[1], [0], [0], [1], [0, 0, 1, 1], [], []>} : vector<8x32xbf16>, vector<32x64xbf16>, vector<8x64xf32> -> vector<8x64xf32>
    %575 = vector.broadcast %548 : vector<1x64xf32> to vector<8x64xf32>
    %576 = arith.addf %574, %575 : vector<8x64xf32>
    %cst_157 = arith.constant 0.000000e+00 : f32
    %577 = vector.broadcast %cst_157 : f32 to vector<8x64xf32>
    %578 = arith.maximumf %576, %577 : vector<8x64xf32>
    %579 = arith.truncf %578 : vector<8x64xf32> to vector<8x64xbf16>
    %c400 = arith.constant 400 : index
    %c0_158 = arith.constant 0 : index
    %580 = vector.load %arg6[%c400, %c0_158] : memref<608x128xbf16, #tpu.memory_space<vmem>>, vector<64x32xbf16>
    %cst_159 = arith.constant dense<0.000000e+00> : vector<8x32xf32>
    %581 = tpu.matmul %579, %580, %cst_159 {dimension_numbers = #tpu.dot_dimension_numbers<[1], [0], [0], [1], [0, 0, 1, 1], [], []>} : vector<8x64xbf16>, vector<64x32xbf16>, vector<8x32xf32> -> vector<8x32xf32>
    %582 = vector.broadcast %549 : vector<1x32xf32> to vector<8x32xf32>
    %583 = arith.addf %581, %582 : vector<8x32xf32>
    %584 = arith.addf %412, %583 : vector<8x32xf32>
    %c28 = arith.constant 28 : index
    %c0_160 = arith.constant 0 : index
    %585 = vector.load %arg5[%c28, %c0_160] : memref<32x128xf32, #tpu.memory_space<vmem>>, vector<1x48xf32>
    %c29 = arith.constant 29 : index
    %c0_161 = arith.constant 0 : index
    %586 = vector.load %arg5[%c29, %c0_161] : memref<32x128xf32, #tpu.memory_space<vmem>>, vector<1x48xf32>
    %c30 = arith.constant 30 : index
    %c0_162 = arith.constant 0 : index
    %587 = vector.load %arg5[%c30, %c0_162] : memref<32x128xf32, #tpu.memory_space<vmem>>, vector<1x96xf32>
    %c31 = arith.constant 31 : index
    %c0_163 = arith.constant 0 : index
    %588 = vector.load %arg5[%c31, %c0_163] : memref<32x128xf32, #tpu.memory_space<vmem>>, vector<1x48xf32>
    %cst_164 = arith.constant dense<0.000000e+00> : vector<16xf32>
    %589 = vector.multi_reduction <add>, %545, %cst_164 [1] : vector<16x48xf32> to vector<16xf32>
    %590 = vector.shape_cast %589 : vector<16xf32> to vector<16x1xf32>
    %cst_165 = arith.constant 4.800000e+01 : f32
    %591 = vector.broadcast %cst_165 : f32 to vector<16x1xf32>
    %592 = arith.divf %590, %591 : vector<16x1xf32>
    %593 = vector.broadcast %592 : vector<16x1xf32> to vector<16x48xf32>
    %594 = arith.subf %545, %593 : vector<16x48xf32>
    %595 = arith.mulf %594, %594 : vector<16x48xf32>
    %cst_166 = arith.constant dense<0.000000e+00> : vector<16xf32>
    %596 = vector.multi_reduction <add>, %595, %cst_166 [1] : vector<16x48xf32> to vector<16xf32>
    %597 = vector.shape_cast %596 : vector<16xf32> to vector<16x1xf32>
    %cst_167 = arith.constant 4.800000e+01 : f32
    %598 = vector.broadcast %cst_167 : f32 to vector<16x1xf32>
    %599 = arith.divf %597, %598 : vector<16x1xf32>
    %600 = vector.broadcast %592 : vector<16x1xf32> to vector<16x48xf32>
    %601 = arith.subf %545, %600 : vector<16x48xf32>
    %cst_168 = arith.constant 9.99999974E-6 : f32
    %602 = vector.broadcast %cst_168 : f32 to vector<16x1xf32>
    %603 = arith.addf %599, %602 : vector<16x1xf32>
    %604 = math.rsqrt %603 : vector<16x1xf32>
    %605 = vector.broadcast %604 : vector<16x1xf32> to vector<16x48xf32>
    %606 = arith.mulf %601, %605 : vector<16x48xf32>
    %607 = vector.broadcast %585 : vector<1x48xf32> to vector<16x48xf32>
    %608 = arith.mulf %606, %607 : vector<16x48xf32>
    %609 = vector.broadcast %586 : vector<1x48xf32> to vector<16x48xf32>
    %610 = arith.addf %608, %609 : vector<16x48xf32>
    %611 = arith.truncf %610 : vector<16x48xf32> to vector<16x48xbf16>
    %c464 = arith.constant 464 : index
    %c0_169 = arith.constant 0 : index
    %612 = vector.load %arg6[%c464, %c0_169] : memref<608x128xbf16, #tpu.memory_space<vmem>>, vector<48x96xbf16>
    %cst_170 = arith.constant dense<0.000000e+00> : vector<16x96xf32>
    %613 = tpu.matmul %611, %612, %cst_170 {dimension_numbers = #tpu.dot_dimension_numbers<[1], [0], [0], [1], [0, 0, 1, 1], [], []>} : vector<16x48xbf16>, vector<48x96xbf16>, vector<16x96xf32> -> vector<16x96xf32>
    %614 = vector.broadcast %587 : vector<1x96xf32> to vector<16x96xf32>
    %615 = arith.addf %613, %614 : vector<16x96xf32>
    %cst_171 = arith.constant 0.000000e+00 : f32
    %616 = vector.broadcast %cst_171 : f32 to vector<16x96xf32>
    %617 = arith.maximumf %615, %616 : vector<16x96xf32>
    %618 = arith.truncf %617 : vector<16x96xf32> to vector<16x96xbf16>
    %c512 = arith.constant 512 : index
    %c0_172 = arith.constant 0 : index
    %619 = vector.load %arg6[%c512, %c0_172] : memref<608x128xbf16, #tpu.memory_space<vmem>>, vector<96x48xbf16>
    %cst_173 = arith.constant dense<0.000000e+00> : vector<16x48xf32>
    %620 = tpu.matmul %618, %619, %cst_173 {dimension_numbers = #tpu.dot_dimension_numbers<[1], [0], [0], [1], [0, 0, 1, 1], [], []>} : vector<16x96xbf16>, vector<96x48xbf16>, vector<16x48xf32> -> vector<16x48xf32>
    %621 = vector.broadcast %588 : vector<1x48xf32> to vector<16x48xf32>
    %622 = arith.addf %620, %621 : vector<16x48xf32>
    %623 = arith.addf %545, %622 : vector<16x48xf32>
    %c0_174 = arith.constant 0 : index
    %c0_175 = arith.constant 0 : index
    %c0_176 = arith.constant 0 : index
    %624 = vector.load %arg7[%c0_174, %c0_175, %c0_176] : memref<1x8x32xf32, #tpu.memory_space<vmem>>, vector<1x8x32xf32>
    %625 = vector.shape_cast %624 : vector<1x8x32xf32> to vector<8x32xf32>
    %626 = vector.shape_cast %584 : vector<8x32xf32> to vector<1x8x32xf32>
    tpu.vector_store %arg7[%c0_174, %c0_175, %c0_176], %626 {strides = array<i32>} : memref<1x8x32xf32, #tpu.memory_space<vmem>>, vector<1x8x32xf32>,
    %c0_177 = arith.constant 0 : index
    %c0_178 = arith.constant 0 : index
    %c0_179 = arith.constant 0 : index
    %627 = vector.load %arg8[%c0_177, %c0_178, %c0_179] : memref<1x16x48xf32, #tpu.memory_space<vmem>>, vector<1x16x48xf32>
    %628 = vector.shape_cast %627 : vector<1x16x48xf32> to vector<16x48xf32>
    %629 = vector.shape_cast %623 : vector<16x48xf32> to vector<1x16x48xf32>
    tpu.vector_store %arg8[%c0_177, %c0_178, %c0_179], %629 {strides = array<i32>} : memref<1x16x48xf32, #tpu.memory_space<vmem>>, vector<1x16x48xf32>,
    return
  }
  func.func @transform_0(%arg0: i32) -> (i32, i32, i32) {
    %c0_i32 = arith.constant 0 : i32
    %c0_i32_0 = arith.constant 0 : i32
    %c0_i32_1 = arith.constant 0 : i32
    return %arg0, %c0_i32, %c0_i32_0 : i32, i32, i32
  }
  func.func @transform_1(%arg0: i32) -> (i32, i32, i32) {
    %c0_i32 = arith.constant 0 : i32
    %c0_i32_0 = arith.constant 0 : i32
    %c0_i32_1 = arith.constant 0 : i32
    return %arg0, %c0_i32, %c0_i32_0 : i32, i32, i32
  }
  func.func @transform_2(%arg0: i32) -> (i32, i32, i32) {
    %c0_i32 = arith.constant 0 : i32
    %c0_i32_0 = arith.constant 0 : i32
    %c0_i32_1 = arith.constant 0 : i32
    return %arg0, %c0_i32, %c0_i32_0 : i32, i32, i32
  }
  func.func @transform_3(%arg0: i32) -> (i32, i32, i32) {
    %c0_i32 = arith.constant 0 : i32
    %c0_i32_0 = arith.constant 0 : i32
    %c0_i32_1 = arith.constant 0 : i32
    return %arg0, %c0_i32, %c0_i32_0 : i32, i32, i32
  }
  func.func @transform_4(%arg0: i32) -> (i32, i32) {
    %c0_i32 = arith.constant 0 : i32
    %c0_i32_0 = arith.constant 0 : i32
    %c0_i32_1 = arith.constant 0 : i32
    return %c0_i32, %c0_i32_0 : i32, i32
  }
  func.func @transform_5(%arg0: i32) -> (i32, i32) {
    %c0_i32 = arith.constant 0 : i32
    %c0_i32_0 = arith.constant 0 : i32
    %c0_i32_1 = arith.constant 0 : i32
    return %c0_i32, %c0_i32_0 : i32, i32
  }
  func.func @transform_6(%arg0: i32) -> (i32, i32, i32) {
    %c0_i32 = arith.constant 0 : i32
    %c0_i32_0 = arith.constant 0 : i32
    %c0_i32_1 = arith.constant 0 : i32
    return %arg0, %c0_i32, %c0_i32_0 : i32, i32, i32
  }
  func.func @transform_7(%arg0: i32) -> (i32, i32, i32) {
    %c0_i32 = arith.constant 0 : i32
    %c0_i32_0 = arith.constant 0 : i32
    %c0_i32_1 = arith.constant 0 : i32
    return %arg0, %c0_i32, %c0_i32_0 : i32, i32, i32
  }
}

</mosaic_0001>

<llo_original>
// kernel: bimodal_encoder_two.1
$region0: #{bimodal_encoder_two.1}
  #allocation0 [shape = 'u32[]', space=smem, size = 0x4, offset = 0x4, fixed_abs, tag = 'smem constant byte address 0x4 - core index']
  #allocation1 [shape = 'u32[144,128]{1,0:T(1,128)}', space=vmem, size = 0x12000, scoped, tag = 'internal scratch']
  %s0 = inlined_call_operand.hbm [shape: f32[2,8,32], index: 0, kind: input, shape index: {}]
  %s1 = inlined_call_operand.hbm [shape: f32[2,16,48], index: 1, kind: input, shape index: {}]
  %s2 = inlined_call_operand.vmem [shape: f32[2,1,8], index: 2, kind: input, shape index: {}]
  %s3 = inlined_call_operand.vmem [shape: f32[2,1,16], index: 3, kind: input, shape index: {}]
  %s4 = inlined_call_operand.hbm [shape: f32[32,128], index: 4, kind: input, shape index: {}]
  %s5 = inlined_call_operand.hbm [shape: bf16[608,128], index: 5, kind: input, shape index: {}]
  %s6 = inlined_call_operand.hbm [shape: f32[2,8,32], index: 6, kind: output, shape index: {0}]
  %s7 = inlined_call_operand.hbm [shape: f32[2,16,48], index: 7, kind: output, shape index: {1}]
  %8 = xla_tuple %s6, %s7
  %s9 = sld [smem:[#allocation0]]
  $region81: #{bimodal_encoder_two.1} parent=0
    _
  %s11 = ssub.s32 1, %s9
  %s12 = scalar_select 0, %s11, %s9
  $region1: #{bimodal_encoder_two.1} parent=0
    #allocation2 [shape = 'u8[8192]{0}', space=vmem, size = 0x2000, scoped, tag = 'input window, operand 0']
    #allocation3 [shape = 's32[2]{0}', space=sflag, size = 0x8, scoped, tag = 'scoped memory for bimodal_encoder_two.1']
    #allocation4 [shape = 's32[2]{0}', space=sflag, size = 0x8, scoped, tag = 'scoped memory for bimodal_encoder_two.1']
    #allocation5 [shape = 'u8[16384]{0}', space=vmem, size = 0x4000, scoped, tag = 'input window, operand 1']
    #allocation6 [shape = 's32[2]{0}', space=sflag, size = 0x8, scoped, tag = 'scoped memory for bimodal_encoder_two.1']
    #allocation7 [shape = 'u8[16384]{0}', space=vmem, size = 0x4000, scoped, tag = 'input window, operand 4, single buffered']
    #allocation8 [shape = 'u8[155648]{0}', space=vmem, size = 0x26000, scoped, tag = 'input window, operand 5, single buffered']
    #allocation9 [shape = 's32[1]{0}', space=sflag, size = 0x4, scoped, tag = 'scoped memory for bimodal_encoder_two.1']
    #allocation10 [shape = 'u8[8192]{0}', space=vmem, size = 0x2000, scoped, tag = 'output window, operand 0']
    #allocation11 [shape = 'u8[16384]{0}', space=vmem, size = 0x4000, scoped, tag = 'output window, operand 1']
    #allocation12 [shape = 's32[2]{0}', space=sflag, size = 0x8, scoped, tag = 'scoped memory for bimodal_encoder_two.1']
    %13 = vsyncpa [#allocation3], 0
    %s14 = scalar_lea.sflag [#allocation3], 1
    %15 = vsyncpa %s14, 0
    %16 = vsyncpa [#allocation6], 0
    %s17 = scalar_lea.sflag [#allocation6], 1
    %18 = vsyncpa %s17, 0
    %19 = vsyncpa [#allocation9], 0
    %20 = vsyncpa [#allocation4], 0
    %s21 = scalar_lea.sflag [#allocation4], 1
    %22 = vsyncpa %s21, 0
    %23 = vsyncpa [#allocation12], 0
    %s24 = scalar_lea.sflag [#allocation12], 1
    %25 = vsyncpa %s24, 0
    loop: start=0, step=1, limit=4
    $region2: #{bimodal_encoder_two.1} parent=1 // loop_pre_header
      _
    $region3: #{bimodal_encoder_two.1} parent=1 // loop_header
      %s27 = sphi 0, %s31
      %p28 = scmp.ge.s32.totalorder %s27, 4
      %s37 = sphi 0, %s39
      %s40 = sphi 0, %s37
      %s41 = sphi 0, %s40
      %s57 = sphi 0, %s41
      %s63 = sphi 0, %s65
      %s66 = sphi 0, %s63
      %s67 = sphi 0, %s66
      %s83 = sphi 0, %s67
      %s89 = sphi 0, %s91
      %s92 = sphi 0, %s89
      %s93 = sphi 0, %s92
      %s109 = sphi 0, %s93
      %s115 = sphi 0, %s117
      %s118 = sphi 0, %s115
      %s119 = sphi 0, %s118
      %s135 = sphi 0, %s119
      %s139 = sphi 0, %s139
      %s141 = sphi 0, %s139
      %s142 = sphi 0, %s141
      %s156 = sphi 0, %s142
      %s160 = sphi 0, %s160
      %s162 = sphi 0, %s160
      %s163 = sphi 0, %s162
      %s177 = sphi 0, %s163
      %s183 = sphi 0, %s185
      %s186 = sphi 0, %s183
      %s187 = sphi 0, %s186
      %s203 = sphi 0, %s187
      %s209 = sphi 0, %s211
      %s212 = sphi 0, %s209
      %s213 = sphi 0, %s212
      %s229 = sphi 0, %s213
    $region4: #{bimodal_encoder_two.1} parent=1 // loop_header_branch
      %30 = sbr.rel (%p28) target = $region8
    $region5: #{bimodal_encoder_two.1} parent=1 // loop_body
      %s32 = ssub.s32 %s27, 1
      %s33 = ssub.s32 %s27, 2
      %s34 = sadd.s32 %s27, 1
      %s35 = ssub.s32 %s27, %s34
      %p36 = scmp.eq.s32.totalorder %s35, 0
      %s38 = sadd.s32 %s37, 1
      %s39 = scalar_select %p36, %s37, %s38
      %p42 = pneg %p36
      %p43 = scmp.eq.s32.totalorder %s27, 1
      %p44 = por %p42, %p43
      %p45 = scmp.ne.s32.totalorder %s37, %s40
      %p46 = scmp.eq.s32.totalorder %s27, 0
      %p47 = por %p45, %p46
      %p48 = scmp.ne.s32.totalorder %s37, %s40
      %p49 = scmp.eq.s32.totalorder %s32, 1
      %p50 = por %p48, %p49
      %p51 = scmp.ne.s32.totalorder %s40, %s41
      %p52 = scmp.eq.s32.totalorder %s32, 0
      %p53 = por %p51, %p52
      %p54 = scmp.ne.s32.totalorder %s40, %s41
      %p55 = scmp.eq.s32.totalorder %s33, 1
      %p56 = por %p54, %p55
      %p58 = scmp.ne.s32.totalorder %s41, %s57
      %p59 = scmp.eq.s32.totalorder %s33, 0
      %p60 = por %p58, %p59
      %s61 = ssub.s32 %s27, %s34
      %p62 = scmp.eq.s32.totalorder %s61, 0
      %s64 = sadd.s32 %s63, 1
      %s65 = scalar_select %p62, %s63, %s64
      %p68 = pneg %p62
      %p69 = scmp.eq.s32.totalorder %s27, 1
      %p70 = por %p68, %p69
      %p71 = scmp.ne.s32.totalorder %s63, %s66
      %p72 = scmp.eq.s32.totalorder %s27, 0
      %p73 = por %p71, %p72
      %p74 = scmp.ne.s32.totalorder %s63, %s66
      %p75 = scmp.eq.s32.totalorder %s32, 1
      %p76 = por %p74, %p75
      %p77 = scmp.ne.s32.totalorder %s66, %s67
      %p78 = scmp.eq.s32.totalorder %s32, 0
      %p79 = por %p77, %p78
      %p80 = scmp.ne.s32.totalorder %s66, %s67
      %p81 = scmp.eq.s32.totalorder %s33, 1
      %p82 = por %p80, %p81
      %p84 = scmp.ne.s32.totalorder %s67, %s83
      %p85 = scmp.eq.s32.totalorder %s33, 0
      %p86 = por %p84, %p85
      %s87 = ssub.s32 %s27, %s34
      %p88 = scmp.eq.s32.totalorder %s87, 0
      %s90 = sadd.s32 %s89, 1
      %s91 = scalar_select %p88, %s89, %s90
      %p94 = pneg %p88
      %p95 = scmp.eq.s32.totalorder %s27, 1
      %p96 = por %p94, %p95
      %p97 = scmp.ne.s32.totalorder %s89, %s92
      %p98 = scmp.eq.s32.totalorder %s27, 0
      %p99 = por %p97, %p98
      %p100 = scmp.ne.s32.totalorder %s89, %s92
      %p101 = scmp.eq.s32.totalorder %s32, 1
      %p102 = por %p100, %p101
      %p103 = scmp.ne.s32.totalorder %s92, %s93
      %p104 = scmp.eq.s32.totalorder %s32, 0
      %p105 = por %p103, %p104
      %p106 = scmp.ne.s32.totalorder %s92, %s93
      %p107 = scmp.eq.s32.totalorder %s33, 1
      %p108 = por %p106, %p107
      %p110 = scmp.ne.s32.totalorder %s93, %s109
      %p111 = scmp.eq.s32.totalorder %s33, 0
      %p112 = por %p110, %p111
      %s113 = ssub.s32 %s27, %s34
      %p114 = scmp.eq.s32.totalorder %s113, 0
      %s116 = sadd.s32 %s115, 1
      %s117 = scalar_select %p114, %s115, %s116
      %p120 = pneg %p114
      %p121 = scmp.eq.s32.totalorder %s27, 1
      %p122 = por %p120, %p121
      %p123 = scmp.ne.s32.totalorder %s115, %s118
      %p124 = scmp.eq.s32.totalorder %s27, 0
      %p125 = por %p123, %p124
      %p126 = scmp.ne.s32.totalorder %s115, %s118
      %p127 = scmp.eq.s32.totalorder %s32, 1
      %p128 = por %p126, %p127
      %p129 = scmp.ne.s32.totalorder %s118, %s119
      %p130 = scmp.eq.s32.totalorder %s32, 0
      %p131 = por %p129, %p130
      %p132 = scmp.ne.s32.totalorder %s118, %s119
      %p133 = scmp.eq.s32.totalorder %s33, 1
      %p134 = por %p132, %p133
      %p136 = scmp.ne.s32.totalorder %s119, %s135
      %p137 = scmp.eq.s32.totalorder %s33, 0
      %p138 = por %p136, %p137
      %s140 = sadd.s32 %s139, 1
      %p143 = scmp.eq.s32.totalorder %s27, 1
      %p144 = scmp.ne.s32.totalorder %s139, %s141
      %p145 = scmp.eq.s32.totalorder %s27, 0
      %p146 = por %p144, %p145
      %p147 = scmp.ne.s32.totalorder %s139, %s141
      %p148 = scmp.eq.s32.totalorder %s32, 1
      %p149 = por %p147, %p148
      %p150 = scmp.ne.s32.totalorder %s141, %s142
      %p151 = scmp.eq.s32.totalorder %s32, 0
      %p152 = por %p150, %p151
      %p153 = scmp.ne.s32.totalorder %s141, %s142
      %p154 = scmp.eq.s32.totalorder %s33, 1
      %p155 = por %p153, %p154
      %p157 = scmp.ne.s32.totalorder %s142, %s156
      %p158 = scmp.eq.s32.totalorder %s33, 0
      %p159 = por %p157, %p158
      %s161 = sadd.s32 %s160, 1
      %p164 = scmp.eq.s32.totalorder %s27, 1
      %p165 = scmp.ne.s32.totalorder %s160, %s162
      %p166 = scmp.eq.s32.totalorder %s27, 0
      %p167 = por %p165, %p166
      %p168 = scmp.ne.s32.totalorder %s160, %s162
      %p169 = scmp.eq.s32.totalorder %s32, 1
      %p170 = por %p168, %p169
      %p171 = scmp.ne.s32.totalorder %s162, %s163
      %p172 = scmp.eq.s32.totalorder %s32, 0
      %p173 = por %p171, %p172
      %p174 = scmp.ne.s32.totalorder %s162, %s163
      %p175 = scmp.eq.s32.totalorder %s33, 1
      %p176 = por %p174, %p175
      %p178 = scmp.ne.s32.totalorder %s163, %s177
      %p179 = scmp.eq.s32.totalorder %s33, 0
      %p180 = por %p178, %p179
      %s181 = ssub.s32 %s27, %s34
      %p182 = scmp.eq.s32.totalorder %s181, 0
      %s184 = sadd.s32 %s183, 1
      %s185 = scalar_select %p182, %s183, %s184
      %p188 = pneg %p182
      %p189 = scmp.eq.s32.totalorder %s27, 1
      %p190 = por %p188, %p189
      %p191 = scmp.ne.s32.totalorder %s183, %s186
      %p192 = scmp.eq.s32.totalorder %s27, 0
      %p193 = por %p191, %p192
      %p194 = scmp.ne.s32.totalorder %s183, %s186
      %p195 = scmp.eq.s32.totalorder %s32, 1
      %p196 = por %p194, %p195
      %p197 = scmp.ne.s32.totalorder %s186, %s187
      %p198 = scmp.eq.s32.totalorder %s32, 0
      %p199 = por %p197, %p198
      %p200 = scmp.ne.s32.totalorder %s186, %s187
      %p201 = scmp.eq.s32.totalorder %s33, 1
      %p202 = por %p200, %p201
      %p204 = scmp.ne.s32.totalorder %s187, %s203
      %p205 = scmp.eq.s32.totalorder %s33, 0
      %p206 = por %p204, %p205
      %s207 = ssub.s32 %s27, %s34
      %p208 = scmp.eq.s32.totalorder %s207, 0
      %s210 = sadd.s32 %s209, 1
      %s211 = scalar_select %p208, %s209, %s210
      %p214 = pneg %p208
      %p215 = scmp.eq.s32.totalorder %s27, 1
      %p216 = por %p214, %p215
      %p217 = scmp.ne.s32.totalorder %s209, %s212
      %p218 = scmp.eq.s32.totalorder %s27, 0
      %p219 = por %p217, %p218
      %p220 = scmp.ne.s32.totalorder %s209, %s212
      %p221 = scmp.eq.s32.totalorder %s32, 1
      %p222 = por %p220, %p221
      %p223 = scmp.ne.s32.totalorder %s212, %s213
      %p224 = scmp.eq.s32.totalorder %s32, 0
      %p225 = por %p223, %p224
      %p226 = scmp.ne.s32.totalorder %s212, %s213
      %p227 = scmp.eq.s32.totalorder %s33, 1
      %p228 = por %p226, %p227
      %p230 = scmp.ne.s32.totalorder %s213, %s229
      %p231 = scmp.eq.s32.totalorder %s33, 0
      %p232 = por %p230, %p231
      %p233 = scmp.le.s32.totalorder 1, %s27
      %p234 = scmp.lt.s32.totalorder %s27, 3
      %p235 = pnand %p233, %p234
      %p236 = pneg %p235
      // Predicated region
      $region9: #{bimodal_encoder_two.1} parent=5 // pred_check
        _
      $region10: #{bimodal_encoder_two.1} parent=5 // pred_check_branch
        %238 = sbr.rel (%p235) target = $region12
      $region11: #{bimodal_encoder_two.1} parent=5 // pred_region
        %s239 = ssub.s32 %s27, 1
        // Predicated region
        $region13: #{bimodal_encoder_two.1} parent=11 // pred_check
          %p240 = pneg %p152
        $region14: #{bimodal_encoder_two.1} parent=11 // pred_check_branch
          %242 = sbr.rel (%p240) target = $region16
        $region15: #{bimodal_encoder_two.1} parent=11 // pred_region
          %s244 = ssub.s32 512, 512
          %245 = vsyncadd [#allocation6], %s244
          %s246 = sshll.u32 [#allocation7], 4
          %s247 = int_to_ptr.vmem [resolvable:$true] %s246
          %252 = dma.hbm_to_vmem [thread:$0]  %s4, 512, %s247, [#allocation6], 128, 128, 8
        $region16: #{bimodal_encoder_two.1} parent=11 // pred_fallthru
          _
        // Predicated region
        $region17: #{bimodal_encoder_two.1} parent=11 // pred_check
          %p253 = pneg %p173
        $region18: #{bimodal_encoder_two.1} parent=11 // pred_check_branch
          %255 = sbr.rel (%p253) target = $region20
        $region19: #{bimodal_encoder_two.1} parent=11 // pred_region
          %s257 = ssub.s32 4864, 4864
          %258 = vsyncadd [#allocation9], %s257
          %s259 = sshll.u32 [#allocation8], 4
          %s260 = int_to_ptr.vmem [resolvable:$true] %s259
          %265 = dma.hbm_to_vmem [thread:$0]  %s5, 4864, %s260, [#allocation9], 64, 64, 4
        $region20: #{bimodal_encoder_two.1} parent=11 // pred_fallthru
          _
      $region12: #{bimodal_encoder_two.1} parent=5 // pred_fallthru
        _
      %p266 = scmp.lt.s32.totalorder %s27, 2
      // Predicated region
      $region21: #{bimodal_encoder_two.1} parent=5 // pred_check
        %p267 = pneg %p266
      $region22: #{bimodal_encoder_two.1} parent=5 // pred_check_branch
        %269 = sbr.rel (%p267) target = $region24
      $region23: #{bimodal_encoder_two.1} parent=5 // pred_region
        // Predicated region
        $region25: #{bimodal_encoder_two.1} parent=23 // pred_check
          %p270 = pneg %p47
        $region26: #{bimodal_encoder_two.1} parent=23 // pred_check_branch
          %272 = sbr.rel (%p270) target = $region28
        $region27: #{bimodal_encoder_two.1} parent=23 // pred_region
          %s273 = sand.u32 %s37, 1
          %s274 = scalar_lea.sflag [#allocation3], %s273
          %s275 = sand.u32 %s37, 1
          %s276 = smul.addr %s275, 8
          %s277 = scalar_lea.vmem [#allocation2], %s276
          %s279 = ssub.s32 128, 128
          %280 = vsyncadd %s274, %s279
          %s281 = smul.addr %s27, 128
          %s282 = scalar_lea.hbm %s0, %s281
          %s284 = sshll.u32 %s277, 4
          %s285 = int_to_ptr.vmem [resolvable:$true] %s284
          %287 = dma.hbm_to_vmem [thread:$0]  %s282, 128, %s285, %s274
        $region28: #{bimodal_encoder_two.1} parent=23 // pred_fallthru
          _
        // Predicated region
        $region29: #{bimodal_encoder_two.1} parent=23 // pred_check
          %p288 = pneg %p73
        $region30: #{bimodal_encoder_two.1} parent=23 // pred_check_branch
          %290 = sbr.rel (%p288) target = $region32
        $region31: #{bimodal_encoder_two.1} parent=23 // pred_region
          %s291 = sand.u32 %s27, 1
          %s292 = scalar_lea.sflag [#allocation6], %s291
          %s293 = sand.u32 %s63, 1
          %s294 = smul.addr %s293, 16
          %s295 = scalar_lea.vmem [#allocation5], %s294
          %s297 = ssub.s32 256, 256
          %298 = vsyncadd %s292, %s297
          %s299 = smul.addr %s27, 2
          %s300 = smul.addr %s299, 128
          %s301 = scalar_lea.hbm %s1, %s300
          %s302 = sshll.u32 %s295, 4
          %s303 = int_to_ptr.vmem [resolvable:$true] %s302
          %308 = dma.hbm_to_vmem [thread:$0]  %s301, 256, %s303, %s292, 128, 128, 8
        $region32: #{bimodal_encoder_two.1} parent=23 // pred_fallthru
          _
        // Predicated region
        $region33: #{bimodal_encoder_two.1} parent=23 // pred_check
          %p309 = pneg %p99
        $region34: #{bimodal_encoder_two.1} parent=23 // pred_check_branch
          %311 = sbr.rel (%p309) target = $region36
        $region35: #{bimodal_encoder_two.1} parent=23 // pred_region
          %p312 = scmp.lt.s32.totalorder %s27, 1
          %s313 = scalar_select %p312, %s27, 1
          %s314 = scalar_lea.vmem %s2, %s313
        $region36: #{bimodal_encoder_two.1} parent=23 // pred_fallthru
          _
        // Predicated region
        $region37: #{bimodal_encoder_two.1} parent=23 // pred_check
          %p315 = pneg %p125
        $region38: #{bimodal_encoder_two.1} parent=23 // pred_check_branch
          %317 = sbr.rel (%p315) target = $region40
        $region39: #{bimodal_encoder_two.1} parent=23 // pred_region
          %p318 = scmp.lt.s32.totalorder %s27, 1
          %s319 = scalar_select %p318, %s27, 1
          %s320 = scalar_lea.vmem %s3, %s319
        $region40: #{bimodal_encoder_two.1} parent=23 // pred_fallthru
          _
      $region24: #{bimodal_encoder_two.1} parent=5 // pred_fallthru
        _
      %p321 = scmp.le.s32.totalorder 1, %s27
      %p322 = scmp.lt.s32.totalorder %s27, 3
      %p323 = pnand %p321, %p322
      %p324 = pneg %p323
      // Predicated region
      $region41: #{bimodal_encoder_two.1} parent=5 // pred_check
        _
      $region42: #{bimodal_encoder_two.1} parent=5 // pred_check_branch
        %326 = sbr.rel (%p323) target = $region44
      $region43: #{bimodal_encoder_two.1} parent=5 // pred_region
        %s327 = ssub.s32 %s27, 1
        %s328 = sand.u32 %s40, 1
        %s329 = scalar_lea.sflag [#allocation3], %s328
        %s330 = sand.u32 %s40, 1
        %s331 = smul.addr %s330, 8
        %s332 = scalar_lea.vmem [#allocation2], %s331
        // Predicated region
        $region45: #{bimodal_encoder_two.1} parent=43 // pred_check
          %p333 = pneg %p53
        $region46: #{bimodal_encoder_two.1} parent=43 // pred_check_branch
          %335 = sbr.rel (%p333) target = $region48
        $region47: #{bimodal_encoder_two.1} parent=43 // pred_region
          %336 = dma.done %s329, 128
        $region48: #{bimodal_encoder_two.1} parent=43 // pred_fallthru
          _
        %s337 = sand.u32 %s32, 1
        %s338 = scalar_lea.sflag [#allocation6], %s337
        %s339 = sand.u32 %s66, 1
        %s340 = smul.addr %s339, 16
        %s341 = scalar_lea.vmem [#allocation5], %s340
        // Predicated region
        $region49: #{bimodal_encoder_two.1} parent=43 // pred_check
          %p342 = pneg %p79
        $region50: #{bimodal_encoder_two.1} parent=43 // pred_check_branch
          %344 = sbr.rel (%p342) target = $region52
        $region51: #{bimodal_encoder_two.1} parent=43 // pred_region
          %345 = dma.done %s338, 256
        $region52: #{bimodal_encoder_two.1} parent=43 // pred_fallthru
          _
        // Predicated region
        $region53: #{bimodal_encoder_two.1} parent=43 // pred_check
          %p346 = pneg %p152
        $region54: #{bimodal_encoder_two.1} parent=43 // pred_check_branch
          %348 = sbr.rel (%p346) target = $region56
        $region55: #{bimodal_encoder_two.1} parent=43 // pred_region
          %349 = dma.done [#allocation6], 512
        $region56: #{bimodal_encoder_two.1} parent=43 // pred_fallthru
          _
        // Predicated region
        $region57: #{bimodal_encoder_two.1} parent=43 // pred_check
          %p350 = pneg %p173
        $region58: #{bimodal_encoder_two.1} parent=43 // pred_check_branch
          %352 = sbr.rel (%p350) target = $region60
        $region59: #{bimodal_encoder_two.1} parent=43 // pred_region
          %353 = dma.done [#allocation9], 4864
        $region60: #{bimodal_encoder_two.1} parent=43 // pred_fallthru
          _
        %s354 = sand.u32 %s40, 1
        %s355 = scalar_lea.sflag [#allocation3], %s354
        %s356 = sand.u32 %s40, 1
        %s357 = smul.addr %s356, 8
        %s358 = scalar_lea.vmem [#allocation2], %s357
        %p359 = pneg %p53
        %p360 = pneg %p50
        %s361 = sand.u32 %s32, 1
        %s362 = scalar_lea.sflag [#allocation6], %s361
        %s363 = sand.u32 %s66, 1
        %s364 = smul.addr %s363, 16
        %s365 = scalar_lea.vmem [#allocation5], %s364
        %p366 = pneg %p79
        %p367 = pneg %p76
        %p368 = scmp.lt.s32.totalorder %s32, 1
        %s369 = scalar_select %p368, %s32, 1
        %s370 = scalar_lea.vmem %s2, %s369
        %p371 = pneg %p105
        %p372 = pneg %p102
        %p373 = scmp.lt.s32.totalorder %s32, 1
        %s374 = scalar_select %p373, %s32, 1
        %s375 = scalar_lea.vmem %s3, %s374
        %p376 = pneg %p131
        %p377 = pneg %p128
        %p378 = pneg %p152
        %p379 = pneg %p149
        %p380 = pneg %p173
        %p381 = pneg %p170
        %p382 = pneg %p199
        %p383 = pneg %p196
        %s384 = sand.u32 %s186, 1
        %s385 = scalar_lea.sflag [#allocation4], %s384
        %s386 = sand.u32 %s186, 1
        %s387 = smul.addr %s386, 8
        %s388 = scalar_lea.vmem [#allocation10], %s387
        %p389 = pneg %p225
        %p390 = pneg %p222
        %s391 = sand.u32 %s212, 1
        %s392 = scalar_lea.sflag [#allocation12], %s391
        %s393 = sand.u32 %s212, 1
        %s394 = smul.addr %s393, 16
        %s395 = scalar_lea.vmem [#allocation11], %s394
        %p396 = scmp.lt.s32.totalorder %s32, 1
        %s397 = scalar_select %p396, %s32, 1
        %s398 = scalar_lea.vmem %s2, %s397
        %p399 = scmp.lt.s32.totalorder %s32, 1
        %s400 = scalar_select %p399, %s32, 1
        %s401 = scalar_lea.vmem %s3, %s400
        %v403 = vld [vmem:[%s332] sm:$0xff]
        %v404 = vld [vmem:[%s341] sm:$0xff]
        %v405 = vld [vmem:[%s341 + $0x8] sm:$0xff]
        %v406 = vld [vmem:[%s398] sm:$0x1]
        %vm407 = vcmp.eq.f32.partialorder %v406, 0.0
        %v408 = vsel %vm407, -1e+30, 0.0
        %v409 = vld [vmem:[%s401] sm:$0x1]
        %vm410 = vcmp.eq.f32.partialorder %v409, 0.0
        %v411 = vsel %vm410, -1e+30, 0.0
        %v412 = vld [vmem:[#allocation7] sm:$0x1]
        %v413 = vld [vmem:[#allocation7 + $0x1] sm:$0x1]
        %v414 = vld [vmem:[#allocation7 + $0x2] sm:$0x1]
        %v415 = vld [vmem:[#allocation7 + $0x3] sm:$0x1]
        %v416 = vld [vmem:[#allocation7 + $0x4] sm:$0x1]
        %v417 = vld [vmem:[#allocation7 + $0x5] sm:$0x1]
        %vm418 = vcmask 261120
        %v419 = vsel %vm418, %v403, 0.0
        %420 = vadd.xlane.f32.xlu0 %v419
        %v421 = vpop.xlane.xlu0 %420
        %v422 = vrcp.pop 32.0
        %v423 = vmul.f32 %v421, %v422
        %v424 = vsub.f32 %v403, %v423
        %v425 = vmul.f32 %v424, %v424
        %v426 = vsel %vm418, %v425, 0.0
        %427 = vadd.xlane.f32.xlu0 %v426
        %v428 = vpop.xlane.xlu0 %427
        %v429 = vmul.f32 %v428, %v422
        %v430 = vadd.f32 %v429, 1e-05
        %v431 = vrsqrt.pop %v430
        %v432 = vmul.f32 %v424, %v431
        %v433 = vlaneseq
        %v434 = vshrl.u32 %v433, 7
        %v435 = vsub.s32 0, %v434
        %v436 = vrot.slane %v412, %v435
        %v437 = vmul.f32 %v432, %v436
        %v438 = vlaneseq
        %v439 = vshrl.u32 %v438, 7
        %v440 = vsub.s32 0, %v439
        %v441 = vrot.slane %v413, %v440
        %v442 = vadd.f32 %v437, %v441
        %v443 = vpack.c.bf16 %v442, %v442
        %v444 = vld [vmem:[#allocation8] sm:$0xf]
        %v445 = vld [vmem:[#allocation8 + $0x4] sm:$0xf]
        %v446 = vld [vmem:[#allocation8 + $0x8] sm:$0xf]
        %v447 = vld [vmem:[#allocation8 + $0xc] sm:$0xf]
        %v452 = vunpack.c.l.b16 %v444
        %v453 = vunpack.c.l.b16 %v445
        %v454 = vunpack.c.l.b16 %v446
        %v455 = vunpack.c.l.b16 %v447
        %v456 = vpack.c.b16 %v453, %v452
        %v457 = vpack.c.b16 %v455, %v454
        %v461 = vsel %vm418, %v443, 0
        %463 = vmatprep.subr.bf16.mxu0 0
        %464 = vmatpush1.bf16.msra.mxu0 %v456
        %465 = vmatprep.subr.bf16.mxu0 0
        %466 = vmatpush1.bf16.msra.mxu0 %v457
        %467 = vmatprep.subr.bf16.mxu0 0
        %468 = vmatpush1.bf16.msra.mxu0 0
        %469 = vmatprep.subr.bf16.mxu0 0
        %470 = vmatpush1.bf16.msra.mxu0 0
        %471 = vmatprep.subr.bf16.mxu0 0
        %472 = vmatpush1.bf16.msra.mxu0 0
        %473 = vmatprep.subr.bf16.mxu0 0
        %474 = vmatpush1.bf16.msra.mxu0 0
        %475 = vmatprep.subr.bf16.mxu0 0
        %476 = vmatpush1.bf16.msra.mxu0 0
        %477 = vmatprep.subr.bf16.mxu0 0
        %478 = vmatpush1.bf16.msra.mxu0 0
        %479 = vmatprep.subr.bf16.mxu0 0
        %480 = vmatpush1.bf16.msra.mxu0 0
        %481 = vmatprep.subr.bf16.mxu0 0
        %482 = vmatpush1.bf16.msra.mxu0 0
        %483 = vmatprep.subr.bf16.mxu0 0
        %484 = vmatpush1.bf16.msra.mxu0 0
        %485 = vmatprep.subr.bf16.mxu0 0
        %486 = vmatpush1.bf16.msra.mxu0 0
        %487 = vmatprep.subr.bf16.mxu0 0
        %488 = vmatpush1.bf16.msra.mxu0 0
        %489 = vmatprep.subr.bf16.mxu0 0
        %490 = vmatpush1.bf16.msra.mxu0 0
        %491 = vmatprep.subr.bf16.mxu0 0
        %492 = vmatpush1.bf16.msra.mxu0 0
        %493 = vmatprep.subr.bf16.mxu0 0
        %494 = vmatpush1.bf16.msra.mxu0 0
        %495 = vmatprep.mubr.bf16.mxu0 0
        %496 = vmatmul.mubr.bf16.gmra.mrb[0].mxu0 %v461
        %v497 = vpop.f32.mrb[0].mxu0
        %v498 = vadd.f32 0.0, %v497
        %v499 = vpop.f32.mrb[0].mxu0
        %v500 = vpop.f32.mrb[0].mxu0
        %v501 = vpop.f32.mrb[0].mxu0
        %502 = vdwg.mxu0
        %v503 = vlaneseq
        %v504 = vshrl.u32 %v503, 7
        %v505 = vsub.s32 0, %v504
        %v506 = vrot.slane %v414, %v505
        %v507 = vadd.f32 %v498, %v506
        %v508 = vlaneseq
        %v509 = vshrl.u32 %v508, 7
        %v510 = vsub.s32 0, %v509
        %v511 = vrot.slane %v415, %v510
        %513 = vrot.lane.b32.xlu0 %v511, 32
        %v514 = vpop.permute.xlu0 %513
        %v516 = vadd.f32 %v498, %v514
        %v517 = vlaneseq
        %v518 = vshrl.u32 %v517, 7
        %v519 = vsub.s32 0, %v518
        %v520 = vrot.slane %v416, %v519
        %522 = vrot.lane.b32.xlu0 %v520, 64
        %v523 = vpop.permute.xlu0 %522
        %v525 = vadd.f32 %v498, %v523
        %v526 = vpack.c.bf16 %v507, %v507
        %v527 = vpack.c.bf16 %v516, %v516
        %v528 = vpack.c.bf16 %v525, %v525
        %v530 = vlaneseq
        %v531 = vshrl.u32 %v530, 7
        %v532 = vsub.s32 0, %v531
        %v533 = vrot.slane %v408, %v532
        %536 = vrot.lane.b32.xlu0 %v527, 96
        %v537 = vpop.permute.xlu0 %536
        %vm538 = vcmask 64512
        %v540 = vsel %vm538, %v526, 0
        %v543 = vsel %vm538, %v537, 0
        %545 = vmatprep.subr.bf16.mxu0 0
        %546 = vmatpush1.bf16.xpose.msra.mxu0 %v543
        %547 = vmatprep.subr.bf16.mxu0 0
        %548 = vmatpush1.bf16.xpose.msra.mxu0 0
        %549 = vmatprep.subr.bf16.mxu0 0
        %550 = vmatpush1.bf16.xpose.msra.mxu0 0
        %551 = vmatprep.subr.bf16.mxu0 0
        %552 = vmatpush1.bf16.xpose.msra.mxu0 0
        %553 = vmatprep.subr.bf16.mxu0 0
        %554 = vmatpush1.bf16.xpose.msra.mxu0 0
        %555 = vmatprep.subr.bf16.mxu0 0
        %556 = vmatpush1.bf16.xpose.msra.mxu0 0
        %557 = vmatprep.subr.bf16.mxu0 0
        %558 = vmatpush1.bf16.xpose.msra.mxu0 0
        %559 = vmatprep.subr.bf16.mxu0 0
        %560 = vmatpush1.bf16.xpose.msra.mxu0 0
        %561 = vmatprep.subr.bf16.mxu0 0
        %562 = vmatpush1.bf16.xpose.msra.mxu0 0
        %563 = vmatprep.subr.bf16.mxu0 0
        %564 = vmatpush1.bf16.xpose.msra.mxu0 0
        %565 = vmatprep.subr.bf16.mxu0 0
        %566 = vmatpush1.bf16.xpose.msra.mxu0 0
        %567 = vmatprep.subr.bf16.mxu0 0
        %568 = vmatpush1.bf16.xpose.msra.mxu0 0
        %569 = vmatprep.subr.bf16.mxu0 0
        %570 = vmatpush1.bf16.xpose.msra.mxu0 0
        %571 = vmatprep.subr.bf16.mxu0 0
        %572 = vmatpush1.bf16.xpose.msra.mxu0 0
        %573 = vmatprep.subr.bf16.mxu0 0
        %574 = vmatpush1.bf16.xpose.msra.mxu0 0
        %575 = vmatprep.subr.bf16.mxu0 0
        %576 = vmatpush1.bf16.xpose.msra.mxu0 0
        %577 = vmatprep.mubr.bf16.mxu0 0
        %578 = vmatmul.mubr.bf16.gmra.mrb[0].mxu0 %v540
        %v579 = vpop.f32.mrb[0].mxu0
        %v580 = vadd.f32 %v533, %v579
        %v581 = vpop.f32.mrb[0].mxu0
        %v582 = vpop.f32.mrb[0].mxu0
        %v583 = vpop.f32.mrb[0].mxu0
        %584 = vdwg.mxu0
        %v585 = vsel %vm538, %v580, -inf
        %586 = vmax.xlane.f32.xlu0 %v585
        %v587 = vpop.xlane.xlu0 %586
        %v588 = vsub.f32 %v580, %v587
        %v589 = vmul.f32 %v588, 1.442695
        %v590 = vpow.pop %v589
        %v591 = vsel %vm538, %v590, 0.0
        %592 = vadd.xlane.f32.xlu0 %v591
        %v593 = vpop.xlane.xlu0 %592
        %v594 = vrcp.pop %v593
        %v595 = vmul.f32 %v590, %v594
        %v596 = vpack.c.bf16 %v595, %v595
        %598 = vrot.lane.b32.xlu0 %v528, 64
        %v599 = vpop.permute.xlu0 %598
        %v601 = vsel %vm538, %v596, 0
        %vm603 = vcmask 1043456
        %v605 = vsel %vm603, %v599, 0
        %607 = vmatprep.subr.bf16.mxu0 0
        %608 = vmatpush1.bf16.msra.mxu0 %v605
        %609 = vmatprep.subr.bf16.mxu0 0
        %610 = vmatpush1.bf16.msra.mxu0 0
        %611 = vmatprep.subr.bf16.mxu0 0
        %612 = vmatpush1.bf16.msra.mxu0 0
        %613 = vmatprep.subr.bf16.mxu0 0
        %614 = vmatpush1.bf16.msra.mxu0 0
        %615 = vmatprep.subr.bf16.mxu0 0
        %616 = vmatpush1.bf16.msra.mxu0 0
        %617 = vmatprep.subr.bf16.mxu0 0
        %618 = vmatpush1.bf16.msra.mxu0 0
        %619 = vmatprep.subr.bf16.mxu0 0
        %620 = vmatpush1.bf16.msra.mxu0 0
        %621 = vmatprep.subr.bf16.mxu0 0
        %622 = vmatpush1.bf16.msra.mxu0 0
        %623 = vmatprep.subr.bf16.mxu0 0
        %624 = vmatpush1.bf16.msra.mxu0 0
        %625 = vmatprep.subr.bf16.mxu0 0
        %626 = vmatpush1.bf16.msra.mxu0 0
        %627 = vmatprep.subr.bf16.mxu0 0
        %628 = vmatpush1.bf16.msra.mxu0 0
        %629 = vmatprep.subr.bf16.mxu0 0
        %630 = vmatpush1.bf16.msra.mxu0 0
        %631 = vmatprep.subr.bf16.mxu0 0
        %632 = vmatpush1.bf16.msra.mxu0 0
        %633 = vmatprep.subr.bf16.mxu0 0
        %634 = vmatpush1.bf16.msra.mxu0 0
        %635 = vmatprep.subr.bf16.mxu0 0
        %636 = vmatpush1.bf16.msra.mxu0 0
        %637 = vmatprep.subr.bf16.mxu0 0
        %638 = vmatpush1.bf16.msra.mxu0 0
        %639 = vmatprep.mubr.bf16.mxu0 0
        %640 = vmatmul.mubr.bf16.gmra.mrb[0].mxu0 %v601
        %v641 = vpop.f32.mrb[0].mxu0
        %v642 = vadd.f32 0.0, %v641
        %v643 = vpop.f32.mrb[0].mxu0
        %v644 = vpop.f32.mrb[0].mxu0
        %v645 = vpop.f32.mrb[0].mxu0
        %646 = vdwg.mxu0
        %648 = vrot.lane.b32.xlu0 %v526, 120
        %v649 = vpop.permute.xlu0 %648
        %650 = vrot.lane.b32.xlu0 %v527, 88
        %v651 = vpop.permute.xlu0 %650
        %v653 = vsel %vm538, %v649, 0
        %v656 = vsel %vm538, %v651, 0
        %658 = vmatprep.subr.bf16.mxu0 0
        %659 = vmatpush1.bf16.xpose.msra.mxu0 %v656
        %660 = vmatprep.subr.bf16.mxu0 0
        %661 = vmatpush1.bf16.xpose.msra.mxu0 0
        %662 = vmatprep.subr.bf16.mxu0 0
        %663 = vmatpush1.bf16.xpose.msra.mxu0 0
        %664 = vmatprep.subr.bf16.mxu0 0
        %665 = vmatpush1.bf16.xpose.msra.mxu0 0
        %666 = vmatprep.subr.bf16.mxu0 0
        %667 = vmatpush1.bf16.xpose.msra.mxu0 0
        %668 = vmatprep.subr.bf16.mxu0 0
        %669 = vmatpush1.bf16.xpose.msra.mxu0 0
        %670 = vmatprep.subr.bf16.mxu0 0
        %671 = vmatpush1.bf16.xpose.msra.mxu0 0
        %672 = vmatprep.subr.bf16.mxu0 0
        %673 = vmatpush1.bf16.xpose.msra.mxu0 0
        %674 = vmatprep.subr.bf16.mxu0 0
        %675 = vmatpush1.bf16.xpose.msra.mxu0 0
        %676 = vmatprep.subr.bf16.mxu0 0
        %677 = vmatpush1.bf16.xpose.msra.mxu0 0
        %678 = vmatprep.subr.bf16.mxu0 0
        %679 = vmatpush1.bf16.xpose.msra.mxu0 0
        %680 = vmatprep.subr.bf16.mxu0 0
        %681 = vmatpush1.bf16.xpose.msra.mxu0 0
        %682 = vmatprep.subr.bf16.mxu0 0
        %683 = vmatpush1.bf16.xpose.msra.mxu0 0
        %684 = vmatprep.subr.bf16.mxu0 0
        %685 = vmatpush1.bf16.xpose.msra.mxu0 0
        %686 = vmatprep.subr.bf16.mxu0 0
        %687 = vmatpush1.bf16.xpose.msra.mxu0 0
        %688 = vmatprep.subr.bf16.mxu0 0
        %689 = vmatpush1.bf16.xpose.msra.mxu0 0
        %690 = vmatprep.mubr.bf16.mxu0 0
        %691 = vmatmul.mubr.bf16.gmra.mrb[0].mxu0 %v653
        %v692 = vpop.f32.mrb[0].mxu0
        %v693 = vadd.f32 %v533, %v692
        %v694 = vpop.f32.mrb[0].mxu0
        %v695 = vpop.f32.mrb[0].mxu0
        %v696 = vpop.f32.mrb[0].mxu0
        %697 = vdwg.mxu0
        %v698 = vsel %vm538, %v693, -inf
        %699 = vmax.xlane.f32.xlu0 %v698
        %v700 = vpop.xlane.xlu0 %699
        %v701 = vsub.f32 %v693, %v700
        %v702 = vmul.f32 %v701, 1.442695
        %v703 = vpow.pop %v702
        %v704 = vsel %vm538, %v703, 0.0
        %705 = vadd.xlane.f32.xlu0 %v704
        %v706 = vpop.xlane.xlu0 %705
        %v707 = vrcp.pop %v706
        %v708 = vmul.f32 %v703, %v707
        %v709 = vpack.c.bf16 %v708, %v708
        %710 = vrot.lane.b32.xlu0 %v528, 56
        %v711 = vpop.permute.xlu0 %710
        %v713 = vsel %vm538, %v709, 0
        %v716 = vsel %vm603, %v711, 0
        %718 = vmatprep.subr.bf16.mxu0 0
        %719 = vmatpush1.bf16.msra.mxu0 %v716
        %720 = vmatprep.subr.bf16.mxu0 0
        %721 = vmatpush1.bf16.msra.mxu0 0
        %722 = vmatprep.subr.bf16.mxu0 0
        %723 = vmatpush1.bf16.msra.mxu0 0
        %724 = vmatprep.subr.bf16.mxu0 0
        %725 = vmatpush1.bf16.msra.mxu0 0
        %726 = vmatprep.subr.bf16.mxu0 0
        %727 = vmatpush1.bf16.msra.mxu0 0
        %728 = vmatprep.subr.bf16.mxu0 0
        %729 = vmatpush1.bf16.msra.mxu0 0
        %730 = vmatprep.subr.bf16.mxu0 0
        %731 = vmatpush1.bf16.msra.mxu0 0
        %732 = vmatprep.subr.bf16.mxu0 0
        %733 = vmatpush1.bf16.msra.mxu0 0
        %734 = vmatprep.subr.bf16.mxu0 0
        %735 = vmatpush1.bf16.msra.mxu0 0
        %736 = vmatprep.subr.bf16.mxu0 0
        %737 = vmatpush1.bf16.msra.mxu0 0
        %738 = vmatprep.subr.bf16.mxu0 0
        %739 = vmatpush1.bf16.msra.mxu0 0
        %740 = vmatprep.subr.bf16.mxu0 0
        %741 = vmatpush1.bf16.msra.mxu0 0
        %742 = vmatprep.subr.bf16.mxu0 0
        %743 = vmatpush1.bf16.msra.mxu0 0
        %744 = vmatprep.subr.bf16.mxu0 0
        %745 = vmatpush1.bf16.msra.mxu0 0
        %746 = vmatprep.subr.bf16.mxu0 0
        %747 = vmatpush1.bf16.msra.mxu0 0
        %748 = vmatprep.subr.bf16.mxu0 0
        %749 = vmatpush1.bf16.msra.mxu0 0
        %750 = vmatprep.mubr.bf16.mxu0 0
        %751 = vmatmul.mubr.bf16.gmra.mrb[0].mxu0 %v713
        %v752 = vpop.f32.mrb[0].mxu0
        %v753 = vadd.f32 0.0, %v752
        %v754 = vpop.f32.mrb[0].mxu0
        %v755 = vpop.f32.mrb[0].mxu0
        %v756 = vpop.f32.mrb[0].mxu0
        %757 = vdwg.mxu0
        %758 = vrot.lane.b32.xlu0 %v526, 112
        %v759 = vpop.permute.xlu0 %758
        %760 = vrot.lane.b32.xlu0 %v527, 80
        %v761 = vpop.permute.xlu0 %760
        %v763 = vsel %vm538, %v759, 0
        %v766 = vsel %vm538, %v761, 0
        %768 = vmatprep.subr.bf16.mxu0 0
        %769 = vmatpush1.bf16.xpose.msra.mxu0 %v766
        %770 = vmatprep.subr.bf16.mxu0 0
        %771 = vmatpush1.bf16.xpose.msra.mxu0 0
        %772 = vmatprep.subr.bf16.mxu0 0
        %773 = vmatpush1.bf16.xpose.msra.mxu0 0
        %774 = vmatprep.subr.bf16.mxu0 0
        %775 = vmatpush1.bf16.xpose.msra.mxu0 0
        %776 = vmatprep.subr.bf16.mxu0 0
        %777 = vmatpush1.bf16.xpose.msra.mxu0 0
        %778 = vmatprep.subr.bf16.mxu0 0
        %779 = vmatpush1.bf16.xpose.msra.mxu0 0
        %780 = vmatprep.subr.bf16.mxu0 0
        %781 = vmatpush1.bf16.xpose.msra.mxu0 0
        %782 = vmatprep.subr.bf16.mxu0 0
        %783 = vmatpush1.bf16.xpose.msra.mxu0 0
        %784 = vmatprep.subr.bf16.mxu0 0
        %785 = vmatpush1.bf16.xpose.msra.mxu0 0
        %786 = vmatprep.subr.bf16.mxu0 0
        %787 = vmatpush1.bf16.xpose.msra.mxu0 0
        %788 = vmatprep.subr.bf16.mxu0 0
        %789 = vmatpush1.bf16.xpose.msra.mxu0 0
        %790 = vmatprep.subr.bf16.mxu0 0
        %791 = vmatpush1.bf16.xpose.msra.mxu0 0
        %792 = vmatprep.subr.bf16.mxu0 0
        %793 = vmatpush1.bf16.xpose.msra.mxu0 0
        %794 = vmatprep.subr.bf16.mxu0 0
        %795 = vmatpush1.bf16.xpose.msra.mxu0 0
        %796 = vmatprep.subr.bf16.mxu0 0
        %797 = vmatpush1.bf16.xpose.msra.mxu0 0
        %798 = vmatprep.subr.bf16.mxu0 0
        %799 = vmatpush1.bf16.xpose.msra.mxu0 0
        %800 = vmatprep.mubr.bf16.mxu0 0
        %801 = vmatmul.mubr.bf16.gmra.mrb[0].mxu0 %v763
        %v802 = vpop.f32.mrb[0].mxu0
        %v803 = vadd.f32 %v533, %v802
        %v804 = vpop.f32.mrb[0].mxu0
        %v805 = vpop.f32.mrb[0].mxu0
        %v806 = vpop.f32.mrb[0].mxu0
        %807 = vdwg.mxu0
        %v808 = vsel %vm538, %v803, -inf
        %809 = vmax.xlane.f32.xlu0 %v808
        %v810 = vpop.xlane.xlu0 %809
        %v811 = vsub.f32 %v803, %v810
        %v812 = vmul.f32 %v811, 1.442695
        %v813 = vpow.pop %v812
        %v814 = vsel %vm538, %v813, 0.0
        %815 = vadd.xlane.f32.xlu0 %v814
        %v816 = vpop.xlane.xlu0 %815
        %v817 = vrcp.pop %v816
        %v818 = vmul.f32 %v813, %v817
        %v819 = vpack.c.bf16 %v818, %v818
        %820 = vrot.lane.b32.xlu0 %v528, 48
        %v821 = vpop.permute.xlu0 %820
        %v823 = vsel %vm538, %v819, 0
        %v826 = vsel %vm603, %v821, 0
        %828 = vmatprep.subr.bf16.mxu0 0
        %829 = vmatpush1.bf16.msra.mxu0 %v826
        %830 = vmatprep.subr.bf16.mxu0 0
        %831 = vmatpush1.bf16.msra.mxu0 0
        %832 = vmatprep.subr.bf16.mxu0 0
        %833 = vmatpush1.bf16.msra.mxu0 0
        %834 = vmatprep.subr.bf16.mxu0 0
        %835 = vmatpush1.bf16.msra.mxu0 0
        %836 = vmatprep.subr.bf16.mxu0 0
        %837 = vmatpush1.bf16.msra.mxu0 0
        %838 = vmatprep.subr.bf16.mxu0 0
        %839 = vmatpush1.bf16.msra.mxu0 0
        %840 = vmatprep.subr.bf16.mxu0 0
        %841 = vmatpush1.bf16.msra.mxu0 0
        %842 = vmatprep.subr.bf16.mxu0 0
        %843 = vmatpush1.bf16.msra.mxu0 0
        %844 = vmatprep.subr.bf16.mxu0 0
        %845 = vmatpush1.bf16.msra.mxu0 0
        %846 = vmatprep.subr.bf16.mxu0 0
        %847 = vmatpush1.bf16.msra.mxu0 0
        %848 = vmatprep.subr.bf16.mxu0 0
        %849 = vmatpush1.bf16.msra.mxu0 0
        %850 = vmatprep.subr.bf16.mxu0 0
        %851 = vmatpush1.bf16.msra.mxu0 0
        %852 = vmatprep.subr.bf16.mxu0 0
        %853 = vmatpush1.bf16.msra.mxu0 0
        %854 = vmatprep.subr.bf16.mxu0 0
        %855 = vmatpush1.bf16.msra.mxu0 0
        %856 = vmatprep.subr.bf16.mxu0 0
        %857 = vmatpush1.bf16.msra.mxu0 0
        %858 = vmatprep.subr.bf16.mxu0 0
        %859 = vmatpush1.bf16.msra.mxu0 0
        %860 = vmatprep.mubr.bf16.mxu0 0
        %861 = vmatmul.mubr.bf16.gmra.mrb[0].mxu0 %v823
        %v862 = vpop.f32.mrb[0].mxu0
        %v863 = vadd.f32 0.0, %v862
        %v864 = vpop.f32.mrb[0].mxu0
        %v865 = vpop.f32.mrb[0].mxu0
        %v866 = vpop.f32.mrb[0].mxu0
        %867 = vdwg.mxu0
        %868 = vrot.lane.b32.xlu0 %v526, 104
        %v869 = vpop.permute.xlu0 %868
        %870 = vrot.lane.b32.xlu0 %v527, 72
        %v871 = vpop.permute.xlu0 %870
        %v873 = vsel %vm538, %v869, 0
        %v876 = vsel %vm538, %v871, 0
        %878 = vmatprep.subr.bf16.mxu0 0
        %879 = vmatpush1.bf16.xpose.msra.mxu0 %v876
        %880 = vmatprep.subr.bf16.mxu0 0
        %881 = vmatpush1.bf16.xpose.msra.mxu0 0
        %882 = vmatprep.subr.bf16.mxu0 0
        %883 = vmatpush1.bf16.xpose.msra.mxu0 0
        %884 = vmatprep.subr.bf16.mxu0 0
        %885 = vmatpush1.bf16.xpose.msra.mxu0 0
        %886 = vmatprep.subr.bf16.mxu0 0
        %887 = vmatpush1.bf16.xpose.msra.mxu0 0
        %888 = vmatprep.subr.bf16.mxu0 0
        %889 = vmatpush1.bf16.xpose.msra.mxu0 0
        %890 = vmatprep.subr.bf16.mxu0 0
        %891 = vmatpush1.bf16.xpose.msra.mxu0 0
        %892 = vmatprep.subr.bf16.mxu0 0
        %893 = vmatpush1.bf16.xpose.msra.mxu0 0
        %894 = vmatprep.subr.bf16.mxu0 0
        %895 = vmatpush1.bf16.xpose.msra.mxu0 0
        %896 = vmatprep.subr.bf16.mxu0 0
        %897 = vmatpush1.bf16.xpose.msra.mxu0 0
        %898 = vmatprep.subr.bf16.mxu0 0
        %899 = vmatpush1.bf16.xpose.msra.mxu0 0
        %900 = vmatprep.subr.bf16.mxu0 0
        %901 = vmatpush1.bf16.xpose.msra.mxu0 0
        %902 = vmatprep.subr.bf16.mxu0 0
        %903 = vmatpush1.bf16.xpose.msra.mxu0 0
        %904 = vmatprep.subr.bf16.mxu0 0
        %905 = vmatpush1.bf16.xpose.msra.mxu0 0
        %906 = vmatprep.subr.bf16.mxu0 0
        %907 = vmatpush1.bf16.xpose.msra.mxu0 0
        %908 = vmatprep.subr.bf16.mxu0 0
        %909 = vmatpush1.bf16.xpose.msra.mxu0 0
        %910 = vmatprep.mubr.bf16.mxu0 0
        %911 = vmatmul.mubr.bf16.gmra.mrb[0].mxu0 %v873
        %v912 = vpop.f32.mrb[0].mxu0
        %v913 = vadd.f32 %v533, %v912
        %v914 = vpop.f32.mrb[0].mxu0
        %v915 = vpop.f32.mrb[0].mxu0
        %v916 = vpop.f32.mrb[0].mxu0
        %917 = vdwg.mxu0
        %v918 = vsel %vm538, %v913, -inf
        %919 = vmax.xlane.f32.xlu0 %v918
        %v920 = vpop.xlane.xlu0 %919
        %v921 = vsub.f32 %v913, %v920
        %v922 = vmul.f32 %v921, 1.442695
        %v923 = vpow.pop %v922
        %v924 = vsel %vm538, %v923, 0.0
        %925 = vadd.xlane.f32.xlu0 %v924
        %v926 = vpop.xlane.xlu0 %925
        %v927 = vrcp.pop %v926
        %v928 = vmul.f32 %v923, %v927
        %v929 = vpack.c.bf16 %v928, %v928
        %930 = vrot.lane.b32.xlu0 %v528, 40
        %v931 = vpop.permute.xlu0 %930
        %v933 = vsel %vm538, %v929, 0
        %v936 = vsel %vm603, %v931, 0
        %938 = vmatprep.subr.bf16.mxu0 0
        %939 = vmatpush1.bf16.msra.mxu0 %v936
        %940 = vmatprep.subr.bf16.mxu0 0
        %941 = vmatpush1.bf16.msra.mxu0 0
        %942 = vmatprep.subr.bf16.mxu0 0
        %943 = vmatpush1.bf16.msra.mxu0 0
        %944 = vmatprep.subr.bf16.mxu0 0
        %945 = vmatpush1.bf16.msra.mxu0 0
        %946 = vmatprep.subr.bf16.mxu0 0
        %947 = vmatpush1.bf16.msra.mxu0 0
        %948 = vmatprep.subr.bf16.mxu0 0
        %949 = vmatpush1.bf16.msra.mxu0 0
        %950 = vmatprep.subr.bf16.mxu0 0
        %951 = vmatpush1.bf16.msra.mxu0 0
        %952 = vmatprep.subr.bf16.mxu0 0
        %953 = vmatpush1.bf16.msra.mxu0 0
        %954 = vmatprep.subr.bf16.mxu0 0
        %955 = vmatpush1.bf16.msra.mxu0 0
        %956 = vmatprep.subr.bf16.mxu0 0
        %957 = vmatpush1.bf16.msra.mxu0 0
        %958 = vmatprep.subr.bf16.mxu0 0
        %959 = vmatpush1.bf16.msra.mxu0 0
        %960 = vmatprep.subr.bf16.mxu0 0
        %961 = vmatpush1.bf16.msra.mxu0 0
        %962 = vmatprep.subr.bf16.mxu0 0
        %963 = vmatpush1.bf16.msra.mxu0 0
        %964 = vmatprep.subr.bf16.mxu0 0
        %965 = vmatpush1.bf16.msra.mxu0 0
        %966 = vmatprep.subr.bf16.mxu0 0
        %967 = vmatpush1.bf16.msra.mxu0 0
        %968 = vmatprep.subr.bf16.mxu0 0
        %969 = vmatpush1.bf16.msra.mxu0 0
        %970 = vmatprep.mubr.bf16.mxu0 0
        %971 = vmatmul.mubr.bf16.gmra.mrb[0].mxu0 %v933
        %v972 = vpop.f32.mrb[0].mxu0
        %v973 = vadd.f32 0.0, %v972
        %v974 = vpop.f32.mrb[0].mxu0
        %v975 = vpop.f32.mrb[0].mxu0
        %v976 = vpop.f32.mrb[0].mxu0
        %977 = vdwg.mxu0
        %979 = vrot.lane.b32.xlu0 %v753, 8
        %v980 = vpop.permute.xlu0 %979
        %983 = vrot.lane.b32.xlu0 %v863, 16
        %v984 = vpop.permute.xlu0 %983
        %987 = vrot.lane.b32.xlu0 %v973, 24
        %v988 = vpop.permute.xlu0 %987
        %v990 = vsel %vm538, %v642, %v980
        %vm991 = vcmask 130048
        %v992 = vsel %vm991, %v990, %v984
        %vm993 = vcmask 195584
        %v994 = vsel %vm993, %v992, %v988
        %v995 = vpack.c.bf16 %v994, %v994
        %v996 = vld [vmem:[#allocation8 + $0x10] sm:$0xf]
        %v997 = vld [vmem:[#allocation8 + $0x14] sm:$0xf]
        %v998 = vld [vmem:[#allocation8 + $0x18] sm:$0xf]
        %v999 = vld [vmem:[#allocation8 + $0x1c] sm:$0xf]
        %v1004 = vunpack.c.l.b16 %v996
        %v1005 = vunpack.c.l.b16 %v997
        %v1006 = vunpack.c.l.b16 %v998
        %v1007 = vunpack.c.l.b16 %v999
        %v1008 = vpack.c.b16 %v1005, %v1004
        %v1009 = vpack.c.b16 %v1007, %v1006
        %v1013 = vsel %vm418, %v995, 0
        %1015 = vmatprep.subr.bf16.mxu0 0
        %1016 = vmatpush1.bf16.msra.mxu0 %v1008
        %1017 = vmatprep.subr.bf16.mxu0 0
        %1018 = vmatpush1.bf16.msra.mxu0 %v1009
        %1019 = vmatprep.subr.bf16.mxu0 0
        %1020 = vmatpush1.bf16.msra.mxu0 0
        %1021 = vmatprep.subr.bf16.mxu0 0
        %1022 = vmatpush1.bf16.msra.mxu0 0
        %1023 = vmatprep.subr.bf16.mxu0 0
        %1024 = vmatpush1.bf16.msra.mxu0 0
        %1025 = vmatprep.subr.bf16.mxu0 0
        %1026 = vmatpush1.bf16.msra.mxu0 0
        %1027 = vmatprep.subr.bf16.mxu0 0
        %1028 = vmatpush1.bf16.msra.mxu0 0
        %1029 = vmatprep.subr.bf16.mxu0 0
        %1030 = vmatpush1.bf16.msra.mxu0 0
        %1031 = vmatprep.subr.bf16.mxu0 0
        %1032 = vmatpush1.bf16.msra.mxu0 0
        %1033 = vmatprep.subr.bf16.mxu0 0
        %1034 = vmatpush1.bf16.msra.mxu0 0
        %1035 = vmatprep.subr.bf16.mxu0 0
        %1036 = vmatpush1.bf16.msra.mxu0 0
        %1037 = vmatprep.subr.bf16.mxu0 0
        %1038 = vmatpush1.bf16.msra.mxu0 0
        %1039 = vmatprep.subr.bf16.mxu0 0
        %1040 = vmatpush1.bf16.msra.mxu0 0
        %1041 = vmatprep.subr.bf16.mxu0 0
        %1042 = vmatpush1.bf16.msra.mxu0 0
        %1043 = vmatprep.subr.bf16.mxu0 0
        %1044 = vmatpush1.bf16.msra.mxu0 0
        %1045 = vmatprep.subr.bf16.mxu0 0
        %1046 = vmatpush1.bf16.msra.mxu0 0
        %1047 = vmatprep.mubr.bf16.mxu0 0
        %1048 = vmatmul.mubr.bf16.gmra.mrb[0].mxu0 %v1013
        %v1049 = vpop.f32.mrb[0].mxu0
        %v1050 = vadd.f32 0.0, %v1049
        %v1051 = vpop.f32.mrb[0].mxu0
        %v1052 = vpop.f32.mrb[0].mxu0
        %v1053 = vpop.f32.mrb[0].mxu0
        %1054 = vdwg.mxu0
        %v1055 = vadd.f32 %v403, %v1050
        %v1056 = vlaneseq
        %v1057 = vshrl.u32 %v1056, 7
        %v1058 = vsub.s32 0, %v1057
        %v1059 = vrot.slane %v417, %v1058
        %v1060 = vadd.f32 %v1055, %v1059
        %v1061 = vld [vmem:[#allocation7 + $0x6] sm:$0x1]
        %v1062 = vld [vmem:[#allocation7 + $0x7] sm:$0x1]
        %v1063 = vld [vmem:[#allocation7 + $0x8] sm:$0x1]
        %v1064 = vld [vmem:[#allocation7 + $0x9] sm:$0x1]
        %v1065 = vld [vmem:[#allocation7 + $0xa] sm:$0x1]
        %v1066 = vld [vmem:[#allocation7 + $0xb] sm:$0x1]
        %vm1067 = vcmask 392192
        %v1068 = vsel %vm1067, %v404, 0.0
        %1069 = vadd.xlane.f32.xlu0 %v1068
        %v1070 = vpop.xlane.xlu0 %1069
        %v1071 = vsel %vm1067, %v405, 0.0
        %1072 = vadd.xlane.f32.xlu0 %v1071
        %v1073 = vpop.xlane.xlu0 %1072
        %v1074 = vrcp.pop 48.0
        %v1075 = vmul.f32 %v1070, %v1074
        %v1076 = vmul.f32 %v1073, %v1074
        %v1077 = vsub.f32 %v404, %v1075
        %v1078 = vsub.f32 %v405, %v1076
        %v1079 = vmul.f32 %v1077, %v1077
        %v1080 = vmul.f32 %v1078, %v1078
        %v1081 = vsel %vm1067, %v1079, 0.0
        %1082 = vadd.xlane.f32.xlu0 %v1081
        %v1083 = vpop.xlane.xlu0 %1082
        %v1084 = vsel %vm1067, %v1080, 0.0
        %1085 = vadd.xlane.f32.xlu0 %v1084
        %v1086 = vpop.xlane.xlu0 %1085
        %v1087 = vmul.f32 %v1083, %v1074
        %v1088 = vmul.f32 %v1086, %v1074
        %v1089 = vadd.f32 %v1087, 1e-05
        %v1090 = vadd.f32 %v1088, 1e-05
        %v1091 = vrsqrt.pop %v1089
        %v1092 = vrsqrt.pop %v1090
        %v1093 = vmul.f32 %v1077, %v1091
        %v1094 = vmul.f32 %v1078, %v1092
        %v1095 = vlaneseq
        %v1096 = vshrl.u32 %v1095, 7
        %v1097 = vsub.s32 0, %v1096
        %v1098 = vrot.slane %v1061, %v1097
        %v1099 = vmul.f32 %v1093, %v1098
        %v1100 = vmul.f32 %v1094, %v1098
        %v1101 = vlaneseq
        %v1102 = vshrl.u32 %v1101, 7
        %v1103 = vsub.s32 0, %v1102
        %v1104 = vrot.slane %v1062, %v1103
        %v1105 = vadd.f32 %v1099, %v1104
        %v1106 = vadd.f32 %v1100, %v1104
        %v1107 = vpack.c.bf16 %v1106, %v1105
        %v1108 = vld [vmem:[#allocation8 + $0x20] sm:$0xf]
        %v1109 = vld [vmem:[#allocation8 + $0x24] sm:$0xf]
        %v1110 = vld [vmem:[#allocation8 + $0x28] sm:$0xf]
        %v1111 = vld [vmem:[#allocation8 + $0x2c] sm:$0xf]
        %v1112 = vld [vmem:[#allocation8 + $0x30] sm:$0xf]
        %v1113 = vld [vmem:[#allocation8 + $0x34] sm:$0xf]
        %v1120 = vunpack.c.l.b16 %v1108
        %v1121 = vunpack.c.l.b16 %v1109
        %v1122 = vunpack.c.l.b16 %v1110
        %v1123 = vunpack.c.l.b16 %v1111
        %v1124 = vunpack.c.l.b16 %v1112
        %v1125 = vunpack.c.l.b16 %v1113
        %v1126 = vpack.c.b16 %v1121, %v1120
        %v1127 = vpack.c.b16 %v1123, %v1122
        %v1128 = vpack.c.b16 %v1125, %v1124
        %v1133 = vsel %vm1067, %v1107, 0
        %1135 = vmatprep.subr.bf16.mxu0 0
        %1136 = vmatpush1.bf16.msra.mxu0 %v1126
        %1137 = vmatprep.subr.bf16.mxu0 0
        %1138 = vmatpush1.bf16.msra.mxu0 %v1127
        %1139 = vmatprep.subr.bf16.mxu0 0
        %1140 = vmatpush1.bf16.msra.mxu0 %v1128
        %1141 = vmatprep.subr.bf16.mxu0 0
        %1142 = vmatpush1.bf16.msra.mxu0 0
        %1143 = vmatprep.subr.bf16.mxu0 0
        %1144 = vmatpush1.bf16.msra.mxu0 0
        %1145 = vmatprep.subr.bf16.mxu0 0
        %1146 = vmatpush1.bf16.msra.mxu0 0
        %1147 = vmatprep.subr.bf16.mxu0 0
        %1148 = vmatpush1.bf16.msra.mxu0 0
        %1149 = vmatprep.subr.bf16.mxu0 0
        %1150 = vmatpush1.bf16.msra.mxu0 0
        %1151 = vmatprep.subr.bf16.mxu0 0
        %1152 = vmatpush1.bf16.msra.mxu0 0
        %1153 = vmatprep.subr.bf16.mxu0 0
        %1154 = vmatpush1.bf16.msra.mxu0 0
        %1155 = vmatprep.subr.bf16.mxu0 0
        %1156 = vmatpush1.bf16.msra.mxu0 0
        %1157 = vmatprep.subr.bf16.mxu0 0
        %1158 = vmatpush1.bf16.msra.mxu0 0
        %1159 = vmatprep.subr.bf16.mxu0 0
        %1160 = vmatpush1.bf16.msra.mxu0 0
        %1161 = vmatprep.subr.bf16.mxu0 0
        %1162 = vmatpush1.bf16.msra.mxu0 0
        %1163 = vmatprep.subr.bf16.mxu0 0
        %1164 = vmatpush1.bf16.msra.mxu0 0
        %1165 = vmatprep.subr.bf16.mxu0 0
        %1166 = vmatpush1.bf16.msra.mxu0 0
        %1167 = vmatprep.mubr.bf16.mxu0 0
        %1168 = vmatmul.mubr.bf16.gmra.mrb[0].mxu0 %v1133
        %v1169 = vpop.f32.mrb[0].mxu0
        %v1170 = vadd.f32 0.0, %v1169
        %v1171 = vpop.f32.mrb[0].mxu0
        %v1172 = vpop.f32.mrb[0].mxu0
        %v1173 = vadd.f32 0.0, %v1172
        %v1174 = vpop.f32.mrb[0].mxu0
        %1175 = vdwg.mxu0
        %v1176 = vlaneseq
        %v1177 = vshrl.u32 %v1176, 7
        %v1178 = vsub.s32 0, %v1177
        %v1179 = vrot.slane %v1063, %v1178
        %v1180 = vadd.f32 %v1170, %v1179
        %v1181 = vadd.f32 %v1173, %v1179
        %v1182 = vlaneseq
        %v1183 = vshrl.u32 %v1182, 7
        %v1184 = vsub.s32 0, %v1183
        %v1185 = vrot.slane %v1064, %v1184
        %1187 = vrot.lane.b32.xlu0 %v1185, 32
        %v1188 = vpop.permute.xlu0 %1187
        %v1190 = vadd.f32 %v1170, %v1188
        %v1191 = vadd.f32 %v1173, %v1188
        %v1192 = vlaneseq
        %v1193 = vshrl.u32 %v1192, 7
        %v1194 = vsub.s32 0, %v1193
        %v1195 = vrot.slane %v1065, %v1194
        %1197 = vrot.lane.b32.xlu0 %v1195, 64
        %v1198 = vpop.permute.xlu0 %1197
        %v1200 = vadd.f32 %v1170, %v1198
        %v1201 = vadd.f32 %v1173, %v1198
        %v1202 = vpack.c.bf16 %v1181, %v1180
        %v1203 = vpack.c.bf16 %v1191, %v1190
        %v1204 = vpack.c.bf16 %v1201, %v1200
        %v1206 = vlaneseq
        %v1207 = vshrl.u32 %v1206, 7
        %v1208 = vsub.s32 0, %v1207
        %v1209 = vrot.slane %v411, %v1208
        %1212 = vrot.lane.b32.xlu0 %v1203, 96
        %v1213 = vpop.permute.xlu0 %1212
        %v1215 = vsel %vm538, %v1202, 0
        %v1218 = vsel %vm538, %v1213, 0
        %1220 = vmatprep.subr.bf16.mxu0 0
        %1221 = vmatpush1.bf16.xpose.msra.mxu0 %v1218
        %1222 = vmatprep.subr.bf16.mxu0 0
        %1223 = vmatpush1.bf16.xpose.msra.mxu0 0
        %1224 = vmatprep.subr.bf16.mxu0 0
        %1225 = vmatpush1.bf16.xpose.msra.mxu0 0
        %1226 = vmatprep.subr.bf16.mxu0 0
        %1227 = vmatpush1.bf16.xpose.msra.mxu0 0
        %1228 = vmatprep.subr.bf16.mxu0 0
        %1229 = vmatpush1.bf16.xpose.msra.mxu0 0
        %1230 = vmatprep.subr.bf16.mxu0 0
        %1231 = vmatpush1.bf16.xpose.msra.mxu0 0
        %1232 = vmatprep.subr.bf16.mxu0 0
        %1233 = vmatpush1.bf16.xpose.msra.mxu0 0
        %1234 = vmatprep.subr.bf16.mxu0 0
        %1235 = vmatpush1.bf16.xpose.msra.mxu0 0
        %1236 = vmatprep.subr.bf16.mxu0 0
        %1237 = vmatpush1.bf16.xpose.msra.mxu0 0
        %1238 = vmatprep.subr.bf16.mxu0 0
        %1239 = vmatpush1.bf16.xpose.msra.mxu0 0
        %1240 = vmatprep.subr.bf16.mxu0 0
        %1241 = vmatpush1.bf16.xpose.msra.mxu0 0
        %1242 = vmatprep.subr.bf16.mxu0 0
        %1243 = vmatpush1.bf16.xpose.msra.mxu0 0
        %1244 = vmatprep.subr.bf16.mxu0 0
        %1245 = vmatpush1.bf16.xpose.msra.mxu0 0
        %1246 = vmatprep.subr.bf16.mxu0 0
        %1247 = vmatpush1.bf16.xpose.msra.mxu0 0
        %1248 = vmatprep.subr.bf16.mxu0 0
        %1249 = vmatpush1.bf16.xpose.msra.mxu0 0
        %1250 = vmatprep.subr.bf16.mxu0 0
        %1251 = vmatpush1.bf16.xpose.msra.mxu0 0
        %1252 = vmatprep.mubr.bf16.mxu0 0
        %1253 = vmatmul.mubr.bf16.gmra.mrb[0].mxu0 %v1215
        %v1254 = vpop.f32.mrb[0].mxu0
        %v1255 = vadd.f32 %v1209, %v1254
        %v1256 = vpop.f32.mrb[0].mxu0
        %v1257 = vpop.f32.mrb[0].mxu0
        %v1258 = vadd.f32 %v1209, %v1257
        %v1259 = vpop.f32.mrb[0].mxu0
        %1260 = vdwg.mxu0
        %v1261 = vsel %vm991, %v1255, -inf
        %1262 = vmax.xlane.f32.xlu0 %v1261
        %v1263 = vpop.xlane.xlu0 %1262
        %v1264 = vsel %vm991, %v1258, -inf
        %1265 = vmax.xlane.f32.xlu0 %v1264
        %v1266 = vpop.xlane.xlu0 %1265
        %v1267 = vsub.f32 %v1255, %v1263
        %v1268 = vsub.f32 %v1258, %v1266
        %v1269 = vmul.f32 %v1267, 1.442695
        %v1270 = vpow.pop %v1269
        %v1271 = vmul.f32 %v1268, 1.442695
        %v1272 = vpow.pop %v1271
        %v1273 = vsel %vm991, %v1270, 0.0
        %1274 = vadd.xlane.f32.xlu0 %v1273
        %v1275 = vpop.xlane.xlu0 %1274
        %v1276 = vsel %vm991, %v1272, 0.0
        %1277 = vadd.xlane.f32.xlu0 %v1276
        %v1278 = vpop.xlane.xlu0 %1277
        %v1279 = vrcp.pop %v1275
        %v1280 = vrcp.pop %v1278
        %v1281 = vmul.f32 %v1270, %v1279
        %v1282 = vmul.f32 %v1272, %v1280
        %v1283 = vpack.c.bf16 %v1282, %v1281
        %1285 = vrot.lane.b32.xlu0 %v1204, 64
        %v1286 = vpop.permute.xlu0 %1285
        %v1289 = vsel %vm991, %v1283, 0
        %1291 = vmatprep.subr.bf16.mxu0 0
        %1292 = vmatpush1.bf16.msra.mxu0 %v1286
        %1293 = vmatprep.subr.bf16.mxu0 0
        %1294 = vmatpush1.bf16.msra.mxu0 0
        %1295 = vmatprep.subr.bf16.mxu0 0
        %1296 = vmatpush1.bf16.msra.mxu0 0
        %1297 = vmatprep.subr.bf16.mxu0 0
        %1298 = vmatpush1.bf16.msra.mxu0 0
        %1299 = vmatprep.subr.bf16.mxu0 0
        %1300 = vmatpush1.bf16.msra.mxu0 0
        %1301 = vmatprep.subr.bf16.mxu0 0
        %1302 = vmatpush1.bf16.msra.mxu0 0
        %1303 = vmatprep.subr.bf16.mxu0 0
        %1304 = vmatpush1.bf16.msra.mxu0 0
        %1305 = vmatprep.subr.bf16.mxu0 0
        %1306 = vmatpush1.bf16.msra.mxu0 0
        %1307 = vmatprep.subr.bf16.mxu0 0
        %1308 = vmatpush1.bf16.msra.mxu0 0
        %1309 = vmatprep.subr.bf16.mxu0 0
        %1310 = vmatpush1.bf16.msra.mxu0 0
        %1311 = vmatprep.subr.bf16.mxu0 0
        %1312 = vmatpush1.bf16.msra.mxu0 0
        %1313 = vmatprep.subr.bf16.mxu0 0
        %1314 = vmatpush1.bf16.msra.mxu0 0
        %1315 = vmatprep.subr.bf16.mxu0 0
        %1316 = vmatpush1.bf16.msra.mxu0 0
        %1317 = vmatprep.subr.bf16.mxu0 0
        %1318 = vmatpush1.bf16.msra.mxu0 0
        %1319 = vmatprep.subr.bf16.mxu0 0
        %1320 = vmatpush1.bf16.msra.mxu0 0
        %1321 = vmatprep.subr.bf16.mxu0 0
        %1322 = vmatpush1.bf16.msra.mxu0 0
        %1323 = vmatprep.mubr.bf16.mxu0 0
        %1324 = vmatmul.mubr.bf16.gmra.mrb[0].mxu0 %v1289
        %v1325 = vpop.f32.mrb[0].mxu0
        %v1326 = vadd.f32 0.0, %v1325
        %v1327 = vpop.f32.mrb[0].mxu0
        %v1328 = vpop.f32.mrb[0].mxu0
        %v1329 = vadd.f32 0.0, %v1328
        %v1330 = vpop.f32.mrb[0].mxu0
        %1331 = vdwg.mxu0
        %1333 = vrot.lane.b32.xlu0 %v1202, 120
        %v1334 = vpop.permute.xlu0 %1333
        %1335 = vrot.lane.b32.xlu0 %v1203, 88
        %v1336 = vpop.permute.xlu0 %1335
        %v1338 = vsel %vm538, %v1334, 0
        %v1341 = vsel %vm538, %v1336, 0
        %1343 = vmatprep.subr.bf16.mxu0 0
        %1344 = vmatpush1.bf16.xpose.msra.mxu0 %v1341
        %1345 = vmatprep.subr.bf16.mxu0 0
        %1346 = vmatpush1.bf16.xpose.msra.mxu0 0
        %1347 = vmatprep.subr.bf16.mxu0 0
        %1348 = vmatpush1.bf16.xpose.msra.mxu0 0
        %1349 = vmatprep.subr.bf16.mxu0 0
        %1350 = vmatpush1.bf16.xpose.msra.mxu0 0
        %1351 = vmatprep.subr.bf16.mxu0 0
        %1352 = vmatpush1.bf16.xpose.msra.mxu0 0
        %1353 = vmatprep.subr.bf16.mxu0 0
        %1354 = vmatpush1.bf16.xpose.msra.mxu0 0
        %1355 = vmatprep.subr.bf16.mxu0 0
        %1356 = vmatpush1.bf16.xpose.msra.mxu0 0
        %1357 = vmatprep.subr.bf16.mxu0 0
        %1358 = vmatpush1.bf16.xpose.msra.mxu0 0
        %1359 = vmatprep.subr.bf16.mxu0 0
        %1360 = vmatpush1.bf16.xpose.msra.mxu0 0
        %1361 = vmatprep.subr.bf16.mxu0 0
        %1362 = vmatpush1.bf16.xpose.msra.mxu0 0
        %1363 = vmatprep.subr.bf16.mxu0 0
        %1364 = vmatpush1.bf16.xpose.msra.mxu0 0
        %1365 = vmatprep.subr.bf16.mxu0 0
        %1366 = vmatpush1.bf16.xpose.msra.mxu0 0
        %1367 = vmatprep.subr.bf16.mxu0 0
        %1368 = vmatpush1.bf16.xpose.msra.mxu0 0
        %1369 = vmatprep.subr.bf16.mxu0 0
        %1370 = vmatpush1.bf16.xpose.msra.mxu0 0
        %1371 = vmatprep.subr.bf16.mxu0 0
        %1372 = vmatpush1.bf16.xpose.msra.mxu0 0
        %1373 = vmatprep.subr.bf16.mxu0 0
        %1374 = vmatpush1.bf16.xpose.msra.mxu0 0
        %1375 = vmatprep.mubr.bf16.mxu0 0
        %1376 = vmatmul.mubr.bf16.gmra.mrb[0].mxu0 %v1338
        %v1377 = vpop.f32.mrb[0].mxu0
        %v1378 = vadd.f32 %v1209, %v1377
        %v1379 = vpop.f32.mrb[0].mxu0
        %v1380 = vpop.f32.mrb[0].mxu0
        %v1381 = vadd.f32 %v1209, %v1380
        %v1382 = vpop.f32.mrb[0].mxu0
        %1383 = vdwg.mxu0
        %v1384 = vsel %vm991, %v1378, -inf
        %1385 = vmax.xlane.f32.xlu0 %v1384
        %v1386 = vpop.xlane.xlu0 %1385
        %v1387 = vsel %vm991, %v1381, -inf
        %1388 = vmax.xlane.f32.xlu0 %v1387
        %v1389 = vpop.xlane.xlu0 %1388
        %v1390 = vsub.f32 %v1378, %v1386
        %v1391 = vsub.f32 %v1381, %v1389
        %v1392 = vmul.f32 %v1390, 1.442695
        %v1393 = vpow.pop %v1392
        %v1394 = vmul.f32 %v1391, 1.442695
        %v1395 = vpow.pop %v1394
        %v1396 = vsel %vm991, %v1393, 0.0
        %1397 = vadd.xlane.f32.xlu0 %v1396
        %v1398 = vpop.xlane.xlu0 %1397
        %v1399 = vsel %vm991, %v1395, 0.0
        %1400 = vadd.xlane.f32.xlu0 %v1399
        %v1401 = vpop.xlane.xlu0 %1400
        %v1402 = vrcp.pop %v1398
        %v1403 = vrcp.pop %v1401
        %v1404 = vmul.f32 %v1393, %v1402
        %v1405 = vmul.f32 %v1395, %v1403
        %v1406 = vpack.c.bf16 %v1405, %v1404
        %1407 = vrot.lane.b32.xlu0 %v1204, 56
        %v1408 = vpop.permute.xlu0 %1407
        %v1411 = vsel %vm991, %v1406, 0
        %1413 = vmatprep.subr.bf16.mxu0 0
        %1414 = vmatpush1.bf16.msra.mxu0 %v1408
        %1415 = vmatprep.subr.bf16.mxu0 0
        %1416 = vmatpush1.bf16.msra.mxu0 0
        %1417 = vmatprep.subr.bf16.mxu0 0
        %1418 = vmatpush1.bf16.msra.mxu0 0
        %1419 = vmatprep.subr.bf16.mxu0 0
        %1420 = vmatpush1.bf16.msra.mxu0 0
        %1421 = vmatprep.subr.bf16.mxu0 0
        %1422 = vmatpush1.bf16.msra.mxu0 0
        %1423 = vmatprep.subr.bf16.mxu0 0
        %1424 = vmatpush1.bf16.msra.mxu0 0
        %1425 = vmatprep.subr.bf16.mxu0 0
        %1426 = vmatpush1.bf16.msra.mxu0 0
        %1427 = vmatprep.subr.bf16.mxu0 0
        %1428 = vmatpush1.bf16.msra.mxu0 0
        %1429 = vmatprep.subr.bf16.mxu0 0
        %1430 = vmatpush1.bf16.msra.mxu0 0
        %1431 = vmatprep.subr.bf16.mxu0 0
        %1432 = vmatpush1.bf16.msra.mxu0 0
        %1433 = vmatprep.subr.bf16.mxu0 0
        %1434 = vmatpush1.bf16.msra.mxu0 0
        %1435 = vmatprep.subr.bf16.mxu0 0
        %1436 = vmatpush1.bf16.msra.mxu0 0
        %1437 = vmatprep.subr.bf16.mxu0 0
        %1438 = vmatpush1.bf16.msra.mxu0 0
        %1439 = vmatprep.subr.bf16.mxu0 0
        %1440 = vmatpush1.bf16.msra.mxu0 0
        %1441 = vmatprep.subr.bf16.mxu0 0
        %1442 = vmatpush1.bf16.msra.mxu0 0
        %1443 = vmatprep.subr.bf16.mxu0 0
        %1444 = vmatpush1.bf16.msra.mxu0 0
        %1445 = vmatprep.mubr.bf16.mxu0 0
        %1446 = vmatmul.mubr.bf16.gmra.mrb[0].mxu0 %v1411
        %v1447 = vpop.f32.mrb[0].mxu0
        %v1448 = vadd.f32 0.0, %v1447
        %v1449 = vpop.f32.mrb[0].mxu0
        %v1450 = vpop.f32.mrb[0].mxu0
        %v1451 = vadd.f32 0.0, %v1450
        %v1452 = vpop.f32.mrb[0].mxu0
        %1453 = vdwg.mxu0
        %1454 = vrot.lane.b32.xlu0 %v1202, 112
        %v1455 = vpop.permute.xlu0 %1454
        %1456 = vrot.lane.b32.xlu0 %v1203, 80
        %v1457 = vpop.permute.xlu0 %1456
        %v1459 = vsel %vm538, %v1455, 0
        %v1462 = vsel %vm538, %v1457, 0
        %1464 = vmatprep.subr.bf16.mxu0 0
        %1465 = vmatpush1.bf16.xpose.msra.mxu0 %v1462
        %1466 = vmatprep.subr.bf16.mxu0 0
        %1467 = vmatpush1.bf16.xpose.msra.mxu0 0
        %1468 = vmatprep.subr.bf16.mxu0 0
        %1469 = vmatpush1.bf16.xpose.msra.mxu0 0
        %1470 = vmatprep.subr.bf16.mxu0 0
        %1471 = vmatpush1.bf16.xpose.msra.mxu0 0
        %1472 = vmatprep.subr.bf16.mxu0 0
        %1473 = vmatpush1.bf16.xpose.msra.mxu0 0
        %1474 = vmatprep.subr.bf16.mxu0 0
        %1475 = vmatpush1.bf16.xpose.msra.mxu0 0
        %1476 = vmatprep.subr.bf16.mxu0 0
        %1477 = vmatpush1.bf16.xpose.msra.mxu0 0
        %1478 = vmatprep.subr.bf16.mxu0 0
        %1479 = vmatpush1.bf16.xpose.msra.mxu0 0
        %1480 = vmatprep.subr.bf16.mxu0 0
        %1481 = vmatpush1.bf16.xpose.msra.mxu0 0
        %1482 = vmatprep.subr.bf16.mxu0 0
        %1483 = vmatpush1.bf16.xpose.msra.mxu0 0
        %1484 = vmatprep.subr.bf16.mxu0 0
        %1485 = vmatpush1.bf16.xpose.msra.mxu0 0
        %1486 = vmatprep.subr.bf16.mxu0 0
        %1487 = vmatpush1.bf16.xpose.msra.mxu0 0
        %1488 = vmatprep.subr.bf16.mxu0 0
        %1489 = vmatpush1.bf16.xpose.msra.mxu0 0
        %1490 = vmatprep.subr.bf16.mxu0 0
        %1491 = vmatpush1.bf16.xpose.msra.mxu0 0
        %1492 = vmatprep.subr.bf16.mxu0 0
        %1493 = vmatpush1.bf16.xpose.msra.mxu0 0
        %1494 = vmatprep.subr.bf16.mxu0 0
        %1495 = vmatpush1.bf16.xpose.msra.mxu0 0
        %1496 = vmatprep.mubr.bf16.mxu0 0
        %1497 = vmatmul.mubr.bf16.gmra.mrb[0].mxu0 %v1459
        %v1498 = vpop.f32.mrb[0].mxu0
        %v1499 = vadd.f32 %v1209, %v1498
        %v1500 = vpop.f32.mrb[0].mxu0
        %v1501 = vpop.f32.mrb[0].mxu0
        %v1502 = vadd.f32 %v1209, %v1501
        %v1503 = vpop.f32.mrb[0].mxu0
        %1504 = vdwg.mxu0
        %v1505 = vsel %vm991, %v1499, -inf
        %1506 = vmax.xlane.f32.xlu0 %v1505
        %v1507 = vpop.xlane.xlu0 %1506
        %v1508 = vsel %vm991, %v1502, -inf
        %1509 = vmax.xlane.f32.xlu0 %v1508
        %v1510 = vpop.xlane.xlu0 %1509
        %v1511 = vsub.f32 %v1499, %v1507
        %v1512 = vsub.f32 %v1502, %v1510
        %v1513 = vmul.f32 %v1511, 1.442695
        %v1514 = vpow.pop %v1513
        %v1515 = vmul.f32 %v1512, 1.442695
        %v1516 = vpow.pop %v1515
        %v1517 = vsel %vm991, %v1514, 0.0
        %1518 = vadd.xlane.f32.xlu0 %v1517
        %v1519 = vpop.xlane.xlu0 %1518
        %v1520 = vsel %vm991, %v1516, 0.0
        %1521 = vadd.xlane.f32.xlu0 %v1520
        %v1522 = vpop.xlane.xlu0 %1521
        %v1523 = vrcp.pop %v1519
        %v1524 = vrcp.pop %v1522
        %v1525 = vmul.f32 %v1514, %v1523
        %v1526 = vmul.f32 %v1516, %v1524
        %v1527 = vpack.c.bf16 %v1526, %v1525
        %1528 = vrot.lane.b32.xlu0 %v1204, 48
        %v1529 = vpop.permute.xlu0 %1528
        %v1532 = vsel %vm991, %v1527, 0
        %1534 = vmatprep.subr.bf16.mxu0 0
        %1535 = vmatpush1.bf16.msra.mxu0 %v1529
        %1536 = vmatprep.subr.bf16.mxu0 0
        %1537 = vmatpush1.bf16.msra.mxu0 0
        %1538 = vmatprep.subr.bf16.mxu0 0
        %1539 = vmatpush1.bf16.msra.mxu0 0
        %1540 = vmatprep.subr.bf16.mxu0 0
        %1541 = vmatpush1.bf16.msra.mxu0 0
        %1542 = vmatprep.subr.bf16.mxu0 0
        %1543 = vmatpush1.bf16.msra.mxu0 0
        %1544 = vmatprep.subr.bf16.mxu0 0
        %1545 = vmatpush1.bf16.msra.mxu0 0
        %1546 = vmatprep.subr.bf16.mxu0 0
        %1547 = vmatpush1.bf16.msra.mxu0 0
        %1548 = vmatprep.subr.bf16.mxu0 0
        %1549 = vmatpush1.bf16.msra.mxu0 0
        %1550 = vmatprep.subr.bf16.mxu0 0
        %1551 = vmatpush1.bf16.msra.mxu0 0
        %1552 = vmatprep.subr.bf16.mxu0 0
        %1553 = vmatpush1.bf16.msra.mxu0 0
        %1554 = vmatprep.subr.bf16.mxu0 0
        %1555 = vmatpush1.bf16.msra.mxu0 0
        %1556 = vmatprep.subr.bf16.mxu0 0
        %1557 = vmatpush1.bf16.msra.mxu0 0
        %1558 = vmatprep.subr.bf16.mxu0 0
        %1559 = vmatpush1.bf16.msra.mxu0 0
        %1560 = vmatprep.subr.bf16.mxu0 0
        %1561 = vmatpush1.bf16.msra.mxu0 0
        %1562 = vmatprep.subr.bf16.mxu0 0
        %1563 = vmatpush1.bf16.msra.mxu0 0
        %1564 = vmatprep.subr.bf16.mxu0 0
        %1565 = vmatpush1.bf16.msra.mxu0 0
        %1566 = vmatprep.mubr.bf16.mxu0 0
        %1567 = vmatmul.mubr.bf16.gmra.mrb[0].mxu0 %v1532
        %v1568 = vpop.f32.mrb[0].mxu0
        %v1569 = vadd.f32 0.0, %v1568
        %v1570 = vpop.f32.mrb[0].mxu0
        %v1571 = vpop.f32.mrb[0].mxu0
        %v1572 = vadd.f32 0.0, %v1571
        %v1573 = vpop.f32.mrb[0].mxu0
        %1574 = vdwg.mxu0
        %1575 = vrot.lane.b32.xlu0 %v1202, 104
        %v1576 = vpop.permute.xlu0 %1575
        %1577 = vrot.lane.b32.xlu0 %v1203, 72
        %v1578 = vpop.permute.xlu0 %1577
        %v1580 = vsel %vm538, %v1576, 0
        %v1583 = vsel %vm538, %v1578, 0
        %1585 = vmatprep.subr.bf16.mxu0 0
        %1586 = vmatpush1.bf16.xpose.msra.mxu0 %v1583
        %1587 = vmatprep.subr.bf16.mxu0 0
        %1588 = vmatpush1.bf16.xpose.msra.mxu0 0
        %1589 = vmatprep.subr.bf16.mxu0 0
        %1590 = vmatpush1.bf16.xpose.msra.mxu0 0
        %1591 = vmatprep.subr.bf16.mxu0 0
        %1592 = vmatpush1.bf16.xpose.msra.mxu0 0
        %1593 = vmatprep.subr.bf16.mxu0 0
        %1594 = vmatpush1.bf16.xpose.msra.mxu0 0
        %1595 = vmatprep.subr.bf16.mxu0 0
        %1596 = vmatpush1.bf16.xpose.msra.mxu0 0
        %1597 = vmatprep.subr.bf16.mxu0 0
        %1598 = vmatpush1.bf16.xpose.msra.mxu0 0
        %1599 = vmatprep.subr.bf16.mxu0 0
        %1600 = vmatpush1.bf16.xpose.msra.mxu0 0
        %1601 = vmatprep.subr.bf16.mxu0 0
        %1602 = vmatpush1.bf16.xpose.msra.mxu0 0
        %1603 = vmatprep.subr.bf16.mxu0 0
        %1604 = vmatpush1.bf16.xpose.msra.mxu0 0
        %1605 = vmatprep.subr.bf16.mxu0 0
        %1606 = vmatpush1.bf16.xpose.msra.mxu0 0
        %1607 = vmatprep.subr.bf16.mxu0 0
        %1608 = vmatpush1.bf16.xpose.msra.mxu0 0
        %1609 = vmatprep.subr.bf16.mxu0 0
        %1610 = vmatpush1.bf16.xpose.msra.mxu0 0
        %1611 = vmatprep.subr.bf16.mxu0 0
        %1612 = vmatpush1.bf16.xpose.msra.mxu0 0
        %1613 = vmatprep.subr.bf16.mxu0 0
        %1614 = vmatpush1.bf16.xpose.msra.mxu0 0
        %1615 = vmatprep.subr.bf16.mxu0 0
        %1616 = vmatpush1.bf16.xpose.msra.mxu0 0
        %1617 = vmatprep.mubr.bf16.mxu0 0
        %1618 = vmatmul.mubr.bf16.gmra.mrb[0].mxu0 %v1580
        %v1619 = vpop.f32.mrb[0].mxu0
        %v1620 = vadd.f32 %v1209, %v1619
        %v1621 = vpop.f32.mrb[0].mxu0
        %v1622 = vpop.f32.mrb[0].mxu0
        %v1623 = vadd.f32 %v1209, %v1622
        %v1624 = vpop.f32.mrb[0].mxu0
        %1625 = vdwg.mxu0
        %v1626 = vsel %vm991, %v1620, -inf
        %1627 = vmax.xlane.f32.xlu0 %v1626
        %v1628 = vpop.xlane.xlu0 %1627
        %v1629 = vsel %vm991, %v1623, -inf
        %1630 = vmax.xlane.f32.xlu0 %v1629
        %v1631 = vpop.xlane.xlu0 %1630
        %v1632 = vsub.f32 %v1620, %v1628
        %v1633 = vsub.f32 %v1623, %v1631
        %v1634 = vmul.f32 %v1632, 1.442695
        %v1635 = vpow.pop %v1634
        %v1636 = vmul.f32 %v1633, 1.442695
        %v1637 = vpow.pop %v1636
        %v1638 = vsel %vm991, %v1635, 0.0
        %1639 = vadd.xlane.f32.xlu0 %v1638
        %v1640 = vpop.xlane.xlu0 %1639
        %v1641 = vsel %vm991, %v1637, 0.0
        %1642 = vadd.xlane.f32.xlu0 %v1641
        %v1643 = vpop.xlane.xlu0 %1642
        %v1644 = vrcp.pop %v1640
        %v1645 = vrcp.pop %v1643
        %v1646 = vmul.f32 %v1635, %v1644
        %v1647 = vmul.f32 %v1637, %v1645
        %v1648 = vpack.c.bf16 %v1647, %v1646
        %1649 = vrot.lane.b32.xlu0 %v1204, 40
        %v1650 = vpop.permute.xlu0 %1649
        %v1653 = vsel %vm991, %v1648, 0
        %1655 = vmatprep.subr.bf16.mxu0 0
        %1656 = vmatpush1.bf16.msra.mxu0 %v1650
        %1657 = vmatprep.subr.bf16.mxu0 0
        %1658 = vmatpush1.bf16.msra.mxu0 0
        %1659 = vmatprep.subr.bf16.mxu0 0
        %1660 = vmatpush1.bf16.msra.mxu0 0
        %1661 = vmatprep.subr.bf16.mxu0 0
        %1662 = vmatpush1.bf16.msra.mxu0 0
        %1663 = vmatprep.subr.bf16.mxu0 0
        %1664 = vmatpush1.bf16.msra.mxu0 0
        %1665 = vmatprep.subr.bf16.mxu0 0
        %1666 = vmatpush1.bf16.msra.mxu0 0
        %1667 = vmatprep.subr.bf16.mxu0 0
        %1668 = vmatpush1.bf16.msra.mxu0 0
        %1669 = vmatprep.subr.bf16.mxu0 0
        %1670 = vmatpush1.bf16.msra.mxu0 0
        %1671 = vmatprep.subr.bf16.mxu0 0
        %1672 = vmatpush1.bf16.msra.mxu0 0
        %1673 = vmatprep.subr.bf16.mxu0 0
        %1674 = vmatpush1.bf16.msra.mxu0 0
        %1675 = vmatprep.subr.bf16.mxu0 0
        %1676 = vmatpush1.bf16.msra.mxu0 0
        %1677 = vmatprep.subr.bf16.mxu0 0
        %1678 = vmatpush1.bf16.msra.mxu0 0
        %1679 = vmatprep.subr.bf16.mxu0 0
        %1680 = vmatpush1.bf16.msra.mxu0 0
        %1681 = vmatprep.subr.bf16.mxu0 0
        %1682 = vmatpush1.bf16.msra.mxu0 0
        %1683 = vmatprep.subr.bf16.mxu0 0
        %1684 = vmatpush1.bf16.msra.mxu0 0
        %1685 = vmatprep.subr.bf16.mxu0 0
        %1686 = vmatpush1.bf16.msra.mxu0 0
        %1687 = vmatprep.mubr.bf16.mxu0 0
        %1688 = vmatmul.mubr.bf16.gmra.mrb[0].mxu0 %v1653
        %v1689 = vpop.f32.mrb[0].mxu0
        %v1690 = vadd.f32 0.0, %v1689
        %v1691 = vpop.f32.mrb[0].mxu0
        %v1692 = vpop.f32.mrb[0].mxu0
        %v1693 = vadd.f32 0.0, %v1692
        %v1694 = vpop.f32.mrb[0].mxu0
        %1695 = vdwg.mxu0
        %1698 = vrot.lane.b32.xlu0 %v1448, 8
        %v1699 = vpop.permute.xlu0 %1698
        %1700 = vrot.lane.b32.xlu0 %v1451, 8
        %v1701 = vpop.permute.xlu0 %1700
        %1706 = vrot.lane.b32.xlu0 %v1569, 16
        %v1707 = vpop.permute.xlu0 %1706
        %1708 = vrot.lane.b32.xlu0 %v1572, 16
        %v1709 = vpop.permute.xlu0 %1708
        %1714 = vrot.lane.b32.xlu0 %v1690, 24
        %v1715 = vpop.permute.xlu0 %1714
        %1716 = vrot.lane.b32.xlu0 %v1693, 24
        %v1717 = vpop.permute.xlu0 %1716
        %v1720 = vsel %vm538, %v1326, %v1699
        %v1721 = vsel %vm538, %v1329, %v1701
        %v1722 = vsel %vm991, %v1720, %v1707
        %v1723 = vsel %vm991, %v1721, %v1709
        %v1724 = vsel %vm993, %v1722, %v1715
        %v1725 = vsel %vm993, %v1723, %v1717
        %v1726 = vpack.c.bf16 %v1725, %v1724
        %v1727 = vld [vmem:[#allocation8 + $0x38] sm:$0xf]
        %v1728 = vld [vmem:[#allocation8 + $0x3c] sm:$0xf]
        %v1729 = vld [vmem:[#allocation8 + $0x40] sm:$0xf]
        %v1730 = vld [vmem:[#allocation8 + $0x44] sm:$0xf]
        %v1735 = vunpack.c.l.b16 %v1727
        %v1736 = vunpack.c.l.b16 %v1728
        %v1737 = vunpack.c.l.b16 %v1729
        %v1738 = vunpack.c.l.b16 %v1730
        %v1739 = vpack.c.b16 %v1736, %v1735
        %v1740 = vpack.c.b16 %v1738, %v1737
        %v1744 = vsel %vm418, %v1726, 0
        %1746 = vmatprep.subr.bf16.mxu0 0
        %1747 = vmatpush1.bf16.msra.mxu0 %v1739
        %1748 = vmatprep.subr.bf16.mxu0 0
        %1749 = vmatpush1.bf16.msra.mxu0 %v1740
        %1750 = vmatprep.subr.bf16.mxu0 0
        %1751 = vmatpush1.bf16.msra.mxu0 0
        %1752 = vmatprep.subr.bf16.mxu0 0
        %1753 = vmatpush1.bf16.msra.mxu0 0
        %1754 = vmatprep.subr.bf16.mxu0 0
        %1755 = vmatpush1.bf16.msra.mxu0 0
        %1756 = vmatprep.subr.bf16.mxu0 0
        %1757 = vmatpush1.bf16.msra.mxu0 0
        %1758 = vmatprep.subr.bf16.mxu0 0
        %1759 = vmatpush1.bf16.msra.mxu0 0
        %1760 = vmatprep.subr.bf16.mxu0 0
        %1761 = vmatpush1.bf16.msra.mxu0 0
        %1762 = vmatprep.subr.bf16.mxu0 0
        %1763 = vmatpush1.bf16.msra.mxu0 0
        %1764 = vmatprep.subr.bf16.mxu0 0
        %1765 = vmatpush1.bf16.msra.mxu0 0
        %1766 = vmatprep.subr.bf16.mxu0 0
        %1767 = vmatpush1.bf16.msra.mxu0 0
        %1768 = vmatprep.subr.bf16.mxu0 0
        %1769 = vmatpush1.bf16.msra.mxu0 0
        %1770 = vmatprep.subr.bf16.mxu0 0
        %1771 = vmatpush1.bf16.msra.mxu0 0
        %1772 = vmatprep.subr.bf16.mxu0 0
        %1773 = vmatpush1.bf16.msra.mxu0 0
        %1774 = vmatprep.subr.bf16.mxu0 0
        %1775 = vmatpush1.bf16.msra.mxu0 0
        %1776 = vmatprep.subr.bf16.mxu0 0
        %1777 = vmatpush1.bf16.msra.mxu0 0
        %1778 = vmatprep.mubr.bf16.mxu0 0
        %1779 = vmatmul.mubr.bf16.gmra.mrb[0].mxu0 %v1744
        %v1780 = vpop.f32.mrb[0].mxu0
        %v1781 = vadd.f32 0.0, %v1780
        %v1782 = vpop.f32.mrb[0].mxu0
        %v1783 = vpop.f32.mrb[0].mxu0
        %v1784 = vadd.f32 0.0, %v1783
        %v1785 = vpop.f32.mrb[0].mxu0
        %1786 = vdwg.mxu0
        %v1787 = vadd.f32 %v404, %v1781
        %v1788 = vadd.f32 %v405, %v1784
        %v1789 = vlaneseq
        %v1790 = vshrl.u32 %v1789, 7
        %v1791 = vsub.s32 0, %v1790
        %v1792 = vrot.slane %v1066, %v1791
        %v1793 = vadd.f32 %v1787, %v1792
        %v1794 = vadd.f32 %v1788, %v1792
        %v1795 = vld [vmem:[#allocation7 + $0xc] sm:$0x1]
        %v1796 = vld [vmem:[#allocation7 + $0xd] sm:$0x1]
        %v1797 = vld [vmem:[#allocation7 + $0xe] sm:$0x1]
        %v1798 = vld [vmem:[#allocation7 + $0xf] sm:$0x1]
        %v1799 = vld [vmem:[#allocation7 + $0x10] sm:$0x1]
        %v1800 = vld [vmem:[#allocation7 + $0x11] sm:$0x1]
        %v1801 = vsel %vm418, %v1060, 0.0
        %1802 = vadd.xlane.f32.xlu0 %v1801
        %v1803 = vpop.xlane.xlu0 %1802
        %v1804 = vmul.f32 %v1803, %v422
        %v1805 = vsub.f32 %v1060, %v1804
        %v1806 = vmul.f32 %v1805, %v1805
        %v1807 = vsel %vm418, %v1806, 0.0
        %1808 = vadd.xlane.f32.xlu0 %v1807
        %v1809 = vpop.xlane.xlu0 %1808
        %v1810 = vmul.f32 %v1809, %v422
        %v1811 = vadd.f32 %v1810, 1e-05
        %v1812 = vrsqrt.pop %v1811
        %v1813 = vmul.f32 %v1805, %v1812
        %v1814 = vlaneseq
        %v1815 = vshrl.u32 %v1814, 7
        %v1816 = vsub.s32 0, %v1815
        %v1817 = vrot.slane %v1795, %v1816
        %v1818 = vmul.f32 %v1813, %v1817
        %v1819 = vlaneseq
        %v1820 = vshrl.u32 %v1819, 7
        %v1821 = vsub.s32 0, %v1820
        %v1822 = vrot.slane %v1796, %v1821
        %v1823 = vadd.f32 %v1818, %v1822
        %v1824 = vpack.c.bf16 %v1823, %v1823
        %v1825 = vld [vmem:[#allocation8 + $0x48] sm:$0xf]
        %v1826 = vld [vmem:[#allocation8 + $0x4c] sm:$0xf]
        %v1827 = vld [vmem:[#allocation8 + $0x50] sm:$0xf]
        %v1828 = vld [vmem:[#allocation8 + $0x54] sm:$0xf]
        %v1829 = vlaneseq
        %v1830 = vshrl.u32 %v1829, 7
        %v1831 = vsub.s32 0, %v1830
        %v1832 = vrot.slane %v1797, %v1831
        %v1837 = vunpack.c.l.b16 %v1825
        %v1838 = vunpack.c.l.b16 %v1826
        %v1839 = vunpack.c.l.b16 %v1827
        %v1840 = vunpack.c.l.b16 %v1828
        %v1841 = vpack.c.b16 %v1838, %v1837
        %v1842 = vpack.c.b16 %v1840, %v1839
        %v1846 = vsel %vm418, %v1824, 0
        %1848 = vmatprep.subr.bf16.mxu0 0
        %1849 = vmatpush1.bf16.msra.mxu0 %v1841
        %1850 = vmatprep.subr.bf16.mxu0 0
        %1851 = vmatpush1.bf16.msra.mxu0 %v1842
        %1852 = vmatprep.subr.bf16.mxu0 0
        %1853 = vmatpush1.bf16.msra.mxu0 0
        %1854 = vmatprep.subr.bf16.mxu0 0
        %1855 = vmatpush1.bf16.msra.mxu0 0
        %1856 = vmatprep.subr.bf16.mxu0 0
        %1857 = vmatpush1.bf16.msra.mxu0 0
        %1858 = vmatprep.subr.bf16.mxu0 0
        %1859 = vmatpush1.bf16.msra.mxu0 0
        %1860 = vmatprep.subr.bf16.mxu0 0
        %1861 = vmatpush1.bf16.msra.mxu0 0
        %1862 = vmatprep.subr.bf16.mxu0 0
        %1863 = vmatpush1.bf16.msra.mxu0 0
        %1864 = vmatprep.subr.bf16.mxu0 0
        %1865 = vmatpush1.bf16.msra.mxu0 0
        %1866 = vmatprep.subr.bf16.mxu0 0
        %1867 = vmatpush1.bf16.msra.mxu0 0
        %1868 = vmatprep.subr.bf16.mxu0 0
        %1869 = vmatpush1.bf16.msra.mxu0 0
        %1870 = vmatprep.subr.bf16.mxu0 0
        %1871 = vmatpush1.bf16.msra.mxu0 0
        %1872 = vmatprep.subr.bf16.mxu0 0
        %1873 = vmatpush1.bf16.msra.mxu0 0
        %1874 = vmatprep.subr.bf16.mxu0 0
        %1875 = vmatpush1.bf16.msra.mxu0 0
        %1876 = vmatprep.subr.bf16.mxu0 0
        %1877 = vmatpush1.bf16.msra.mxu0 0
        %1878 = vmatprep.subr.bf16.mxu0 0
        %1879 = vmatpush1.bf16.msra.mxu0 0
        %1880 = vmatprep.mubr.bf16.mxu0 0
        %1881 = vmatmul.mubr.bf16.gmra.mrb[0].mxu0 %v1846
        %v1882 = vpop.f32.mrb[0].mxu0
        %v1883 = vadd.f32 %v1832, %v1882
        %v1884 = vpop.f32.mrb[0].mxu0
        %v1885 = vpop.f32.mrb[0].mxu0
        %v1886 = vpop.f32.mrb[0].mxu0
        %1887 = vdwg.mxu0
        %v1888 = vpack.c.bf16 %v1794, %v1793
        %v1889 = vld [vmem:[#allocation8 + $0x58] sm:$0xf]
        %v1890 = vld [vmem:[#allocation8 + $0x5c] sm:$0xf]
        %v1891 = vld [vmem:[#allocation8 + $0x60] sm:$0xf]
        %v1892 = vld [vmem:[#allocation8 + $0x64] sm:$0xf]
        %v1893 = vld [vmem:[#allocation8 + $0x68] sm:$0xf]
        %v1894 = vld [vmem:[#allocation8 + $0x6c] sm:$0xf]
        %v1901 = vunpack.c.l.b16 %v1889
        %v1902 = vunpack.c.l.b16 %v1890
        %v1903 = vunpack.c.l.b16 %v1891
        %v1904 = vunpack.c.l.b16 %v1892
        %v1905 = vunpack.c.l.b16 %v1893
        %v1906 = vunpack.c.l.b16 %v1894
        %v1907 = vpack.c.b16 %v1902, %v1901
        %v1908 = vpack.c.b16 %v1904, %v1903
        %v1909 = vpack.c.b16 %v1906, %v1905
        %v1914 = vsel %vm1067, %v1888, 0
        %1916 = vmatprep.subr.bf16.mxu0 0
        %1917 = vmatpush1.bf16.msra.mxu0 %v1907
        %1918 = vmatprep.subr.bf16.mxu0 0
        %1919 = vmatpush1.bf16.msra.mxu0 %v1908
        %1920 = vmatprep.subr.bf16.mxu0 0
        %1921 = vmatpush1.bf16.msra.mxu0 %v1909
        %1922 = vmatprep.subr.bf16.mxu0 0
        %1923 = vmatpush1.bf16.msra.mxu0 0
        %1924 = vmatprep.subr.bf16.mxu0 0
        %1925 = vmatpush1.bf16.msra.mxu0 0
        %1926 = vmatprep.subr.bf16.mxu0 0
        %1927 = vmatpush1.bf16.msra.mxu0 0
        %1928 = vmatprep.subr.bf16.mxu0 0
        %1929 = vmatpush1.bf16.msra.mxu0 0
        %1930 = vmatprep.subr.bf16.mxu0 0
        %1931 = vmatpush1.bf16.msra.mxu0 0
        %1932 = vmatprep.subr.bf16.mxu0 0
        %1933 = vmatpush1.bf16.msra.mxu0 0
        %1934 = vmatprep.subr.bf16.mxu0 0
        %1935 = vmatpush1.bf16.msra.mxu0 0
        %1936 = vmatprep.subr.bf16.mxu0 0
        %1937 = vmatpush1.bf16.msra.mxu0 0
        %1938 = vmatprep.subr.bf16.mxu0 0
        %1939 = vmatpush1.bf16.msra.mxu0 0
        %1940 = vmatprep.subr.bf16.mxu0 0
        %1941 = vmatpush1.bf16.msra.mxu0 0
        %1942 = vmatprep.subr.bf16.mxu0 0
        %1943 = vmatpush1.bf16.msra.mxu0 0
        %1944 = vmatprep.subr.bf16.mxu0 0
        %1945 = vmatpush1.bf16.msra.mxu0 0
        %1946 = vmatprep.subr.bf16.mxu0 0
        %1947 = vmatpush1.bf16.msra.mxu0 0
        %1948 = vmatprep.mubr.bf16.mxu0 0
        %1949 = vmatmul.mubr.bf16.gmra.mrb[0].mxu0 %v1914
        %v1950 = vpop.f32.mrb[0].mxu0
        %v1951 = vadd.f32 0.0, %v1950
        %v1952 = vpop.f32.mrb[0].mxu0
        %v1953 = vpop.f32.mrb[0].mxu0
        %v1954 = vadd.f32 0.0, %v1953
        %v1955 = vpop.f32.mrb[0].mxu0
        %1956 = vdwg.mxu0
        %v1957 = vlaneseq
        %v1958 = vshrl.u32 %v1957, 7
        %v1959 = vsub.s32 0, %v1958
        %v1960 = vrot.slane %v1798, %v1959
        %v1961 = vadd.f32 %v1951, %v1960
        %v1962 = vadd.f32 %v1954, %v1960
        %v1963 = vlaneseq
        %v1964 = vshrl.u32 %v1963, 7
        %v1965 = vsub.s32 0, %v1964
        %v1966 = vrot.slane %v1799, %v1965
        %1968 = vrot.lane.b32.xlu0 %v1966, 32
        %v1969 = vpop.permute.xlu0 %1968
        %v1971 = vadd.f32 %v1951, %v1969
        %v1972 = vadd.f32 %v1954, %v1969
        %v1973 = vpack.c.bf16 %v1883, %v1883
        %v1974 = vpack.c.bf16 %v1962, %v1961
        %v1975 = vpack.c.bf16 %v1972, %v1971
        %v1977 = vsel %vm538, %v1973, 0
        %v1980 = vsel %vm538, %v1974, 0
        %1982 = vmatprep.subr.bf16.mxu0 0
        %1983 = vmatpush1.bf16.xpose.msra.mxu0 %v1980
        %1984 = vmatprep.subr.bf16.mxu0 0
        %1985 = vmatpush1.bf16.xpose.msra.mxu0 0
        %1986 = vmatprep.subr.bf16.mxu0 0
        %1987 = vmatpush1.bf16.xpose.msra.mxu0 0
        %1988 = vmatprep.subr.bf16.mxu0 0
        %1989 = vmatpush1.bf16.xpose.msra.mxu0 0
        %1990 = vmatprep.subr.bf16.mxu0 0
        %1991 = vmatpush1.bf16.xpose.msra.mxu0 0
        %1992 = vmatprep.subr.bf16.mxu0 0
        %1993 = vmatpush1.bf16.xpose.msra.mxu0 0
        %1994 = vmatprep.subr.bf16.mxu0 0
        %1995 = vmatpush1.bf16.xpose.msra.mxu0 0
        %1996 = vmatprep.subr.bf16.mxu0 0
        %1997 = vmatpush1.bf16.xpose.msra.mxu0 0
        %1998 = vmatprep.subr.bf16.mxu0 0
        %1999 = vmatpush1.bf16.xpose.msra.mxu0 0
        %2000 = vmatprep.subr.bf16.mxu0 0
        %2001 = vmatpush1.bf16.xpose.msra.mxu0 0
        %2002 = vmatprep.subr.bf16.mxu0 0
        %2003 = vmatpush1.bf16.xpose.msra.mxu0 0
        %2004 = vmatprep.subr.bf16.mxu0 0
        %2005 = vmatpush1.bf16.xpose.msra.mxu0 0
        %2006 = vmatprep.subr.bf16.mxu0 0
        %2007 = vmatpush1.bf16.xpose.msra.mxu0 0
        %2008 = vmatprep.subr.bf16.mxu0 0
        %2009 = vmatpush1.bf16.xpose.msra.mxu0 0
        %2010 = vmatprep.subr.bf16.mxu0 0
        %2011 = vmatpush1.bf16.xpose.msra.mxu0 0
        %2012 = vmatprep.subr.bf16.mxu0 0
        %2013 = vmatpush1.bf16.xpose.msra.mxu0 0
        %2014 = vmatprep.mubr.bf16.mxu0 0
        %2015 = vmatmul.mubr.bf16.gmra.mrb[0].mxu0 %v1977
        %v2016 = vpop.f32.mrb[0].mxu0
        %v2017 = vadd.f32 %v1209, %v2016
        %v2018 = vpop.f32.mrb[0].mxu0
        %v2019 = vpop.f32.mrb[0].mxu0
        %v2020 = vpop.f32.mrb[0].mxu0
        %2021 = vdwg.mxu0
        %v2022 = vsel %vm991, %v2017, -inf
        %2023 = vmax.xlane.f32.xlu0 %v2022
        %v2024 = vpop.xlane.xlu0 %2023
        %v2025 = vsub.f32 %v2017, %v2024
        %v2026 = vmul.f32 %v2025, 1.442695
        %v2027 = vpow.pop %v2026
        %v2028 = vsel %vm991, %v2027, 0.0
        %2029 = vadd.xlane.f32.xlu0 %v2028
        %v2030 = vpop.xlane.xlu0 %2029
        %v2031 = vrcp.pop %v2030
        %v2032 = vmul.f32 %v2027, %v2031
        %v2033 = vpack.c.bf16 %v2032, %v2032
        %2035 = vrot.lane.b32.xlu0 %v1975, 96
        %v2036 = vpop.permute.xlu0 %2035
        %v2039 = vsel %vm991, %v2033, 0
        %2041 = vmatprep.subr.bf16.mxu0 0
        %2042 = vmatpush1.bf16.msra.mxu0 %v2036
        %2043 = vmatprep.subr.bf16.mxu0 0
        %2044 = vmatpush1.bf16.msra.mxu0 0
        %2045 = vmatprep.subr.bf16.mxu0 0
        %2046 = vmatpush1.bf16.msra.mxu0 0
        %2047 = vmatprep.subr.bf16.mxu0 0
        %2048 = vmatpush1.bf16.msra.mxu0 0
        %2049 = vmatprep.subr.bf16.mxu0 0
        %2050 = vmatpush1.bf16.msra.mxu0 0
        %2051 = vmatprep.subr.bf16.mxu0 0
        %2052 = vmatpush1.bf16.msra.mxu0 0
        %2053 = vmatprep.subr.bf16.mxu0 0
        %2054 = vmatpush1.bf16.msra.mxu0 0
        %2055 = vmatprep.subr.bf16.mxu0 0
        %2056 = vmatpush1.bf16.msra.mxu0 0
        %2057 = vmatprep.subr.bf16.mxu0 0
        %2058 = vmatpush1.bf16.msra.mxu0 0
        %2059 = vmatprep.subr.bf16.mxu0 0
        %2060 = vmatpush1.bf16.msra.mxu0 0
        %2061 = vmatprep.subr.bf16.mxu0 0
        %2062 = vmatpush1.bf16.msra.mxu0 0
        %2063 = vmatprep.subr.bf16.mxu0 0
        %2064 = vmatpush1.bf16.msra.mxu0 0
        %2065 = vmatprep.subr.bf16.mxu0 0
        %2066 = vmatpush1.bf16.msra.mxu0 0
        %2067 = vmatprep.subr.bf16.mxu0 0
        %2068 = vmatpush1.bf16.msra.mxu0 0
        %2069 = vmatprep.subr.bf16.mxu0 0
        %2070 = vmatpush1.bf16.msra.mxu0 0
        %2071 = vmatprep.subr.bf16.mxu0 0
        %2072 = vmatpush1.bf16.msra.mxu0 0
        %2073 = vmatprep.mubr.bf16.mxu0 0
        %2074 = vmatmul.mubr.bf16.gmra.mrb[0].mxu0 %v2039
        %v2075 = vpop.f32.mrb[0].mxu0
        %v2076 = vadd.f32 0.0, %v2075
        %v2077 = vpop.f32.mrb[0].mxu0
        %v2078 = vpop.f32.mrb[0].mxu0
        %v2079 = vpop.f32.mrb[0].mxu0
        %2080 = vdwg.mxu0
        %2082 = vrot.lane.b32.xlu0 %v1973, 120
        %v2083 = vpop.permute.xlu0 %2082
        %2085 = vrot.lane.b32.xlu0 %v1974, 120
        %v2086 = vpop.permute.xlu0 %2085
        %v2088 = vsel %vm538, %v2083, 0
        %v2091 = vsel %vm538, %v2086, 0
        %2093 = vmatprep.subr.bf16.mxu0 0
        %2094 = vmatpush1.bf16.xpose.msra.mxu0 %v2091
        %2095 = vmatprep.subr.bf16.mxu0 0
        %2096 = vmatpush1.bf16.xpose.msra.mxu0 0
        %2097 = vmatprep.subr.bf16.mxu0 0
        %2098 = vmatpush1.bf16.xpose.msra.mxu0 0
        %2099 = vmatprep.subr.bf16.mxu0 0
        %2100 = vmatpush1.bf16.xpose.msra.mxu0 0
        %2101 = vmatprep.subr.bf16.mxu0 0
        %2102 = vmatpush1.bf16.xpose.msra.mxu0 0
        %2103 = vmatprep.subr.bf16.mxu0 0
        %2104 = vmatpush1.bf16.xpose.msra.mxu0 0
        %2105 = vmatprep.subr.bf16.mxu0 0
        %2106 = vmatpush1.bf16.xpose.msra.mxu0 0
        %2107 = vmatprep.subr.bf16.mxu0 0
        %2108 = vmatpush1.bf16.xpose.msra.mxu0 0
        %2109 = vmatprep.subr.bf16.mxu0 0
        %2110 = vmatpush1.bf16.xpose.msra.mxu0 0
        %2111 = vmatprep.subr.bf16.mxu0 0
        %2112 = vmatpush1.bf16.xpose.msra.mxu0 0
        %2113 = vmatprep.subr.bf16.mxu0 0
        %2114 = vmatpush1.bf16.xpose.msra.mxu0 0
        %2115 = vmatprep.subr.bf16.mxu0 0
        %2116 = vmatpush1.bf16.xpose.msra.mxu0 0
        %2117 = vmatprep.subr.bf16.mxu0 0
        %2118 = vmatpush1.bf16.xpose.msra.mxu0 0
        %2119 = vmatprep.subr.bf16.mxu0 0
        %2120 = vmatpush1.bf16.xpose.msra.mxu0 0
        %2121 = vmatprep.subr.bf16.mxu0 0
        %2122 = vmatpush1.bf16.xpose.msra.mxu0 0
        %2123 = vmatprep.subr.bf16.mxu0 0
        %2124 = vmatpush1.bf16.xpose.msra.mxu0 0
        %2125 = vmatprep.mubr.bf16.mxu0 0
        %2126 = vmatmul.mubr.bf16.gmra.mrb[0].mxu0 %v2088
        %v2127 = vpop.f32.mrb[0].mxu0
        %v2128 = vadd.f32 %v1209, %v2127
        %v2129 = vpop.f32.mrb[0].mxu0
        %v2130 = vpop.f32.mrb[0].mxu0
        %v2131 = vpop.f32.mrb[0].mxu0
        %2132 = vdwg.mxu0
        %v2133 = vsel %vm991, %v2128, -inf
        %2134 = vmax.xlane.f32.xlu0 %v2133
        %v2135 = vpop.xlane.xlu0 %2134
        %v2136 = vsub.f32 %v2128, %v2135
        %v2137 = vmul.f32 %v2136, 1.442695
        %v2138 = vpow.pop %v2137
        %v2139 = vsel %vm991, %v2138, 0.0
        %2140 = vadd.xlane.f32.xlu0 %v2139
        %v2141 = vpop.xlane.xlu0 %2140
        %v2142 = vrcp.pop %v2141
        %v2143 = vmul.f32 %v2138, %v2142
        %v2144 = vpack.c.bf16 %v2143, %v2143
        %2145 = vrot.lane.b32.xlu0 %v1975, 88
        %v2146 = vpop.permute.xlu0 %2145
        %v2149 = vsel %vm991, %v2144, 0
        %2151 = vmatprep.subr.bf16.mxu0 0
        %2152 = vmatpush1.bf16.msra.mxu0 %v2146
        %2153 = vmatprep.subr.bf16.mxu0 0
        %2154 = vmatpush1.bf16.msra.mxu0 0
        %2155 = vmatprep.subr.bf16.mxu0 0
        %2156 = vmatpush1.bf16.msra.mxu0 0
        %2157 = vmatprep.subr.bf16.mxu0 0
        %2158 = vmatpush1.bf16.msra.mxu0 0
        %2159 = vmatprep.subr.bf16.mxu0 0
        %2160 = vmatpush1.bf16.msra.mxu0 0
        %2161 = vmatprep.subr.bf16.mxu0 0
        %2162 = vmatpush1.bf16.msra.mxu0 0
        %2163 = vmatprep.subr.bf16.mxu0 0
        %2164 = vmatpush1.bf16.msra.mxu0 0
        %2165 = vmatprep.subr.bf16.mxu0 0
        %2166 = vmatpush1.bf16.msra.mxu0 0
        %2167 = vmatprep.subr.bf16.mxu0 0
        %2168 = vmatpush1.bf16.msra.mxu0 0
        %2169 = vmatprep.subr.bf16.mxu0 0
        %2170 = vmatpush1.bf16.msra.mxu0 0
        %2171 = vmatprep.subr.bf16.mxu0 0
        %2172 = vmatpush1.bf16.msra.mxu0 0
        %2173 = vmatprep.subr.bf16.mxu0 0
        %2174 = vmatpush1.bf16.msra.mxu0 0
        %2175 = vmatprep.subr.bf16.mxu0 0
        %2176 = vmatpush1.bf16.msra.mxu0 0
        %2177 = vmatprep.subr.bf16.mxu0 0
        %2178 = vmatpush1.bf16.msra.mxu0 0
        %2179 = vmatprep.subr.bf16.mxu0 0
        %2180 = vmatpush1.bf16.msra.mxu0 0
        %2181 = vmatprep.subr.bf16.mxu0 0
        %2182 = vmatpush1.bf16.msra.mxu0 0
        %2183 = vmatprep.mubr.bf16.mxu0 0
        %2184 = vmatmul.mubr.bf16.gmra.mrb[0].mxu0 %v2149
        %v2185 = vpop.f32.mrb[0].mxu0
        %v2186 = vadd.f32 0.0, %v2185
        %v2187 = vpop.f32.mrb[0].mxu0
        %v2188 = vpop.f32.mrb[0].mxu0
        %v2189 = vpop.f32.mrb[0].mxu0
        %2190 = vdwg.mxu0
        %2191 = vrot.lane.b32.xlu0 %v1973, 112
        %v2192 = vpop.permute.xlu0 %2191
        %2193 = vrot.lane.b32.xlu0 %v1974, 112
        %v2194 = vpop.permute.xlu0 %2193
        %v2196 = vsel %vm538, %v2192, 0
        %v2199 = vsel %vm538, %v2194, 0
        %2201 = vmatprep.subr.bf16.mxu0 0
        %2202 = vmatpush1.bf16.xpose.msra.mxu0 %v2199
        %2203 = vmatprep.subr.bf16.mxu0 0
        %2204 = vmatpush1.bf16.xpose.msra.mxu0 0
        %2205 = vmatprep.subr.bf16.mxu0 0
        %2206 = vmatpush1.bf16.xpose.msra.mxu0 0
        %2207 = vmatprep.subr.bf16.mxu0 0
        %2208 = vmatpush1.bf16.xpose.msra.mxu0 0
        %2209 = vmatprep.subr.bf16.mxu0 0
        %2210 = vmatpush1.bf16.xpose.msra.mxu0 0
        %2211 = vmatprep.subr.bf16.mxu0 0
        %2212 = vmatpush1.bf16.xpose.msra.mxu0 0
        %2213 = vmatprep.subr.bf16.mxu0 0
        %2214 = vmatpush1.bf16.xpose.msra.mxu0 0
        %2215 = vmatprep.subr.bf16.mxu0 0
        %2216 = vmatpush1.bf16.xpose.msra.mxu0 0
        %2217 = vmatprep.subr.bf16.mxu0 0
        %2218 = vmatpush1.bf16.xpose.msra.mxu0 0
        %2219 = vmatprep.subr.bf16.mxu0 0
        %2220 = vmatpush1.bf16.xpose.msra.mxu0 0
        %2221 = vmatprep.subr.bf16.mxu0 0
        %2222 = vmatpush1.bf16.xpose.msra.mxu0 0
        %2223 = vmatprep.subr.bf16.mxu0 0
        %2224 = vmatpush1.bf16.xpose.msra.mxu0 0
        %2225 = vmatprep.subr.bf16.mxu0 0
        %2226 = vmatpush1.bf16.xpose.msra.mxu0 0
        %2227 = vmatprep.subr.bf16.mxu0 0
        %2228 = vmatpush1.bf16.xpose.msra.mxu0 0
        %2229 = vmatprep.subr.bf16.mxu0 0
        %2230 = vmatpush1.bf16.xpose.msra.mxu0 0
        %2231 = vmatprep.subr.bf16.mxu0 0
        %2232 = vmatpush1.bf16.xpose.msra.mxu0 0
        %2233 = vmatprep.mubr.bf16.mxu0 0
        %2234 = vmatmul.mubr.bf16.gmra.mrb[0].mxu0 %v2196
        %v2235 = vpop.f32.mrb[0].mxu0
        %v2236 = vadd.f32 %v1209, %v2235
        %v2237 = vpop.f32.mrb[0].mxu0
        %v2238 = vpop.f32.mrb[0].mxu0
        %v2239 = vpop.f32.mrb[0].mxu0
        %2240 = vdwg.mxu0
        %v2241 = vsel %vm991, %v2236, -inf
        %2242 = vmax.xlane.f32.xlu0 %v2241
        %v2243 = vpop.xlane.xlu0 %2242
        %v2244 = vsub.f32 %v2236, %v2243
        %v2245 = vmul.f32 %v2244, 1.442695
        %v2246 = vpow.pop %v2245
        %v2247 = vsel %vm991, %v2246, 0.0
        %2248 = vadd.xlane.f32.xlu0 %v2247
        %v2249 = vpop.xlane.xlu0 %2248
        %v2250 = vrcp.pop %v2249
        %v2251 = vmul.f32 %v2246, %v2250
        %v2252 = vpack.c.bf16 %v2251, %v2251
        %2253 = vrot.lane.b32.xlu0 %v1975, 80
        %v2254 = vpop.permute.xlu0 %2253
        %v2257 = vsel %vm991, %v2252, 0
        %2259 = vmatprep.subr.bf16.mxu0 0
        %2260 = vmatpush1.bf16.msra.mxu0 %v2254
        %2261 = vmatprep.subr.bf16.mxu0 0
        %2262 = vmatpush1.bf16.msra.mxu0 0
        %2263 = vmatprep.subr.bf16.mxu0 0
        %2264 = vmatpush1.bf16.msra.mxu0 0
        %2265 = vmatprep.subr.bf16.mxu0 0
        %2266 = vmatpush1.bf16.msra.mxu0 0
        %2267 = vmatprep.subr.bf16.mxu0 0
        %2268 = vmatpush1.bf16.msra.mxu0 0
        %2269 = vmatprep.subr.bf16.mxu0 0
        %2270 = vmatpush1.bf16.msra.mxu0 0
        %2271 = vmatprep.subr.bf16.mxu0 0
        %2272 = vmatpush1.bf16.msra.mxu0 0
        %2273 = vmatprep.subr.bf16.mxu0 0
        %2274 = vmatpush1.bf16.msra.mxu0 0
        %2275 = vmatprep.subr.bf16.mxu0 0
        %2276 = vmatpush1.bf16.msra.mxu0 0
        %2277 = vmatprep.subr.bf16.mxu0 0
        %2278 = vmatpush1.bf16.msra.mxu0 0
        %2279 = vmatprep.subr.bf16.mxu0 0
        %2280 = vmatpush1.bf16.msra.mxu0 0
        %2281 = vmatprep.subr.bf16.mxu0 0
        %2282 = vmatpush1.bf16.msra.mxu0 0
        %2283 = vmatprep.subr.bf16.mxu0 0
        %2284 = vmatpush1.bf16.msra.mxu0 0
        %2285 = vmatprep.subr.bf16.mxu0 0
        %2286 = vmatpush1.bf16.msra.mxu0 0
        %2287 = vmatprep.subr.bf16.mxu0 0
        %2288 = vmatpush1.bf16.msra.mxu0 0
        %2289 = vmatprep.subr.bf16.mxu0 0
        %2290 = vmatpush1.bf16.msra.mxu0 0
        %2291 = vmatprep.mubr.bf16.mxu0 0
        %2292 = vmatmul.mubr.bf16.gmra.mrb[0].mxu0 %v2257
        %v2293 = vpop.f32.mrb[0].mxu0
        %v2294 = vadd.f32 0.0, %v2293
        %v2295 = vpop.f32.mrb[0].mxu0
        %v2296 = vpop.f32.mrb[0].mxu0
        %v2297 = vpop.f32.mrb[0].mxu0
        %2298 = vdwg.mxu0
        %2299 = vrot.lane.b32.xlu0 %v1973, 104
        %v2300 = vpop.permute.xlu0 %2299
        %2301 = vrot.lane.b32.xlu0 %v1974, 104
        %v2302 = vpop.permute.xlu0 %2301
        %v2304 = vsel %vm538, %v2300, 0
        %v2307 = vsel %vm538, %v2302, 0
        %2309 = vmatprep.subr.bf16.mxu0 0
        %2310 = vmatpush1.bf16.xpose.msra.mxu0 %v2307
        %2311 = vmatprep.subr.bf16.mxu0 0
        %2312 = vmatpush1.bf16.xpose.msra.mxu0 0
        %2313 = vmatprep.subr.bf16.mxu0 0
        %2314 = vmatpush1.bf16.xpose.msra.mxu0 0
        %2315 = vmatprep.subr.bf16.mxu0 0
        %2316 = vmatpush1.bf16.xpose.msra.mxu0 0
        %2317 = vmatprep.subr.bf16.mxu0 0
        %2318 = vmatpush1.bf16.xpose.msra.mxu0 0
        %2319 = vmatprep.subr.bf16.mxu0 0
        %2320 = vmatpush1.bf16.xpose.msra.mxu0 0
        %2321 = vmatprep.subr.bf16.mxu0 0
        %2322 = vmatpush1.bf16.xpose.msra.mxu0 0
        %2323 = vmatprep.subr.bf16.mxu0 0
        %2324 = vmatpush1.bf16.xpose.msra.mxu0 0
        %2325 = vmatprep.subr.bf16.mxu0 0
        %2326 = vmatpush1.bf16.xpose.msra.mxu0 0
        %2327 = vmatprep.subr.bf16.mxu0 0
        %2328 = vmatpush1.bf16.xpose.msra.mxu0 0
        %2329 = vmatprep.subr.bf16.mxu0 0
        %2330 = vmatpush1.bf16.xpose.msra.mxu0 0
        %2331 = vmatprep.subr.bf16.mxu0 0
        %2332 = vmatpush1.bf16.xpose.msra.mxu0 0
        %2333 = vmatprep.subr.bf16.mxu0 0
        %2334 = vmatpush1.bf16.xpose.msra.mxu0 0
        %2335 = vmatprep.subr.bf16.mxu0 0
        %2336 = vmatpush1.bf16.xpose.msra.mxu0 0
        %2337 = vmatprep.subr.bf16.mxu0 0
        %2338 = vmatpush1.bf16.xpose.msra.mxu0 0
        %2339 = vmatprep.subr.bf16.mxu0 0
        %2340 = vmatpush1.bf16.xpose.msra.mxu0 0
        %2341 = vmatprep.mubr.bf16.mxu0 0
        %2342 = vmatmul.mubr.bf16.gmra.mrb[0].mxu0 %v2304
        %v2343 = vpop.f32.mrb[0].mxu0
        %v2344 = vadd.f32 %v1209, %v2343
        %v2345 = vpop.f32.mrb[0].mxu0
        %v2346 = vpop.f32.mrb[0].mxu0
        %v2347 = vpop.f32.mrb[0].mxu0
        %2348 = vdwg.mxu0
        %v2349 = vsel %vm991, %v2344, -inf
        %2350 = vmax.xlane.f32.xlu0 %v2349
        %v2351 = vpop.xlane.xlu0 %2350
        %v2352 = vsub.f32 %v2344, %v2351
        %v2353 = vmul.f32 %v2352, 1.442695
        %v2354 = vpow.pop %v2353
        %v2355 = vsel %vm991, %v2354, 0.0
        %2356 = vadd.xlane.f32.xlu0 %v2355
        %v2357 = vpop.xlane.xlu0 %2356
        %v2358 = vrcp.pop %v2357
        %v2359 = vmul.f32 %v2354, %v2358
        %v2360 = vpack.c.bf16 %v2359, %v2359
        %2361 = vrot.lane.b32.xlu0 %v1975, 72
        %v2362 = vpop.permute.xlu0 %2361
        %v2365 = vsel %vm991, %v2360, 0
        %2367 = vmatprep.subr.bf16.mxu0 0
        %2368 = vmatpush1.bf16.msra.mxu0 %v2362
        %2369 = vmatprep.subr.bf16.mxu0 0
        %2370 = vmatpush1.bf16.msra.mxu0 0
        %2371 = vmatprep.subr.bf16.mxu0 0
        %2372 = vmatpush1.bf16.msra.mxu0 0
        %2373 = vmatprep.subr.bf16.mxu0 0
        %2374 = vmatpush1.bf16.msra.mxu0 0
        %2375 = vmatprep.subr.bf16.mxu0 0
        %2376 = vmatpush1.bf16.msra.mxu0 0
        %2377 = vmatprep.subr.bf16.mxu0 0
        %2378 = vmatpush1.bf16.msra.mxu0 0
        %2379 = vmatprep.subr.bf16.mxu0 0
        %2380 = vmatpush1.bf16.msra.mxu0 0
        %2381 = vmatprep.subr.bf16.mxu0 0
        %2382 = vmatpush1.bf16.msra.mxu0 0
        %2383 = vmatprep.subr.bf16.mxu0 0
        %2384 = vmatpush1.bf16.msra.mxu0 0
        %2385 = vmatprep.subr.bf16.mxu0 0
        %2386 = vmatpush1.bf16.msra.mxu0 0
        %2387 = vmatprep.subr.bf16.mxu0 0
        %2388 = vmatpush1.bf16.msra.mxu0 0
        %2389 = vmatprep.subr.bf16.mxu0 0
        %2390 = vmatpush1.bf16.msra.mxu0 0
        %2391 = vmatprep.subr.bf16.mxu0 0
        %2392 = vmatpush1.bf16.msra.mxu0 0
        %2393 = vmatprep.subr.bf16.mxu0 0
        %2394 = vmatpush1.bf16.msra.mxu0 0
        %2395 = vmatprep.subr.bf16.mxu0 0
        %2396 = vmatpush1.bf16.msra.mxu0 0
        %2397 = vmatprep.subr.bf16.mxu0 0
        %2398 = vmatpush1.bf16.msra.mxu0 0
        %2399 = vmatprep.mubr.bf16.mxu0 0
        %2400 = vmatmul.mubr.bf16.gmra.mrb[0].mxu0 %v2365
        %v2401 = vpop.f32.mrb[0].mxu0
        %v2402 = vadd.f32 0.0, %v2401
        %v2403 = vpop.f32.mrb[0].mxu0
        %v2404 = vpop.f32.mrb[0].mxu0
        %v2405 = vpop.f32.mrb[0].mxu0
        %2406 = vdwg.mxu0
        %2408 = vrot.lane.b32.xlu0 %v2186, 8
        %v2409 = vpop.permute.xlu0 %2408
        %2412 = vrot.lane.b32.xlu0 %v2294, 16
        %v2413 = vpop.permute.xlu0 %2412
        %2416 = vrot.lane.b32.xlu0 %v2402, 24
        %v2417 = vpop.permute.xlu0 %2416
        %v2419 = vsel %vm538, %v2076, %v2409
        %v2420 = vsel %vm991, %v2419, %v2413
        %v2421 = vsel %vm993, %v2420, %v2417
        %v2422 = vpack.c.bf16 %v2421, %v2421
        %v2423 = vld [vmem:[#allocation8 + $0x70] sm:$0xf]
        %v2424 = vld [vmem:[#allocation8 + $0x74] sm:$0xf]
        %v2425 = vld [vmem:[#allocation8 + $0x78] sm:$0xf]
        %v2426 = vld [vmem:[#allocation8 + $0x7c] sm:$0xf]
        %v2431 = vunpack.c.l.b16 %v2423
        %v2432 = vunpack.c.l.b16 %v2424
        %v2433 = vunpack.c.l.b16 %v2425
        %v2434 = vunpack.c.l.b16 %v2426
        %v2435 = vpack.c.b16 %v2432, %v2431
        %v2436 = vpack.c.b16 %v2434, %v2433
        %v2440 = vsel %vm418, %v2422, 0
        %2442 = vmatprep.subr.bf16.mxu0 0
        %2443 = vmatpush1.bf16.msra.mxu0 %v2435
        %2444 = vmatprep.subr.bf16.mxu0 0
        %2445 = vmatpush1.bf16.msra.mxu0 %v2436
        %2446 = vmatprep.subr.bf16.mxu0 0
        %2447 = vmatpush1.bf16.msra.mxu0 0
        %2448 = vmatprep.subr.bf16.mxu0 0
        %2449 = vmatpush1.bf16.msra.mxu0 0
        %2450 = vmatprep.subr.bf16.mxu0 0
        %2451 = vmatpush1.bf16.msra.mxu0 0
        %2452 = vmatprep.subr.bf16.mxu0 0
        %2453 = vmatpush1.bf16.msra.mxu0 0
        %2454 = vmatprep.subr.bf16.mxu0 0
        %2455 = vmatpush1.bf16.msra.mxu0 0
        %2456 = vmatprep.subr.bf16.mxu0 0
        %2457 = vmatpush1.bf16.msra.mxu0 0
        %2458 = vmatprep.subr.bf16.mxu0 0
        %2459 = vmatpush1.bf16.msra.mxu0 0
        %2460 = vmatprep.subr.bf16.mxu0 0
        %2461 = vmatpush1.bf16.msra.mxu0 0
        %2462 = vmatprep.subr.bf16.mxu0 0
        %2463 = vmatpush1.bf16.msra.mxu0 0
        %2464 = vmatprep.subr.bf16.mxu0 0
        %2465 = vmatpush1.bf16.msra.mxu0 0
        %2466 = vmatprep.subr.bf16.mxu0 0
        %2467 = vmatpush1.bf16.msra.mxu0 0
        %2468 = vmatprep.subr.bf16.mxu0 0
        %2469 = vmatpush1.bf16.msra.mxu0 0
        %2470 = vmatprep.subr.bf16.mxu0 0
        %2471 = vmatpush1.bf16.msra.mxu0 0
        %2472 = vmatprep.subr.bf16.mxu0 0
        %2473 = vmatpush1.bf16.msra.mxu0 0
        %2474 = vmatprep.mubr.bf16.mxu0 0
        %2475 = vmatmul.mubr.bf16.gmra.mrb[0].mxu0 %v2440
        %v2476 = vpop.f32.mrb[0].mxu0
        %v2477 = vadd.f32 0.0, %v2476
        %v2478 = vpop.f32.mrb[0].mxu0
        %v2479 = vpop.f32.mrb[0].mxu0
        %v2480 = vpop.f32.mrb[0].mxu0
        %2481 = vdwg.mxu0
        %v2482 = vadd.f32 %v1060, %v2477
        %v2483 = vlaneseq
        %v2484 = vshrl.u32 %v2483, 7
        %v2485 = vsub.s32 0, %v2484
        %v2486 = vrot.slane %v1800, %v2485
        %v2487 = vadd.f32 %v2482, %v2486
        %v2488 = vld [vmem:[#allocation7 + $0x12] sm:$0x1]
        %v2489 = vld [vmem:[#allocation7 + $0x13] sm:$0x1]
        %v2490 = vld [vmem:[#allocation7 + $0x14] sm:$0x1]
        %v2491 = vld [vmem:[#allocation7 + $0x15] sm:$0x1]
        %v2492 = vld [vmem:[#allocation7 + $0x16] sm:$0x1]
        %v2493 = vld [vmem:[#allocation7 + $0x17] sm:$0x1]
        %v2494 = vsel %vm1067, %v1793, 0.0
        %2495 = vadd.xlane.f32.xlu0 %v2494
        %v2496 = vpop.xlane.xlu0 %2495
        %v2497 = vsel %vm1067, %v1794, 0.0
        %2498 = vadd.xlane.f32.xlu0 %v2497
        %v2499 = vpop.xlane.xlu0 %2498
        %v2500 = vmul.f32 %v2496, %v1074
        %v2501 = vmul.f32 %v2499, %v1074
        %v2502 = vsub.f32 %v1793, %v2500
        %v2503 = vsub.f32 %v1794, %v2501
        %v2504 = vmul.f32 %v2502, %v2502
        %v2505 = vmul.f32 %v2503, %v2503
        %v2506 = vsel %vm1067, %v2504, 0.0
        %2507 = vadd.xlane.f32.xlu0 %v2506
        %v2508 = vpop.xlane.xlu0 %2507
        %v2509 = vsel %vm1067, %v2505, 0.0
        %2510 = vadd.xlane.f32.xlu0 %v2509
        %v2511 = vpop.xlane.xlu0 %2510
        %v2512 = vmul.f32 %v2508, %v1074
        %v2513 = vmul.f32 %v2511, %v1074
        %v2514 = vadd.f32 %v2512, 1e-05
        %v2515 = vadd.f32 %v2513, 1e-05
        %v2516 = vrsqrt.pop %v2514
        %v2517 = vrsqrt.pop %v2515
        %v2518 = vmul.f32 %v2502, %v2516
        %v2519 = vmul.f32 %v2503, %v2517
        %v2520 = vlaneseq
        %v2521 = vshrl.u32 %v2520, 7
        %v2522 = vsub.s32 0, %v2521
        %v2523 = vrot.slane %v2488, %v2522
        %v2524 = vmul.f32 %v2518, %v2523
        %v2525 = vmul.f32 %v2519, %v2523
        %v2526 = vlaneseq
        %v2527 = vshrl.u32 %v2526, 7
        %v2528 = vsub.s32 0, %v2527
        %v2529 = vrot.slane %v2489, %v2528
        %v2530 = vadd.f32 %v2524, %v2529
        %v2531 = vadd.f32 %v2525, %v2529
        %v2532 = vpack.c.bf16 %v2531, %v2530
        %v2533 = vld [vmem:[#allocation8 + $0x80] sm:$0xf]
        %v2534 = vld [vmem:[#allocation8 + $0x84] sm:$0xf]
        %v2535 = vld [vmem:[#allocation8 + $0x88] sm:$0xf]
        %v2536 = vld [vmem:[#allocation8 + $0x8c] sm:$0xf]
        %v2537 = vld [vmem:[#allocation8 + $0x90] sm:$0xf]
        %v2538 = vld [vmem:[#allocation8 + $0x94] sm:$0xf]
        %v2539 = vlaneseq
        %v2540 = vshrl.u32 %v2539, 7
        %v2541 = vsub.s32 0, %v2540
        %v2542 = vrot.slane %v2490, %v2541
        %v2549 = vunpack.c.l.b16 %v2533
        %v2550 = vunpack.c.l.b16 %v2534
        %v2551 = vunpack.c.l.b16 %v2535
        %v2552 = vunpack.c.l.b16 %v2536
        %v2553 = vunpack.c.l.b16 %v2537
        %v2554 = vunpack.c.l.b16 %v2538
        %v2555 = vpack.c.b16 %v2550, %v2549
        %v2556 = vpack.c.b16 %v2552, %v2551
        %v2557 = vpack.c.b16 %v2554, %v2553
        %v2562 = vsel %vm1067, %v2532, 0
        %2564 = vmatprep.subr.bf16.mxu0 0
        %2565 = vmatpush1.bf16.msra.mxu0 %v2555
        %2566 = vmatprep.subr.bf16.mxu0 0
        %2567 = vmatpush1.bf16.msra.mxu0 %v2556
        %2568 = vmatprep.subr.bf16.mxu0 0
        %2569 = vmatpush1.bf16.msra.mxu0 %v2557
        %2570 = vmatprep.subr.bf16.mxu0 0
        %2571 = vmatpush1.bf16.msra.mxu0 0
        %2572 = vmatprep.subr.bf16.mxu0 0
        %2573 = vmatpush1.bf16.msra.mxu0 0
        %2574 = vmatprep.subr.bf16.mxu0 0
        %2575 = vmatpush1.bf16.msra.mxu0 0
        %2576 = vmatprep.subr.bf16.mxu0 0
        %2577 = vmatpush1.bf16.msra.mxu0 0
        %2578 = vmatprep.subr.bf16.mxu0 0
        %2579 = vmatpush1.bf16.msra.mxu0 0
        %2580 = vmatprep.subr.bf16.mxu0 0
        %2581 = vmatpush1.bf16.msra.mxu0 0
        %2582 = vmatprep.subr.bf16.mxu0 0
        %2583 = vmatpush1.bf16.msra.mxu0 0
        %2584 = vmatprep.subr.bf16.mxu0 0
        %2585 = vmatpush1.bf16.msra.mxu0 0
        %2586 = vmatprep.subr.bf16.mxu0 0
        %2587 = vmatpush1.bf16.msra.mxu0 0
        %2588 = vmatprep.subr.bf16.mxu0 0
        %2589 = vmatpush1.bf16.msra.mxu0 0
        %2590 = vmatprep.subr.bf16.mxu0 0
        %2591 = vmatpush1.bf16.msra.mxu0 0
        %2592 = vmatprep.subr.bf16.mxu0 0
        %2593 = vmatpush1.bf16.msra.mxu0 0
        %2594 = vmatprep.subr.bf16.mxu0 0
        %2595 = vmatpush1.bf16.msra.mxu0 0
        %2596 = vmatprep.mubr.bf16.mxu0 0
        %2597 = vmatmul.mubr.bf16.gmra.mrb[0].mxu0 %v2562
        %v2598 = vpop.f32.mrb[0].mxu0
        %v2599 = vadd.f32 %v2542, %v2598
        %v2600 = vpop.f32.mrb[0].mxu0
        %v2601 = vpop.f32.mrb[0].mxu0
        %v2602 = vadd.f32 %v2542, %v2601
        %v2603 = vpop.f32.mrb[0].mxu0
        %2604 = vdwg.mxu0
        %v2605 = vpack.c.bf16 %v1060, %v1060
        %v2606 = vld [vmem:[#allocation8 + $0x98] sm:$0xf]
        %v2607 = vld [vmem:[#allocation8 + $0x9c] sm:$0xf]
        %v2608 = vld [vmem:[#allocation8 + $0xa0] sm:$0xf]
        %v2609 = vld [vmem:[#allocation8 + $0xa4] sm:$0xf]
        %v2614 = vunpack.c.l.b16 %v2606
        %v2615 = vunpack.c.l.b16 %v2607
        %v2616 = vunpack.c.l.b16 %v2608
        %v2617 = vunpack.c.l.b16 %v2609
        %v2618 = vpack.c.b16 %v2615, %v2614
        %v2619 = vpack.c.b16 %v2617, %v2616
        %v2623 = vsel %vm418, %v2605, 0
        %2625 = vmatprep.subr.bf16.mxu0 0
        %2626 = vmatpush1.bf16.msra.mxu0 %v2618
        %2627 = vmatprep.subr.bf16.mxu0 0
        %2628 = vmatpush1.bf16.msra.mxu0 %v2619
        %2629 = vmatprep.subr.bf16.mxu0 0
        %2630 = vmatpush1.bf16.msra.mxu0 0
        %2631 = vmatprep.subr.bf16.mxu0 0
        %2632 = vmatpush1.bf16.msra.mxu0 0
        %2633 = vmatprep.subr.bf16.mxu0 0
        %2634 = vmatpush1.bf16.msra.mxu0 0
        %2635 = vmatprep.subr.bf16.mxu0 0
        %2636 = vmatpush1.bf16.msra.mxu0 0
        %2637 = vmatprep.subr.bf16.mxu0 0
        %2638 = vmatpush1.bf16.msra.mxu0 0
        %2639 = vmatprep.subr.bf16.mxu0 0
        %2640 = vmatpush1.bf16.msra.mxu0 0
        %2641 = vmatprep.subr.bf16.mxu0 0
        %2642 = vmatpush1.bf16.msra.mxu0 0
        %2643 = vmatprep.subr.bf16.mxu0 0
        %2644 = vmatpush1.bf16.msra.mxu0 0
        %2645 = vmatprep.subr.bf16.mxu0 0
        %2646 = vmatpush1.bf16.msra.mxu0 0
        %2647 = vmatprep.subr.bf16.mxu0 0
        %2648 = vmatpush1.bf16.msra.mxu0 0
        %2649 = vmatprep.subr.bf16.mxu0 0
        %2650 = vmatpush1.bf16.msra.mxu0 0
        %2651 = vmatprep.subr.bf16.mxu0 0
        %2652 = vmatpush1.bf16.msra.mxu0 0
        %2653 = vmatprep.subr.bf16.mxu0 0
        %2654 = vmatpush1.bf16.msra.mxu0 0
        %2655 = vmatprep.subr.bf16.mxu0 0
        %2656 = vmatpush1.bf16.msra.mxu0 0
        %2657 = vmatprep.mubr.bf16.mxu0 0
        %2658 = vmatmul.mubr.bf16.gmra.mrb[0].mxu0 %v2623
        %v2659 = vpop.f32.mrb[0].mxu0
        %v2660 = vadd.f32 0.0, %v2659
        %v2661 = vpop.f32.mrb[0].mxu0
        %v2662 = vpop.f32.mrb[0].mxu0
        %v2663 = vpop.f32.mrb[0].mxu0
        %2664 = vdwg.mxu0
        %v2665 = vlaneseq
        %v2666 = vshrl.u32 %v2665, 7
        %v2667 = vsub.s32 0, %v2666
        %v2668 = vrot.slane %v2491, %v2667
        %v2669 = vadd.f32 %v2660, %v2668
        %v2670 = vlaneseq
        %v2671 = vshrl.u32 %v2670, 7
        %v2672 = vsub.s32 0, %v2671
        %v2673 = vrot.slane %v2492, %v2672
        %2675 = vrot.lane.b32.xlu0 %v2673, 32
        %v2676 = vpop.permute.xlu0 %2675
        %v2678 = vadd.f32 %v2660, %v2676
        %v2679 = vpack.c.bf16 %v2602, %v2599
        %v2680 = vpack.c.bf16 %v2669, %v2669
        %v2681 = vpack.c.bf16 %v2678, %v2678
        %v2683 = vsel %vm538, %v2679, 0
        %v2686 = vsel %vm538, %v2680, 0
        %2688 = vmatprep.subr.bf16.mxu0 0
        %2689 = vmatpush1.bf16.xpose.msra.mxu0 %v2686
        %2690 = vmatprep.subr.bf16.mxu0 0
        %2691 = vmatpush1.bf16.xpose.msra.mxu0 0
        %2692 = vmatprep.subr.bf16.mxu0 0
        %2693 = vmatpush1.bf16.xpose.msra.mxu0 0
        %2694 = vmatprep.subr.bf16.mxu0 0
        %2695 = vmatpush1.bf16.xpose.msra.mxu0 0
        %2696 = vmatprep.subr.bf16.mxu0 0
        %2697 = vmatpush1.bf16.xpose.msra.mxu0 0
        %2698 = vmatprep.subr.bf16.mxu0 0
        %2699 = vmatpush1.bf16.xpose.msra.mxu0 0
        %2700 = vmatprep.subr.bf16.mxu0 0
        %2701 = vmatpush1.bf16.xpose.msra.mxu0 0
        %2702 = vmatprep.subr.bf16.mxu0 0
        %2703 = vmatpush1.bf16.xpose.msra.mxu0 0
        %2704 = vmatprep.subr.bf16.mxu0 0
        %2705 = vmatpush1.bf16.xpose.msra.mxu0 0
        %2706 = vmatprep.subr.bf16.mxu0 0
        %2707 = vmatpush1.bf16.xpose.msra.mxu0 0
        %2708 = vmatprep.subr.bf16.mxu0 0
        %2709 = vmatpush1.bf16.xpose.msra.mxu0 0
        %2710 = vmatprep.subr.bf16.mxu0 0
        %2711 = vmatpush1.bf16.xpose.msra.mxu0 0
        %2712 = vmatprep.subr.bf16.mxu0 0
        %2713 = vmatpush1.bf16.xpose.msra.mxu0 0
        %2714 = vmatprep.subr.bf16.mxu0 0
        %2715 = vmatpush1.bf16.xpose.msra.mxu0 0
        %2716 = vmatprep.subr.bf16.mxu0 0
        %2717 = vmatpush1.bf16.xpose.msra.mxu0 0
        %2718 = vmatprep.subr.bf16.mxu0 0
        %2719 = vmatpush1.bf16.xpose.msra.mxu0 0
        %2720 = vmatprep.mubr.bf16.mxu0 0
        %2721 = vmatmul.mubr.bf16.gmra.mrb[0].mxu0 %v2683
        %v2722 = vpop.f32.mrb[0].mxu0
        %v2723 = vadd.f32 %v533, %v2722
        %v2724 = vpop.f32.mrb[0].mxu0
        %v2725 = vpop.f32.mrb[0].mxu0
        %v2726 = vadd.f32 %v533, %v2725
        %v2727 = vpop.f32.mrb[0].mxu0
        %2728 = vdwg.mxu0
        %v2729 = vsel %vm538, %v2723, -inf
        %2730 = vmax.xlane.f32.xlu0 %v2729
        %v2731 = vpop.xlane.xlu0 %2730
        %v2732 = vsel %vm538, %v2726, -inf
        %2733 = vmax.xlane.f32.xlu0 %v2732
        %v2734 = vpop.xlane.xlu0 %2733
        %v2735 = vsub.f32 %v2723, %v2731
        %v2736 = vsub.f32 %v2726, %v2734
        %v2737 = vmul.f32 %v2735, 1.442695
        %v2738 = vpow.pop %v2737
        %v2739 = vmul.f32 %v2736, 1.442695
        %v2740 = vpow.pop %v2739
        %v2741 = vsel %vm538, %v2738, 0.0
        %2742 = vadd.xlane.f32.xlu0 %v2741
        %v2743 = vpop.xlane.xlu0 %2742
        %v2744 = vsel %vm538, %v2740, 0.0
        %2745 = vadd.xlane.f32.xlu0 %v2744
        %v2746 = vpop.xlane.xlu0 %2745
        %v2747 = vrcp.pop %v2743
        %v2748 = vrcp.pop %v2746
        %v2749 = vmul.f32 %v2738, %v2747
        %v2750 = vmul.f32 %v2740, %v2748
        %v2751 = vpack.c.bf16 %v2750, %v2749
        %2753 = vrot.lane.b32.xlu0 %v2681, 96
        %v2754 = vpop.permute.xlu0 %2753
        %v2756 = vsel %vm538, %v2751, 0
        %v2759 = vsel %vm603, %v2754, 0
        %2761 = vmatprep.subr.bf16.mxu0 0
        %2762 = vmatpush1.bf16.msra.mxu0 %v2759
        %2763 = vmatprep.subr.bf16.mxu0 0
        %2764 = vmatpush1.bf16.msra.mxu0 0
        %2765 = vmatprep.subr.bf16.mxu0 0
        %2766 = vmatpush1.bf16.msra.mxu0 0
        %2767 = vmatprep.subr.bf16.mxu0 0
        %2768 = vmatpush1.bf16.msra.mxu0 0
        %2769 = vmatprep.subr.bf16.mxu0 0
        %2770 = vmatpush1.bf16.msra.mxu0 0
        %2771 = vmatprep.subr.bf16.mxu0 0
        %2772 = vmatpush1.bf16.msra.mxu0 0
        %2773 = vmatprep.subr.bf16.mxu0 0
        %2774 = vmatpush1.bf16.msra.mxu0 0
        %2775 = vmatprep.subr.bf16.mxu0 0
        %2776 = vmatpush1.bf16.msra.mxu0 0
        %2777 = vmatprep.subr.bf16.mxu0 0
        %2778 = vmatpush1.bf16.msra.mxu0 0
        %2779 = vmatprep.subr.bf16.mxu0 0
        %2780 = vmatpush1.bf16.msra.mxu0 0
        %2781 = vmatprep.subr.bf16.mxu0 0
        %2782 = vmatpush1.bf16.msra.mxu0 0
        %2783 = vmatprep.subr.bf16.mxu0 0
        %2784 = vmatpush1.bf16.msra.mxu0 0
        %2785 = vmatprep.subr.bf16.mxu0 0
        %2786 = vmatpush1.bf16.msra.mxu0 0
        %2787 = vmatprep.subr.bf16.mxu0 0
        %2788 = vmatpush1.bf16.msra.mxu0 0
        %2789 = vmatprep.subr.bf16.mxu0 0
        %2790 = vmatpush1.bf16.msra.mxu0 0
        %2791 = vmatprep.subr.bf16.mxu0 0
        %2792 = vmatpush1.bf16.msra.mxu0 0
        %2793 = vmatprep.mubr.bf16.mxu0 0
        %2794 = vmatmul.mubr.bf16.gmra.mrb[0].mxu0 %v2756
        %v2795 = vpop.f32.mrb[0].mxu0
        %v2796 = vadd.f32 0.0, %v2795
        %v2797 = vpop.f32.mrb[0].mxu0
        %v2798 = vpop.f32.mrb[0].mxu0
        %v2799 = vadd.f32 0.0, %v2798
        %v2800 = vpop.f32.mrb[0].mxu0
        %2801 = vdwg.mxu0
        %2803 = vrot.lane.b32.xlu0 %v2679, 120
        %v2804 = vpop.permute.xlu0 %2803
        %2806 = vrot.lane.b32.xlu0 %v2680, 120
        %v2807 = vpop.permute.xlu0 %2806
        %v2809 = vsel %vm538, %v2804, 0
        %v2812 = vsel %vm538, %v2807, 0
        %2814 = vmatprep.subr.bf16.mxu0 0
        %2815 = vmatpush1.bf16.xpose.msra.mxu0 %v2812
        %2816 = vmatprep.subr.bf16.mxu0 0
        %2817 = vmatpush1.bf16.xpose.msra.mxu0 0
        %2818 = vmatprep.subr.bf16.mxu0 0
        %2819 = vmatpush1.bf16.xpose.msra.mxu0 0
        %2820 = vmatprep.subr.bf16.mxu0 0
        %2821 = vmatpush1.bf16.xpose.msra.mxu0 0
        %2822 = vmatprep.subr.bf16.mxu0 0
        %2823 = vmatpush1.bf16.xpose.msra.mxu0 0
        %2824 = vmatprep.subr.bf16.mxu0 0
        %2825 = vmatpush1.bf16.xpose.msra.mxu0 0
        %2826 = vmatprep.subr.bf16.mxu0 0
        %2827 = vmatpush1.bf16.xpose.msra.mxu0 0
        %2828 = vmatprep.subr.bf16.mxu0 0
        %2829 = vmatpush1.bf16.xpose.msra.mxu0 0
        %2830 = vmatprep.subr.bf16.mxu0 0
        %2831 = vmatpush1.bf16.xpose.msra.mxu0 0
        %2832 = vmatprep.subr.bf16.mxu0 0
        %2833 = vmatpush1.bf16.xpose.msra.mxu0 0
        %2834 = vmatprep.subr.bf16.mxu0 0
        %2835 = vmatpush1.bf16.xpose.msra.mxu0 0
        %2836 = vmatprep.subr.bf16.mxu0 0
        %2837 = vmatpush1.bf16.xpose.msra.mxu0 0
        %2838 = vmatprep.subr.bf16.mxu0 0
        %2839 = vmatpush1.bf16.xpose.msra.mxu0 0
        %2840 = vmatprep.subr.bf16.mxu0 0
        %2841 = vmatpush1.bf16.xpose.msra.mxu0 0
        %2842 = vmatprep.subr.bf16.mxu0 0
        %2843 = vmatpush1.bf16.xpose.msra.mxu0 0
        %2844 = vmatprep.subr.bf16.mxu0 0
        %2845 = vmatpush1.bf16.xpose.msra.mxu0 0
        %2846 = vmatprep.mubr.bf16.mxu0 0
        %2847 = vmatmul.mubr.bf16.gmra.mrb[0].mxu0 %v2809
        %v2848 = vpop.f32.mrb[0].mxu0
        %v2849 = vadd.f32 %v533, %v2848
        %v2850 = vpop.f32.mrb[0].mxu0
        %v2851 = vpop.f32.mrb[0].mxu0
        %v2852 = vadd.f32 %v533, %v2851
        %v2853 = vpop.f32.mrb[0].mxu0
        %2854 = vdwg.mxu0
        %v2855 = vsel %vm538, %v2849, -inf
        %2856 = vmax.xlane.f32.xlu0 %v2855
        %v2857 = vpop.xlane.xlu0 %2856
        %v2858 = vsel %vm538, %v2852, -inf
        %2859 = vmax.xlane.f32.xlu0 %v2858
        %v2860 = vpop.xlane.xlu0 %2859
        %v2861 = vsub.f32 %v2849, %v2857
        %v2862 = vsub.f32 %v2852, %v2860
        %v2863 = vmul.f32 %v2861, 1.442695
        %v2864 = vpow.pop %v2863
        %v2865 = vmul.f32 %v2862, 1.442695
        %v2866 = vpow.pop %v2865
        %v2867 = vsel %vm538, %v2864, 0.0
        %2868 = vadd.xlane.f32.xlu0 %v2867
        %v2869 = vpop.xlane.xlu0 %2868
        %v2870 = vsel %vm538, %v2866, 0.0
        %2871 = vadd.xlane.f32.xlu0 %v2870
        %v2872 = vpop.xlane.xlu0 %2871
        %v2873 = vrcp.pop %v2869
        %v2874 = vrcp.pop %v2872
        %v2875 = vmul.f32 %v2864, %v2873
        %v2876 = vmul.f32 %v2866, %v2874
        %v2877 = vpack.c.bf16 %v2876, %v2875
        %2878 = vrot.lane.b32.xlu0 %v2681, 88
        %v2879 = vpop.permute.xlu0 %2878
        %v2881 = vsel %vm538, %v2877, 0
        %v2884 = vsel %vm603, %v2879, 0
        %2886 = vmatprep.subr.bf16.mxu0 0
        %2887 = vmatpush1.bf16.msra.mxu0 %v2884
        %2888 = vmatprep.subr.bf16.mxu0 0
        %2889 = vmatpush1.bf16.msra.mxu0 0
        %2890 = vmatprep.subr.bf16.mxu0 0
        %2891 = vmatpush1.bf16.msra.mxu0 0
        %2892 = vmatprep.subr.bf16.mxu0 0
        %2893 = vmatpush1.bf16.msra.mxu0 0
        %2894 = vmatprep.subr.bf16.mxu0 0
        %2895 = vmatpush1.bf16.msra.mxu0 0
        %2896 = vmatprep.subr.bf16.mxu0 0
        %2897 = vmatpush1.bf16.msra.mxu0 0
        %2898 = vmatprep.subr.bf16.mxu0 0
        %2899 = vmatpush1.bf16.msra.mxu0 0
        %2900 = vmatprep.subr.bf16.mxu0 0
        %2901 = vmatpush1.bf16.msra.mxu0 0
        %2902 = vmatprep.subr.bf16.mxu0 0
        %2903 = vmatpush1.bf16.msra.mxu0 0
        %2904 = vmatprep.subr.bf16.mxu0 0
        %2905 = vmatpush1.bf16.msra.mxu0 0
        %2906 = vmatprep.subr.bf16.mxu0 0
        %2907 = vmatpush1.bf16.msra.mxu0 0
        %2908 = vmatprep.subr.bf16.mxu0 0
        %2909 = vmatpush1.bf16.msra.mxu0 0
        %2910 = vmatprep.subr.bf16.mxu0 0
        %2911 = vmatpush1.bf16.msra.mxu0 0
        %2912 = vmatprep.subr.bf16.mxu0 0
        %2913 = vmatpush1.bf16.msra.mxu0 0
        %2914 = vmatprep.subr.bf16.mxu0 0
        %2915 = vmatpush1.bf16.msra.mxu0 0
        %2916 = vmatprep.subr.bf16.mxu0 0
        %2917 = vmatpush1.bf16.msra.mxu0 0
        %2918 = vmatprep.mubr.bf16.mxu0 0
        %2919 = vmatmul.mubr.bf16.gmra.mrb[0].mxu0 %v2881
        %v2920 = vpop.f32.mrb[0].mxu0
        %v2921 = vadd.f32 0.0, %v2920
        %v2922 = vpop.f32.mrb[0].mxu0
        %v2923 = vpop.f32.mrb[0].mxu0
        %v2924 = vadd.f32 0.0, %v2923
        %v2925 = vpop.f32.mrb[0].mxu0
        %2926 = vdwg.mxu0
        %2927 = vrot.lane.b32.xlu0 %v2679, 112
        %v2928 = vpop.permute.xlu0 %2927
        %2929 = vrot.lane.b32.xlu0 %v2680, 112
        %v2930 = vpop.permute.xlu0 %2929
        %v2932 = vsel %vm538, %v2928, 0
        %v2935 = vsel %vm538, %v2930, 0
        %2937 = vmatprep.subr.bf16.mxu0 0
        %2938 = vmatpush1.bf16.xpose.msra.mxu0 %v2935
        %2939 = vmatprep.subr.bf16.mxu0 0
        %2940 = vmatpush1.bf16.xpose.msra.mxu0 0
        %2941 = vmatprep.subr.bf16.mxu0 0
        %2942 = vmatpush1.bf16.xpose.msra.mxu0 0
        %2943 = vmatprep.subr.bf16.mxu0 0
        %2944 = vmatpush1.bf16.xpose.msra.mxu0 0
        %2945 = vmatprep.subr.bf16.mxu0 0
        %2946 = vmatpush1.bf16.xpose.msra.mxu0 0
        %2947 = vmatprep.subr.bf16.mxu0 0
        %2948 = vmatpush1.bf16.xpose.msra.mxu0 0
        %2949 = vmatprep.subr.bf16.mxu0 0
        %2950 = vmatpush1.bf16.xpose.msra.mxu0 0
        %2951 = vmatprep.subr.bf16.mxu0 0
        %2952 = vmatpush1.bf16.xpose.msra.mxu0 0
        %2953 = vmatprep.subr.bf16.mxu0 0
        %2954 = vmatpush1.bf16.xpose.msra.mxu0 0
        %2955 = vmatprep.subr.bf16.mxu0 0
        %2956 = vmatpush1.bf16.xpose.msra.mxu0 0
        %2957 = vmatprep.subr.bf16.mxu0 0
        %2958 = vmatpush1.bf16.xpose.msra.mxu0 0
        %2959 = vmatprep.subr.bf16.mxu0 0
        %2960 = vmatpush1.bf16.xpose.msra.mxu0 0
        %2961 = vmatprep.subr.bf16.mxu0 0
        %2962 = vmatpush1.bf16.xpose.msra.mxu0 0
        %2963 = vmatprep.subr.bf16.mxu0 0
        %2964 = vmatpush1.bf16.xpose.msra.mxu0 0
        %2965 = vmatprep.subr.bf16.mxu0 0
        %2966 = vmatpush1.bf16.xpose.msra.mxu0 0
        %2967 = vmatprep.subr.bf16.mxu0 0
        %2968 = vmatpush1.bf16.xpose.msra.mxu0 0
        %2969 = vmatprep.mubr.bf16.mxu0 0
        %2970 = vmatmul.mubr.bf16.gmra.mrb[0].mxu0 %v2932
        %v2971 = vpop.f32.mrb[0].mxu0
        %v2972 = vadd.f32 %v533, %v2971
        %v2973 = vpop.f32.mrb[0].mxu0
        %v2974 = vpop.f32.mrb[0].mxu0
        %v2975 = vadd.f32 %v533, %v2974
        %v2976 = vpop.f32.mrb[0].mxu0
        %2977 = vdwg.mxu0
        %v2978 = vsel %vm538, %v2972, -inf
        %2979 = vmax.xlane.f32.xlu0 %v2978
        %v2980 = vpop.xlane.xlu0 %2979
        %v2981 = vsel %vm538, %v2975, -inf
        %2982 = vmax.xlane.f32.xlu0 %v2981
        %v2983 = vpop.xlane.xlu0 %2982
        %v2984 = vsub.f32 %v2972, %v2980
        %v2985 = vsub.f32 %v2975, %v2983
        %v2986 = vmul.f32 %v2984, 1.442695
        %v2987 = vpow.pop %v2986
        %v2988 = vmul.f32 %v2985, 1.442695
        %v2989 = vpow.pop %v2988
        %v2990 = vsel %vm538, %v2987, 0.0
        %2991 = vadd.xlane.f32.xlu0 %v2990
        %v2992 = vpop.xlane.xlu0 %2991
        %v2993 = vsel %vm538, %v2989, 0.0
        %2994 = vadd.xlane.f32.xlu0 %v2993
        %v2995 = vpop.xlane.xlu0 %2994
        %v2996 = vrcp.pop %v2992
        %v2997 = vrcp.pop %v2995
        %v2998 = vmul.f32 %v2987, %v2996
        %v2999 = vmul.f32 %v2989, %v2997
        %v3000 = vpack.c.bf16 %v2999, %v2998
        %3001 = vrot.lane.b32.xlu0 %v2681, 80
        %v3002 = vpop.permute.xlu0 %3001
        %v3004 = vsel %vm538, %v3000, 0
        %v3007 = vsel %vm603, %v3002, 0
        %3009 = vmatprep.subr.bf16.mxu0 0
        %3010 = vmatpush1.bf16.msra.mxu0 %v3007
        %3011 = vmatprep.subr.bf16.mxu0 0
        %3012 = vmatpush1.bf16.msra.mxu0 0
        %3013 = vmatprep.subr.bf16.mxu0 0
        %3014 = vmatpush1.bf16.msra.mxu0 0
        %3015 = vmatprep.subr.bf16.mxu0 0
        %3016 = vmatpush1.bf16.msra.mxu0 0
        %3017 = vmatprep.subr.bf16.mxu0 0
        %3018 = vmatpush1.bf16.msra.mxu0 0
        %3019 = vmatprep.subr.bf16.mxu0 0
        %3020 = vmatpush1.bf16.msra.mxu0 0
        %3021 = vmatprep.subr.bf16.mxu0 0
        %3022 = vmatpush1.bf16.msra.mxu0 0
        %3023 = vmatprep.subr.bf16.mxu0 0
        %3024 = vmatpush1.bf16.msra.mxu0 0
        %3025 = vmatprep.subr.bf16.mxu0 0
        %3026 = vmatpush1.bf16.msra.mxu0 0
        %3027 = vmatprep.subr.bf16.mxu0 0
        %3028 = vmatpush1.bf16.msra.mxu0 0
        %3029 = vmatprep.subr.bf16.mxu0 0
        %3030 = vmatpush1.bf16.msra.mxu0 0
        %3031 = vmatprep.subr.bf16.mxu0 0
        %3032 = vmatpush1.bf16.msra.mxu0 0
        %3033 = vmatprep.subr.bf16.mxu0 0
        %3034 = vmatpush1.bf16.msra.mxu0 0
        %3035 = vmatprep.subr.bf16.mxu0 0
        %3036 = vmatpush1.bf16.msra.mxu0 0
        %3037 = vmatprep.subr.bf16.mxu0 0
        %3038 = vmatpush1.bf16.msra.mxu0 0
        %3039 = vmatprep.subr.bf16.mxu0 0
        %3040 = vmatpush1.bf16.msra.mxu0 0
        %3041 = vmatprep.mubr.bf16.mxu0 0
        %3042 = vmatmul.mubr.bf16.gmra.mrb[0].mxu0 %v3004
        %v3043 = vpop.f32.mrb[0].mxu0
        %v3044 = vadd.f32 0.0, %v3043
        %v3045 = vpop.f32.mrb[0].mxu0
        %v3046 = vpop.f32.mrb[0].mxu0
        %v3047 = vadd.f32 0.0, %v3046
        %v3048 = vpop.f32.mrb[0].mxu0
        %3049 = vdwg.mxu0
        %3050 = vrot.lane.b32.xlu0 %v2679, 104
        %v3051 = vpop.permute.xlu0 %3050
        %3052 = vrot.lane.b32.xlu0 %v2680, 104
        %v3053 = vpop.permute.xlu0 %3052
        %v3055 = vsel %vm538, %v3051, 0
        %v3058 = vsel %vm538, %v3053, 0
        %3060 = vmatprep.subr.bf16.mxu0 0
        %3061 = vmatpush1.bf16.xpose.msra.mxu0 %v3058
        %3062 = vmatprep.subr.bf16.mxu0 0
        %3063 = vmatpush1.bf16.xpose.msra.mxu0 0
        %3064 = vmatprep.subr.bf16.mxu0 0
        %3065 = vmatpush1.bf16.xpose.msra.mxu0 0
        %3066 = vmatprep.subr.bf16.mxu0 0
        %3067 = vmatpush1.bf16.xpose.msra.mxu0 0
        %3068 = vmatprep.subr.bf16.mxu0 0
        %3069 = vmatpush1.bf16.xpose.msra.mxu0 0
        %3070 = vmatprep.subr.bf16.mxu0 0
        %3071 = vmatpush1.bf16.xpose.msra.mxu0 0
        %3072 = vmatprep.subr.bf16.mxu0 0
        %3073 = vmatpush1.bf16.xpose.msra.mxu0 0
        %3074 = vmatprep.subr.bf16.mxu0 0
        %3075 = vmatpush1.bf16.xpose.msra.mxu0 0
        %3076 = vmatprep.subr.bf16.mxu0 0
        %3077 = vmatpush1.bf16.xpose.msra.mxu0 0
        %3078 = vmatprep.subr.bf16.mxu0 0
        %3079 = vmatpush1.bf16.xpose.msra.mxu0 0
        %3080 = vmatprep.subr.bf16.mxu0 0
        %3081 = vmatpush1.bf16.xpose.msra.mxu0 0
        %3082 = vmatprep.subr.bf16.mxu0 0
        %3083 = vmatpush1.bf16.xpose.msra.mxu0 0
        %3084 = vmatprep.subr.bf16.mxu0 0
        %3085 = vmatpush1.bf16.xpose.msra.mxu0 0
        %3086 = vmatprep.subr.bf16.mxu0 0
        %3087 = vmatpush1.bf16.xpose.msra.mxu0 0
        %3088 = vmatprep.subr.bf16.mxu0 0
        %3089 = vmatpush1.bf16.xpose.msra.mxu0 0
        %3090 = vmatprep.subr.bf16.mxu0 0
        %3091 = vmatpush1.bf16.xpose.msra.mxu0 0
        %3092 = vmatprep.mubr.bf16.mxu0 0
        %3093 = vmatmul.mubr.bf16.gmra.mrb[0].mxu0 %v3055
        %v3094 = vpop.f32.mrb[0].mxu0
        %v3095 = vadd.f32 %v533, %v3094
        %v3096 = vpop.f32.mrb[0].mxu0
        %v3097 = vpop.f32.mrb[0].mxu0
        %v3098 = vadd.f32 %v533, %v3097
        %v3099 = vpop.f32.mrb[0].mxu0
        %3100 = vdwg.mxu0
        %v3101 = vsel %vm538, %v3095, -inf
        %3102 = vmax.xlane.f32.xlu0 %v3101
        %v3103 = vpop.xlane.xlu0 %3102
        %v3104 = vsel %vm538, %v3098, -inf
        %3105 = vmax.xlane.f32.xlu0 %v3104
        %v3106 = vpop.xlane.xlu0 %3105
        %v3107 = vsub.f32 %v3095, %v3103
        %v3108 = vsub.f32 %v3098, %v3106
        %v3109 = vmul.f32 %v3107, 1.442695
        %v3110 = vpow.pop %v3109
        %v3111 = vmul.f32 %v3108, 1.442695
        %v3112 = vpow.pop %v3111
        %v3113 = vsel %vm538, %v3110, 0.0
        %3114 = vadd.xlane.f32.xlu0 %v3113
        %v3115 = vpop.xlane.xlu0 %3114
        %v3116 = vsel %vm538, %v3112, 0.0
        %3117 = vadd.xlane.f32.xlu0 %v3116
        %v3118 = vpop.xlane.xlu0 %3117
        %v3119 = vrcp.pop %v3115
        %v3120 = vrcp.pop %v3118
        %v3121 = vmul.f32 %v3110, %v3119
        %v3122 = vmul.f32 %v3112, %v3120
        %v3123 = vpack.c.bf16 %v3122, %v3121
        %3124 = vrot.lane.b32.xlu0 %v2681, 72
        %v3125 = vpop.permute.xlu0 %3124
        %v3127 = vsel %vm538, %v3123, 0
        %v3130 = vsel %vm603, %v3125, 0
        %3132 = vmatprep.subr.bf16.mxu0 0
        %3133 = vmatpush1.bf16.msra.mxu0 %v3130
        %3134 = vmatprep.subr.bf16.mxu0 0
        %3135 = vmatpush1.bf16.msra.mxu0 0
        %3136 = vmatprep.subr.bf16.mxu0 0
        %3137 = vmatpush1.bf16.msra.mxu0 0
        %3138 = vmatprep.subr.bf16.mxu0 0
        %3139 = vmatpush1.bf16.msra.mxu0 0
        %3140 = vmatprep.subr.bf16.mxu0 0
        %3141 = vmatpush1.bf16.msra.mxu0 0
        %3142 = vmatprep.subr.bf16.mxu0 0
        %3143 = vmatpush1.bf16.msra.mxu0 0
        %3144 = vmatprep.subr.bf16.mxu0 0
        %3145 = vmatpush1.bf16.msra.mxu0 0
        %3146 = vmatprep.subr.bf16.mxu0 0
        %3147 = vmatpush1.bf16.msra.mxu0 0
        %3148 = vmatprep.subr.bf16.mxu0 0
        %3149 = vmatpush1.bf16.msra.mxu0 0
        %3150 = vmatprep.subr.bf16.mxu0 0
        %3151 = vmatpush1.bf16.msra.mxu0 0
        %3152 = vmatprep.subr.bf16.mxu0 0
        %3153 = vmatpush1.bf16.msra.mxu0 0
        %3154 = vmatprep.subr.bf16.mxu0 0
        %3155 = vmatpush1.bf16.msra.mxu0 0
        %3156 = vmatprep.subr.bf16.mxu0 0
        %3157 = vmatpush1.bf16.msra.mxu0 0
        %3158 = vmatprep.subr.bf16.mxu0 0
        %3159 = vmatpush1.bf16.msra.mxu0 0
        %3160 = vmatprep.subr.bf16.mxu0 0
        %3161 = vmatpush1.bf16.msra.mxu0 0
        %3162 = vmatprep.subr.bf16.mxu0 0
        %3163 = vmatpush1.bf16.msra.mxu0 0
        %3164 = vmatprep.mubr.bf16.mxu0 0
        %3165 = vmatmul.mubr.bf16.gmra.mrb[0].mxu0 %v3127
        %v3166 = vpop.f32.mrb[0].mxu0
        %v3167 = vadd.f32 0.0, %v3166
        %v3168 = vpop.f32.mrb[0].mxu0
        %v3169 = vpop.f32.mrb[0].mxu0
        %v3170 = vadd.f32 0.0, %v3169
        %v3171 = vpop.f32.mrb[0].mxu0
        %3172 = vdwg.mxu0
        %3175 = vrot.lane.b32.xlu0 %v2921, 8
        %v3176 = vpop.permute.xlu0 %3175
        %3177 = vrot.lane.b32.xlu0 %v2924, 8
        %v3178 = vpop.permute.xlu0 %3177
        %3183 = vrot.lane.b32.xlu0 %v3044, 16
        %v3184 = vpop.permute.xlu0 %3183
        %3185 = vrot.lane.b32.xlu0 %v3047, 16
        %v3186 = vpop.permute.xlu0 %3185
        %3191 = vrot.lane.b32.xlu0 %v3167, 24
        %v3192 = vpop.permute.xlu0 %3191
        %3193 = vrot.lane.b32.xlu0 %v3170, 24
        %v3194 = vpop.permute.xlu0 %3193
        %v3197 = vsel %vm538, %v2796, %v3176
        %v3198 = vsel %vm538, %v2799, %v3178
        %v3199 = vsel %vm991, %v3197, %v3184
        %v3200 = vsel %vm991, %v3198, %v3186
        %v3201 = vsel %vm993, %v3199, %v3192
        %v3202 = vsel %vm993, %v3200, %v3194
        %v3203 = vpack.c.bf16 %v3202, %v3201
        %v3204 = vld [vmem:[#allocation8 + $0xa8] sm:$0xf]
        %v3205 = vld [vmem:[#allocation8 + $0xac] sm:$0xf]
        %v3206 = vld [vmem:[#allocation8 + $0xb0] sm:$0xf]
        %v3207 = vld [vmem:[#allocation8 + $0xb4] sm:$0xf]
        %v3212 = vunpack.c.l.b16 %v3204
        %v3213 = vunpack.c.l.b16 %v3205
        %v3214 = vunpack.c.l.b16 %v3206
        %v3215 = vunpack.c.l.b16 %v3207
        %v3216 = vpack.c.b16 %v3213, %v3212
        %v3217 = vpack.c.b16 %v3215, %v3214
        %v3221 = vsel %vm418, %v3203, 0
        %3223 = vmatprep.subr.bf16.mxu0 0
        %3224 = vmatpush1.bf16.msra.mxu0 %v3216
        %3225 = vmatprep.subr.bf16.mxu0 0
        %3226 = vmatpush1.bf16.msra.mxu0 %v3217
        %3227 = vmatprep.subr.bf16.mxu0 0
        %3228 = vmatpush1.bf16.msra.mxu0 0
        %3229 = vmatprep.subr.bf16.mxu0 0
        %3230 = vmatpush1.bf16.msra.mxu0 0
        %3231 = vmatprep.subr.bf16.mxu0 0
        %3232 = vmatpush1.bf16.msra.mxu0 0
        %3233 = vmatprep.subr.bf16.mxu0 0
        %3234 = vmatpush1.bf16.msra.mxu0 0
        %3235 = vmatprep.subr.bf16.mxu0 0
        %3236 = vmatpush1.bf16.msra.mxu0 0
        %3237 = vmatprep.subr.bf16.mxu0 0
        %3238 = vmatpush1.bf16.msra.mxu0 0
        %3239 = vmatprep.subr.bf16.mxu0 0
        %3240 = vmatpush1.bf16.msra.mxu0 0
        %3241 = vmatprep.subr.bf16.mxu0 0
        %3242 = vmatpush1.bf16.msra.mxu0 0
        %3243 = vmatprep.subr.bf16.mxu0 0
        %3244 = vmatpush1.bf16.msra.mxu0 0
        %3245 = vmatprep.subr.bf16.mxu0 0
        %3246 = vmatpush1.bf16.msra.mxu0 0
        %3247 = vmatprep.subr.bf16.mxu0 0
        %3248 = vmatpush1.bf16.msra.mxu0 0
        %3249 = vmatprep.subr.bf16.mxu0 0
        %3250 = vmatpush1.bf16.msra.mxu0 0
        %3251 = vmatprep.subr.bf16.mxu0 0
        %3252 = vmatpush1.bf16.msra.mxu0 0
        %3253 = vmatprep.subr.bf16.mxu0 0
        %3254 = vmatpush1.bf16.msra.mxu0 0
        %3255 = vmatprep.mubr.bf16.mxu0 0
        %3256 = vmatmul.mubr.bf16.gmra.mrb[0].mxu0 %v3221
        %v3257 = vpop.f32.mrb[0].mxu0
        %v3258 = vadd.f32 0.0, %v3257
        %v3259 = vpop.f32.mrb[0].mxu0
        %v3260 = vpop.f32.mrb[0].mxu0
        %v3261 = vadd.f32 0.0, %v3260
        %v3262 = vpop.f32.mrb[0].mxu0
        %3263 = vdwg.mxu0
        %v3264 = vadd.f32 %v1793, %v3258
        %v3265 = vadd.f32 %v1794, %v3261
        %v3266 = vlaneseq
        %v3267 = vshrl.u32 %v3266, 7
        %v3268 = vsub.s32 0, %v3267
        %v3269 = vrot.slane %v2493, %v3268
        %v3270 = vadd.f32 %v3264, %v3269
        %v3271 = vadd.f32 %v3265, %v3269
        %v3272 = vld [vmem:[#allocation7 + $0x18] sm:$0x1]
        %v3273 = vld [vmem:[#allocation7 + $0x19] sm:$0x1]
        %v3274 = vld [vmem:[#allocation7 + $0x1a] sm:$0x1]
        %v3275 = vld [vmem:[#allocation7 + $0x1b] sm:$0x1]
        %v3276 = vsel %vm418, %v2487, 0.0
        %3277 = vadd.xlane.f32.xlu0 %v3276
        %v3278 = vpop.xlane.xlu0 %3277
        %v3279 = vmul.f32 %v3278, %v422
        %v3280 = vsub.f32 %v2487, %v3279
        %v3281 = vmul.f32 %v3280, %v3280
        %v3282 = vsel %vm418, %v3281, 0.0
        %3283 = vadd.xlane.f32.xlu0 %v3282
        %v3284 = vpop.xlane.xlu0 %3283
        %v3285 = vmul.f32 %v3284, %v422
        %v3286 = vadd.f32 %v3285, 1e-05
        %v3287 = vrsqrt.pop %v3286
        %v3288 = vmul.f32 %v3280, %v3287
        %v3289 = vlaneseq
        %v3290 = vshrl.u32 %v3289, 7
        %v3291 = vsub.s32 0, %v3290
        %v3292 = vrot.slane %v3272, %v3291
        %v3293 = vmul.f32 %v3288, %v3292
        %v3294 = vlaneseq
        %v3295 = vshrl.u32 %v3294, 7
        %v3296 = vsub.s32 0, %v3295
        %v3297 = vrot.slane %v3273, %v3296
        %v3298 = vadd.f32 %v3293, %v3297
        %v3299 = vpack.c.bf16 %v3298, %v3298
        %v3300 = vld [vmem:[#allocation8 + $0xb8] sm:$0xf]
        %v3301 = vld [vmem:[#allocation8 + $0xbc] sm:$0xf]
        %v3302 = vld [vmem:[#allocation8 + $0xc0] sm:$0xf]
        %v3303 = vld [vmem:[#allocation8 + $0xc4] sm:$0xf]
        %v3304 = vlaneseq
        %v3305 = vshrl.u32 %v3304, 7
        %v3306 = vsub.s32 0, %v3305
        %v3307 = vrot.slane %v3274, %v3306
        %v3312 = vunpack.c.l.b16 %v3300
        %v3313 = vunpack.c.l.b16 %v3301
        %v3314 = vunpack.c.l.b16 %v3302
        %v3315 = vunpack.c.l.b16 %v3303
        %v3316 = vpack.c.b16 %v3313, %v3312
        %v3317 = vpack.c.b16 %v3315, %v3314
        %v3321 = vsel %vm418, %v3299, 0
        %3323 = vmatprep.subr.bf16.mxu0 0
        %3324 = vmatpush1.bf16.msra.mxu0 %v3316
        %3325 = vmatprep.subr.bf16.mxu0 0
        %3326 = vmatpush1.bf16.msra.mxu0 %v3317
        %3327 = vmatprep.subr.bf16.mxu0 0
        %3328 = vmatpush1.bf16.msra.mxu0 0
        %3329 = vmatprep.subr.bf16.mxu0 0
        %3330 = vmatpush1.bf16.msra.mxu0 0
        %3331 = vmatprep.subr.bf16.mxu0 0
        %3332 = vmatpush1.bf16.msra.mxu0 0
        %3333 = vmatprep.subr.bf16.mxu0 0
        %3334 = vmatpush1.bf16.msra.mxu0 0
        %3335 = vmatprep.subr.bf16.mxu0 0
        %3336 = vmatpush1.bf16.msra.mxu0 0
        %3337 = vmatprep.subr.bf16.mxu0 0
        %3338 = vmatpush1.bf16.msra.mxu0 0
        %3339 = vmatprep.subr.bf16.mxu0 0
        %3340 = vmatpush1.bf16.msra.mxu0 0
        %3341 = vmatprep.subr.bf16.mxu0 0
        %3342 = vmatpush1.bf16.msra.mxu0 0
        %3343 = vmatprep.subr.bf16.mxu0 0
        %3344 = vmatpush1.bf16.msra.mxu0 0
        %3345 = vmatprep.subr.bf16.mxu0 0
        %3346 = vmatpush1.bf16.msra.mxu0 0
        %3347 = vmatprep.subr.bf16.mxu0 0
        %3348 = vmatpush1.bf16.msra.mxu0 0
        %3349 = vmatprep.subr.bf16.mxu0 0
        %3350 = vmatpush1.bf16.msra.mxu0 0
        %3351 = vmatprep.subr.bf16.mxu0 0
        %3352 = vmatpush1.bf16.msra.mxu0 0
        %3353 = vmatprep.subr.bf16.mxu0 0
        %3354 = vmatpush1.bf16.msra.mxu0 0
        %3355 = vmatprep.mubr.bf16.mxu0 0
        %3356 = vmatmul.mubr.bf16.gmra.mrb[0].mxu0 %v3321
        %v3357 = vpop.f32.mrb[0].mxu0
        %v3358 = vadd.f32 %v3307, %v3357
        %v3359 = vpop.f32.mrb[0].mxu0
        %v3360 = vpop.f32.mrb[0].mxu0
        %v3361 = vpop.f32.mrb[0].mxu0
        %3362 = vdwg.mxu0
        %v3363 = vmax.f32 %v3358, 0.0
        %v3364 = vpack.c.bf16 %v3363, %v3363
        %v3365 = vld [vmem:[#allocation8 + $0xc8] sm:$0xf]
        %v3366 = vld [vmem:[#allocation8 + $0xcc] sm:$0xf]
        %v3367 = vld [vmem:[#allocation8 + $0xd0] sm:$0xf]
        %v3368 = vld [vmem:[#allocation8 + $0xd4] sm:$0xf]
        %v3369 = vld [vmem:[#allocation8 + $0xd8] sm:$0xf]
        %v3370 = vld [vmem:[#allocation8 + $0xdc] sm:$0xf]
        %v3371 = vld [vmem:[#allocation8 + $0xe0] sm:$0xf]
        %v3372 = vld [vmem:[#allocation8 + $0xe4] sm:$0xf]
        %v3373 = vlaneseq
        %v3374 = vshrl.u32 %v3373, 7
        %v3375 = vsub.s32 0, %v3374
        %v3376 = vrot.slane %v3275, %v3375
        %v3385 = vunpack.c.l.b16 %v3365
        %v3386 = vunpack.c.l.b16 %v3366
        %v3387 = vunpack.c.l.b16 %v3367
        %v3388 = vunpack.c.l.b16 %v3368
        %v3389 = vunpack.c.l.b16 %v3369
        %v3390 = vunpack.c.l.b16 %v3370
        %v3391 = vunpack.c.l.b16 %v3371
        %v3392 = vunpack.c.l.b16 %v3372
        %v3393 = vpack.c.b16 %v3386, %v3385
        %v3394 = vpack.c.b16 %v3388, %v3387
        %v3395 = vpack.c.b16 %v3390, %v3389
        %v3396 = vpack.c.b16 %v3392, %v3391
        %vm3401 = vcmask 523264
        %v3403 = vsel %vm3401, %v3364, 0
        %3405 = vmatprep.subr.bf16.mxu0 0
        %3406 = vmatpush1.bf16.msra.mxu0 %v3393
        %3407 = vmatprep.subr.bf16.mxu0 0
        %3408 = vmatpush1.bf16.msra.mxu0 %v3394
        %3409 = vmatprep.subr.bf16.mxu0 0
        %3410 = vmatpush1.bf16.msra.mxu0 %v3395
        %3411 = vmatprep.subr.bf16.mxu0 0
        %3412 = vmatpush1.bf16.msra.mxu0 %v3396
        %3413 = vmatprep.subr.bf16.mxu0 0
        %3414 = vmatpush1.bf16.msra.mxu0 0
        %3415 = vmatprep.subr.bf16.mxu0 0
        %3416 = vmatpush1.bf16.msra.mxu0 0
        %3417 = vmatprep.subr.bf16.mxu0 0
        %3418 = vmatpush1.bf16.msra.mxu0 0
        %3419 = vmatprep.subr.bf16.mxu0 0
        %3420 = vmatpush1.bf16.msra.mxu0 0
        %3421 = vmatprep.subr.bf16.mxu0 0
        %3422 = vmatpush1.bf16.msra.mxu0 0
        %3423 = vmatprep.subr.bf16.mxu0 0
        %3424 = vmatpush1.bf16.msra.mxu0 0
        %3425 = vmatprep.subr.bf16.mxu0 0
        %3426 = vmatpush1.bf16.msra.mxu0 0
        %3427 = vmatprep.subr.bf16.mxu0 0
        %3428 = vmatpush1.bf16.msra.mxu0 0
        %3429 = vmatprep.subr.bf16.mxu0 0
        %3430 = vmatpush1.bf16.msra.mxu0 0
        %3431 = vmatprep.subr.bf16.mxu0 0
        %3432 = vmatpush1.bf16.msra.mxu0 0
        %3433 = vmatprep.subr.bf16.mxu0 0
        %3434 = vmatpush1.bf16.msra.mxu0 0
        %3435 = vmatprep.subr.bf16.mxu0 0
        %3436 = vmatpush1.bf16.msra.mxu0 0
        %3437 = vmatprep.mubr.bf16.mxu0 0
        %3438 = vmatmul.mubr.bf16.gmra.mrb[0].mxu0 %v3403
        %v3439 = vpop.f32.mrb[0].mxu0
        %v3440 = vadd.f32 %v3376, %v3439
        %v3441 = vpop.f32.mrb[0].mxu0
        %v3442 = vpop.f32.mrb[0].mxu0
        %v3443 = vpop.f32.mrb[0].mxu0
        %3444 = vdwg.mxu0
        %v3445 = vadd.f32 %v2487, %v3440
        %v3446 = vld [vmem:[#allocation7 + $0x1c] sm:$0x1]
        %v3447 = vld [vmem:[#allocation7 + $0x1d] sm:$0x1]
        %v3448 = vld [vmem:[#allocation7 + $0x1e] sm:$0x1]
        %v3449 = vld [vmem:[#allocation7 + $0x1f] sm:$0x1]
        %v3450 = vsel %vm1067, %v3270, 0.0
        %3451 = vadd.xlane.f32.xlu0 %v3450
        %v3452 = vpop.xlane.xlu0 %3451
        %v3453 = vsel %vm1067, %v3271, 0.0
        %3454 = vadd.xlane.f32.xlu0 %v3453
        %v3455 = vpop.xlane.xlu0 %3454
        %v3456 = vmul.f32 %v3452, %v1074
        %v3457 = vmul.f32 %v3455, %v1074
        %v3458 = vsub.f32 %v3270, %v3456
        %v3459 = vsub.f32 %v3271, %v3457
        %v3460 = vmul.f32 %v3458, %v3458
        %v3461 = vmul.f32 %v3459, %v3459
        %v3462 = vsel %vm1067, %v3460, 0.0
        %3463 = vadd.xlane.f32.xlu0 %v3462
        %v3464 = vpop.xlane.xlu0 %3463
        %v3465 = vsel %vm1067, %v3461, 0.0
        %3466 = vadd.xlane.f32.xlu0 %v3465
        %v3467 = vpop.xlane.xlu0 %3466
        %v3468 = vmul.f32 %v3464, %v1074
        %v3469 = vmul.f32 %v3467, %v1074
        %v3470 = vadd.f32 %v3468, 1e-05
        %v3471 = vadd.f32 %v3469, 1e-05
        %v3472 = vrsqrt.pop %v3470
        %v3473 = vrsqrt.pop %v3471
        %v3474 = vmul.f32 %v3458, %v3472
        %v3475 = vmul.f32 %v3459, %v3473
        %v3476 = vlaneseq
        %v3477 = vshrl.u32 %v3476, 7
        %v3478 = vsub.s32 0, %v3477
        %v3479 = vrot.slane %v3446, %v3478
        %v3480 = vmul.f32 %v3474, %v3479
        %v3481 = vmul.f32 %v3475, %v3479
        %v3482 = vlaneseq
        %v3483 = vshrl.u32 %v3482, 7
        %v3484 = vsub.s32 0, %v3483
        %v3485 = vrot.slane %v3447, %v3484
        %v3486 = vadd.f32 %v3480, %v3485
        %v3487 = vadd.f32 %v3481, %v3485
        %v3488 = vpack.c.bf16 %v3487, %v3486
        %v3489 = vld [vmem:[#allocation8 + $0xe8] sm:$0xf]
        %v3490 = vld [vmem:[#allocation8 + $0xec] sm:$0xf]
        %v3491 = vld [vmem:[#allocation8 + $0xf0] sm:$0xf]
        %v3492 = vld [vmem:[#allocation8 + $0xf4] sm:$0xf]
        %v3493 = vld [vmem:[#allocation8 + $0xf8] sm:$0xf]
        %v3494 = vld [vmem:[#allocation8 + $0xfc] sm:$0xf]
        %v3495 = vlaneseq
        %v3496 = vshrl.u32 %v3495, 7
        %v3497 = vsub.s32 0, %v3496
        %v3498 = vrot.slane %v3448, %v3497
        %v3505 = vunpack.c.l.b16 %v3489
        %v3506 = vunpack.c.l.b16 %v3490
        %v3507 = vunpack.c.l.b16 %v3491
        %v3508 = vunpack.c.l.b16 %v3492
        %v3509 = vunpack.c.l.b16 %v3493
        %v3510 = vunpack.c.l.b16 %v3494
        %v3511 = vpack.c.b16 %v3506, %v3505
        %v3512 = vpack.c.b16 %v3508, %v3507
        %v3513 = vpack.c.b16 %v3510, %v3509
        %v3518 = vsel %vm1067, %v3488, 0
        %3520 = vmatprep.subr.bf16.mxu0 0
        %3521 = vmatpush1.bf16.msra.mxu0 %v3511
        %3522 = vmatprep.subr.bf16.mxu0 0
        %3523 = vmatpush1.bf16.msra.mxu0 %v3512
        %3524 = vmatprep.subr.bf16.mxu0 0
        %3525 = vmatpush1.bf16.msra.mxu0 %v3513
        %3526 = vmatprep.subr.bf16.mxu0 0
        %3527 = vmatpush1.bf16.msra.mxu0 0
        %3528 = vmatprep.subr.bf16.mxu0 0
        %3529 = vmatpush1.bf16.msra.mxu0 0
        %3530 = vmatprep.subr.bf16.mxu0 0
        %3531 = vmatpush1.bf16.msra.mxu0 0
        %3532 = vmatprep.subr.bf16.mxu0 0
        %3533 = vmatpush1.bf16.msra.mxu0 0
        %3534 = vmatprep.subr.bf16.mxu0 0
        %3535 = vmatpush1.bf16.msra.mxu0 0
        %3536 = vmatprep.subr.bf16.mxu0 0
        %3537 = vmatpush1.bf16.msra.mxu0 0
        %3538 = vmatprep.subr.bf16.mxu0 0
        %3539 = vmatpush1.bf16.msra.mxu0 0
        %3540 = vmatprep.subr.bf16.mxu0 0
        %3541 = vmatpush1.bf16.msra.mxu0 0
        %3542 = vmatprep.subr.bf16.mxu0 0
        %3543 = vmatpush1.bf16.msra.mxu0 0
        %3544 = vmatprep.subr.bf16.mxu0 0
        %3545 = vmatpush1.bf16.msra.mxu0 0
        %3546 = vmatprep.subr.bf16.mxu0 0
        %3547 = vmatpush1.bf16.msra.mxu0 0
        %3548 = vmatprep.subr.bf16.mxu0 0
        %3549 = vmatpush1.bf16.msra.mxu0 0
        %3550 = vmatprep.subr.bf16.mxu0 0
        %3551 = vmatpush1.bf16.msra.mxu0 0
        %3552 = vmatprep.mubr.bf16.mxu0 0
        %3553 = vmatmul.mubr.bf16.gmra.mrb[0].mxu0 %v3518
        %v3554 = vpop.f32.mrb[0].mxu0
        %v3555 = vadd.f32 %v3498, %v3554
        %v3556 = vpop.f32.mrb[0].mxu0
        %v3557 = vpop.f32.mrb[0].mxu0
        %v3558 = vadd.f32 %v3498, %v3557
        %v3559 = vpop.f32.mrb[0].mxu0
        %3560 = vdwg.mxu0
        %v3561 = vmax.f32 %v3555, 0.0
        %v3562 = vmax.f32 %v3558, 0.0
        %v3563 = vpack.c.bf16 %v3562, %v3561
        %v3564 = vld [vmem:[#allocation8 + $0x100] sm:$0xf]
        %v3565 = vld [vmem:[#allocation8 + $0x104] sm:$0xf]
        %v3566 = vld [vmem:[#allocation8 + $0x108] sm:$0xf]
        %v3567 = vld [vmem:[#allocation8 + $0x10c] sm:$0xf]
        %v3568 = vld [vmem:[#allocation8 + $0x110] sm:$0xf]
        %v3569 = vld [vmem:[#allocation8 + $0x114] sm:$0xf]
        %v3570 = vld [vmem:[#allocation8 + $0x118] sm:$0xf]
        %v3571 = vld [vmem:[#allocation8 + $0x11c] sm:$0xf]
        %v3572 = vld [vmem:[#allocation8 + $0x120] sm:$0xf]
        %v3573 = vld [vmem:[#allocation8 + $0x124] sm:$0xf]
        %v3574 = vld [vmem:[#allocation8 + $0x128] sm:$0xf]
        %v3575 = vld [vmem:[#allocation8 + $0x12c] sm:$0xf]
        %v3576 = vlaneseq
        %v3577 = vshrl.u32 %v3576, 7
        %v3578 = vsub.s32 0, %v3577
        %v3579 = vrot.slane %v3449, %v3578
        %v3592 = vunpack.c.l.b16 %v3564
        %v3593 = vunpack.c.l.b16 %v3565
        %v3594 = vunpack.c.l.b16 %v3566
        %v3595 = vunpack.c.l.b16 %v3567
        %v3596 = vunpack.c.l.b16 %v3568
        %v3597 = vunpack.c.l.b16 %v3569
        %v3598 = vunpack.c.l.b16 %v3570
        %v3599 = vunpack.c.l.b16 %v3571
        %v3600 = vunpack.c.l.b16 %v3572
        %v3601 = vunpack.c.l.b16 %v3573
        %v3602 = vunpack.c.l.b16 %v3574
        %v3603 = vunpack.c.l.b16 %v3575
        %v3604 = vpack.c.b16 %v3593, %v3592
        %v3605 = vpack.c.b16 %v3595, %v3594
        %v3606 = vpack.c.b16 %v3597, %v3596
        %v3607 = vpack.c.b16 %v3599, %v3598
        %v3608 = vpack.c.b16 %v3601, %v3600
        %v3609 = vpack.c.b16 %v3603, %v3602
        %vm3616 = vcmask 785408
        %v3618 = vsel %vm3616, %v3563, 0
        %3620 = vmatprep.subr.bf16.mxu0 0
        %3621 = vmatpush1.bf16.msra.mxu0 %v3604
        %3622 = vmatprep.subr.bf16.mxu0 0
        %3623 = vmatpush1.bf16.msra.mxu0 %v3605
        %3624 = vmatprep.subr.bf16.mxu0 0
        %3625 = vmatpush1.bf16.msra.mxu0 %v3606
        %3626 = vmatprep.subr.bf16.mxu0 0
        %3627 = vmatpush1.bf16.msra.mxu0 %v3607
        %3628 = vmatprep.subr.bf16.mxu0 0
        %3629 = vmatpush1.bf16.msra.mxu0 %v3608
        %3630 = vmatprep.subr.bf16.mxu0 0
        %3631 = vmatpush1.bf16.msra.mxu0 %v3609
        %3632 = vmatprep.subr.bf16.mxu0 0
        %3633 = vmatpush1.bf16.msra.mxu0 0
        %3634 = vmatprep.subr.bf16.mxu0 0
        %3635 = vmatpush1.bf16.msra.mxu0 0
        %3636 = vmatprep.subr.bf16.mxu0 0
        %3637 = vmatpush1.bf16.msra.mxu0 0
        %3638 = vmatprep.subr.bf16.mxu0 0
        %3639 = vmatpush1.bf16.msra.mxu0 0
        %3640 = vmatprep.subr.bf16.mxu0 0
        %3641 = vmatpush1.bf16.msra.mxu0 0
        %3642 = vmatprep.subr.bf16.mxu0 0
        %3643 = vmatpush1.bf16.msra.mxu0 0
        %3644 = vmatprep.subr.bf16.mxu0 0
        %3645 = vmatpush1.bf16.msra.mxu0 0
        %3646 = vmatprep.subr.bf16.mxu0 0
        %3647 = vmatpush1.bf16.msra.mxu0 0
        %3648 = vmatprep.subr.bf16.mxu0 0
        %3649 = vmatpush1.bf16.msra.mxu0 0
        %3650 = vmatprep.subr.bf16.mxu0 0
        %3651 = vmatpush1.bf16.msra.mxu0 0
        %3652 = vmatprep.mubr.bf16.mxu0 0
        %3653 = vmatmul.mubr.bf16.gmra.mrb[0].mxu0 %v3618
        %v3654 = vpop.f32.mrb[0].mxu0
        %v3655 = vadd.f32 %v3579, %v3654
        %v3656 = vpop.f32.mrb[0].mxu0
        %v3657 = vpop.f32.mrb[0].mxu0
        %v3658 = vadd.f32 %v3579, %v3657
        %v3659 = vpop.f32.mrb[0].mxu0
        %3660 = vdwg.mxu0
        %v3661 = vadd.f32 %v3270, %v3655
        %v3662 = vadd.f32 %v3271, %v3658
        %3663 = vst.msk [vmem:[%s388] sm:$0xff] %vm418, %v3445
        %3664 = vst.msk [vmem:[%s395] sm:$0xff] %vm1067, %v3661
        %3665 = vst.msk [vmem:[%s395 + $0x8] sm:$0xff] %vm1067, %v3662
        %s3666 = sand.u32 %s186, 1
        %s3667 = scalar_lea.sflag [#allocation4], %s3666
        %s3668 = sand.u32 %s186, 1
        %s3669 = smul.addr %s3668, 8
        %s3670 = scalar_lea.vmem [#allocation10], %s3669
        %s3671 = sand.u32 %s212, 1
        %s3672 = scalar_lea.sflag [#allocation12], %s3671
        %s3673 = sand.u32 %s212, 1
        %s3674 = smul.addr %s3673, 16
        %s3675 = scalar_lea.vmem [#allocation11], %s3674
        // Predicated region
        $region61: #{bimodal_encoder_two.1} parent=43 // pred_check
          %p3676 = pneg %p196
        $region62: #{bimodal_encoder_two.1} parent=43 // pred_check_branch
          %3678 = sbr.rel (%p3676) target = $region64
        $region63: #{bimodal_encoder_two.1} parent=43 // pred_region
          %s3680 = ssub.s32 128, 128
          %3681 = vsyncadd %s3667, %s3680
          %s3682 = smul.addr %s32, 128
          %s3683 = scalar_lea.hbm %s6, %s3682
          %s3685 = sshll.u32 %s3670, 4
          %s3686 = int_to_ptr.vmem [resolvable:$true] %s3685
          %3688 = dma.vmem_to_hbm [thread:$0]  %s3686, 128, %s3683, %s3667
        $region64: #{bimodal_encoder_two.1} parent=43 // pred_fallthru
          _
        // Predicated region
        $region65: #{bimodal_encoder_two.1} parent=43 // pred_check
          %p3689 = pneg %p222
        $region66: #{bimodal_encoder_two.1} parent=43 // pred_check_branch
          %3691 = sbr.rel (%p3689) target = $region68
        $region67: #{bimodal_encoder_two.1} parent=43 // pred_region
          %s3693 = ssub.s32 256, 256
          %3694 = vsyncadd %s3672, %s3693
          %s3695 = smul.addr %s32, 2
          %s3696 = smul.addr %s3695, 128
          %s3697 = scalar_lea.hbm %s7, %s3696
          %s3698 = sshll.u32 %s3675, 4
          %s3699 = int_to_ptr.vmem [resolvable:$true] %s3698
          %3704 = dma.vmem_to_hbm [thread:$0]  %s3699, 256, %s3697, %s3672, 128, 128, 8
        $region68: #{bimodal_encoder_two.1} parent=43 // pred_fallthru
          _
      $region44: #{bimodal_encoder_two.1} parent=5 // pred_fallthru
        _
      %p3705 = scmp.le.s32.totalorder 2, %s27
      // Predicated region
      $region69: #{bimodal_encoder_two.1} parent=5 // pred_check
        %p3706 = pneg %p3705
      $region70: #{bimodal_encoder_two.1} parent=5 // pred_check_branch
        %3708 = sbr.rel (%p3706) target = $region72
      $region71: #{bimodal_encoder_two.1} parent=5 // pred_region
        %s3709 = ssub.s32 %s27, 2
        // Predicated region
        $region73: #{bimodal_encoder_two.1} parent=71 // pred_check
          %p3710 = pneg %p202
        $region74: #{bimodal_encoder_two.1} parent=71 // pred_check_branch
          %3712 = sbr.rel (%p3710) target = $region76
        $region75: #{bimodal_encoder_two.1} parent=71 // pred_region
          %s3713 = sand.u32 %s187, 1
          %s3714 = scalar_lea.sflag [#allocation4], %s3713
          %s3715 = sand.u32 %s187, 1
          %s3716 = smul.addr %s3715, 8
          %s3717 = scalar_lea.vmem [#allocation10], %s3716
          %3718 = dma.done %s3714, 128
        $region76: #{bimodal_encoder_two.1} parent=71 // pred_fallthru
          _
        // Predicated region
        $region77: #{bimodal_encoder_two.1} parent=71 // pred_check
          %p3719 = pneg %p228
        $region78: #{bimodal_encoder_two.1} parent=71 // pred_check_branch
          %3721 = sbr.rel (%p3719) target = $region80
        $region79: #{bimodal_encoder_two.1} parent=71 // pred_region
          %s3722 = sand.u32 %s213, 1
          %s3723 = scalar_lea.sflag [#allocation12], %s3722
          %s3724 = sand.u32 %s213, 1
          %s3725 = smul.addr %s3724, 16
          %s3726 = scalar_lea.vmem [#allocation11], %s3725
          %3727 = dma.done %s3723, 256
        $region80: #{bimodal_encoder_two.1} parent=71 // pred_fallthru
          _
      $region72: #{bimodal_encoder_two.1} parent=5 // pred_fallthru
        _
    $region6: #{bimodal_encoder_two.1} parent=1 // loop_footer
      %s31 = sadd.s32 1, %s27
    $region7: #{bimodal_encoder_two.1} parent=1 // loop_footer_branch
      %26 = sbr.rel target = $region3
    $region8: #{bimodal_encoder_two.1} parent=1 // loop_exit
      _
    %3728 = vsyncpa [#allocation3], 1
    %s3729 = scalar_lea.sflag [#allocation3], 1
    %3730 = vsyncpa %s3729, 1
    %3731 = vsyncpa [#allocation6], 1
    %s3732 = scalar_lea.sflag [#allocation6], 1
    %3733 = vsyncpa %s3732, 1
    %3734 = vsyncpa [#allocation9], 1
    %3735 = vsyncpa [#allocation4], 1
    %s3736 = scalar_lea.sflag [#allocation4], 1
    %3737 = vsyncpa %s3736, 1
    %3738 = vsyncpa [#allocation12], 1
    %s3739 = scalar_lea.sflag [#allocation12], 1
    %3740 = vsyncpa %s3739, 1

</llo_original>
